<compile_context>
chip_gen: v7x
topology: tpu7x:2x2x1
jax: 0.10.0
libtpu: 0.0.40
codegen_flags: <defaults>
</compile_context>

<pallas_src>
import functools

import jax
import jax.numpy as jnp
from jax.experimental import pallas as pl
from jax.experimental.pallas import tpu as pltpu

EPS = 1e-5


def _round_up(x, m):
    return (x + m - 1) // m * m


def _vmem_budget():
    """Generation-aware VMEM limit: ~48 MiB on v7x (64 MiB/TC), ~96 MiB on v5e/v6e."""
    cap = 64 * 1024 * 1024
    try:
        cap = int(pltpu.get_tpu_info().vmem_capacity_bytes)
    except Exception:
        pass
    return min(int(cap * 3 // 4), 96 * 1024 * 1024)


def _choose_tiles(n, cin_p, cout_p, budget, tm_pref, tk_pref):
    """Pick (tm, tk, n_p, x_resident).

    Avoids the old divisor-only pathology: if no divisor of N128 >= tm_pref/2 exists,
    pad N up to a multiple of tm (padded rows are all-zero and exact) instead of
    collapsing to 128-wide tiles."""
    n128 = _round_up(n, 128)
    tm = max(128, min(tm_pref, n128) // 128 * 128)
    d, floor = tm, max(128, tm // 2)
    while d >= floor and n128 % d:
        d -= 128
    if d >= floor and n128 % d == 0:
        tm, n_p = d, n128
    else:
        n_p = _round_up(n128, tm)

    tk = max(128, min(tk_pref, n_p) // 128 * 128)
    while n_p % tk:
        tk -= 128

    def fits(tm_, tk_, resident):
        a = 2 * tm_ * tk_                                    # int8 A, double-buffered
        xk = n_p * cin_p * 2 if resident else 2 * tk_ * cin_p * 2
        xi = 2 * tm_ * cin_p * 2
        h = 2 * tm_ * cout_p * 4
        w = 2 * cin_p * cout_p * 4
        acc = tm_ * cin_p * 4
        misc = 4 * 8 * cout_p * 4 + (1 << 20)                # stat partials + slack
        return a + xk + xi + h + w + acc + misc <= budget

    x_resident = fits(tm, tk, True)
    while not fits(tm, tk, x_resident):
        if tk > tm:
            tk = max(tm, (tk // 2) // 128 * 128)
            while n_p % tk:
                tk -= 128
        elif tm > 256:
            tm -= 128
            while n_p % tm:
                tm -= 128
        else:
            break
    return tm, tk, n_p, x_resident


def _conv_kernel(a_ref, xk_ref, xi_ref, wrel_ref, wroot_ref,
                 h_ref, psum_ref, psq_ref, acc_ref, *, tk, x_resident):
    """grid = (row tiles, K tiles).  acc += A_tile @ X_tile over K; finalize applies the
    two linears and emits per-row-tile column sum / sumsq partials for the global BN."""
    k = pl.program_id(1)

    @pl.when(k == 0)
    def _():
        acc_ref[...] = jnp.zeros_like(acc_ref)

    # A streamed as int8 (1 B/elem in HBM), upcast to bf16 right before the MXU dot;
    # the cast is VPU filler hidden under the HBM-bound A DMA.
    a = a_ref[...].astype(jnp.bfloat16)
    if x_resident:
        xk = xk_ref[pl.ds(pl.multiple_of(k * tk, 128), tk), :]
    else:
        xk = xk_ref[...]
    acc_ref[...] += jnp.dot(a, xk, preferred_element_type=jnp.float32)

    @pl.when(k == pl.num_programs(1) - 1)
    def _():
        # Finalize: rel + root linears as two small f32 matmuls (tiny vs. the A@X
        # stream, keeps full precision).  b_rel is dropped: a per-column constant
        # cancels exactly through the training-mode BatchNorm mean subtraction.
        h = jnp.dot(acc_ref[...], wrel_ref[...], preferred_element_type=jnp.float32)
        h = h + jnp.dot(xi_ref[...].astype(jnp.float32), wroot_ref[...],
                        preferred_element_type=jnp.float32)
        h_ref[...] = h

        # Padded rows (>= N) have zero adjacency rows, zero features and no bias,
        # so h there is exactly 0 and the unmasked column sums are correct.
        cout_p = h_ref.shape[-1]
        ps = jnp.sum(h, axis=0).reshape(1, 1, cout_p)
        pq = jnp.sum(h * h, axis=0).reshape(1, 1, cout_p)
        psum_ref[...] = jnp.broadcast_to(ps, psum_ref.shape)
        psq_ref[...] = jnp.broadcast_to(pq, psq_ref.shape)


def _bn_relu_kernel(h_ref, scale_ref, shift_ref, o_ref):
    """Pure elementwise: y = relu(h * scale + shift) with precomputed BN scale/shift."""
    o_ref[...] = jnp.maximum(h_ref[...] * scale_ref[...] + shift_ref[...], 0.0)


def graph_conv_bn(x, edge_index, w_rel, b_rel, w_root, gamma, beta,
                  *, tm_pref=1024, tk_pref=4096):
    """x: [N, Cin] f32; edge_index: [2, E] int32 (row 0 = src j, row 1 = dst i).
    w_rel / w_root stored pre-transposed as [Cin, Cout].  b_rel is accepted for API
    parity but cancels exactly under training-mode BatchNorm and is unused.
    TODO(synk): eval-mode BN with running stats (where b_rel does NOT cancel) and the
    running_mean/var EMA update are stateful training bookkeeping, not modeled here."""
    del b_rel
    n, cin = x.shape
    cout = w_rel.shape[1]
    cin_p = _round_up(cin, 128)
    cout_p = _round_up(cout, 128)

    vmem_limit = _vmem_budget()
    tm, tk, n_p, x_resident = _choose_tiles(
        n, cin_p, cout_p, int(vmem_limit * 0.8), tm_pref, tk_pref)
    r, kt = n_p // tm, n_p // tk

    # Dense adjacency A[dst, src], built directly in int8 (exact for per-(dst,src)
    # edge multiplicities <= 127; no f32 temp / cast pass).
    # TODO(synk): for genuinely sparse graphs, replace the dense A@X matmul with a CSR
    # scatter-add using PrefetchScalarGridSpec row offsets (O(E*Cin) vs O(N^2*Cin)).
    src, dst = edge_index[0], edge_index[1]
    adj = jnp.zeros((n_p, n_p), jnp.int8).at[dst, src].add(
        jnp.ones_like(dst, dtype=jnp.int8))

    x_bf = jnp.zeros((n_p, cin_p), jnp.bfloat16).at[:n, :cin].set(
        x.astype(jnp.bfloat16))
    wrel_p = jnp.zeros((cin_p, cout_p), jnp.float32).at[:cin, :cout].set(w_rel)
    wroot_p = jnp.zeros((cin_p, cout_p), jnp.float32).at[:cin, :cout].set(w_root)

    if x_resident:
        # Whole X stays in VMEM (constant index map -> DMA'd once), killing the
        # r-fold re-read across row tiles.
        xk_spec = pl.BlockSpec((n_p, cin_p), lambda i, k: (0, 0))
    else:
        xk_spec = pl.BlockSpec((tk, cin_p), lambda i, k: (k, 0))

    # TODO(synk): on v7x, sweep pipeline_mode=pl.Buffered(3) on the A spec to cover
    # DMA-issue bubbles exposed by the faster HBM.
    h, psum, psq = pl.pallas_call(
        functools.partial(_conv_kernel, tk=tk, x_resident=x_resident),
        grid=(r, kt),
        in_specs=[
            pl.BlockSpec((tm, tk), lambda i, k: (i, k)),            # A tile, int8
            xk_spec,                                                # X rows (aggregation)
            pl.BlockSpec((tm, cin_p), lambda i, k: (i, 0)),         # X rows (root path)
            pl.BlockSpec((cin_p, cout_p), lambda i, k: (0, 0)),     # W_rel (f32, resident)
            pl.BlockSpec((cin_p, cout_p), lambda i, k: (0, 0)),     # W_root (f32, resident)
        ],
        out_specs=(
            pl.BlockSpec((tm, cout_p), lambda i, k: (i, 0)),        # h (pre-BN)
            pl.BlockSpec((1, 8, cout_p), lambda i, k: (i, 0, 0)),   # col-sum partials
            pl.BlockSpec((1, 8, cout_p), lambda i, k: (i, 0, 0)),   # col-sumsq partials
        ),
        out_shape=(
            jax.ShapeDtypeStruct((n_p, cout_p), jnp.float32),
            jax.ShapeDtypeStruct((r, 8, cout_p), jnp.float32),
            jax.ShapeDtypeStruct((r, 8, cout_p), jnp.float32),
        ),
        scratch_shapes=[pltpu.VMEM((tm, cin_p), jnp.float32)],
        compiler_params=pltpu.CompilerParams(
            dimension_semantics=("parallel", "arbitrary"),
            vmem_limit_bytes=vmem_limit),
    )(adj, x_bf, x_bf, wrel_p, wroot_p)

    # Tiny XLA ops: reduce the per-tile partials once and fold BN into scale/shift,
    # so kernel 2 never re-reduces per row tile.
    s = jnp.sum(psum[:, 0, :], axis=0)
    q = jnp.sum(psq[:, 0, :], axis=0)
    mean = s / n
    # TODO(synk): E[x^2]-E[x]^2 in f32 can lose precision for huge N / large means;
    # switch to a centered second pass if BN-stat precision ever matters.
    var = jnp.maximum(q / n - mean * mean, 0.0)
    g_p = jnp.zeros((cout_p,), jnp.float32).at[:cout].set(gamma)
    be_p = jnp.zeros((cout_p,), jnp.float32).at[:cout].set(beta)
    scale = (g_p * jax.lax.rsqrt(var + EPS)).reshape(1, cout_p)
    shift = (be_p - mean * scale[0]).reshape(1, cout_p)

    y = pl.pallas_call(
        _bn_relu_kernel,
        grid=(r,),
        in_specs=[
            pl.BlockSpec((tm, cout_p), lambda i: (i, 0)),
            pl.BlockSpec((1, cout_p), lambda i: (0, 0)),
            pl.BlockSpec((1, cout_p), lambda i: (0, 0)),
        ],
        out_specs=pl.BlockSpec((tm, cout_p), lambda i: (i, 0)),
        out_shape=jax.ShapeDtypeStruct((n_p, cout_p), jnp.float32),
        compiler_params=pltpu.CompilerParams(
            dimension_semantics=("parallel",),
            vmem_limit_bytes=vmem_limit),
    )(h, scale, shift)

    return y[:n, :cout]


def reference(x, edge_index, w_rel, b_rel, w_root, gamma, beta):
    src, dst = edge_index[0], edge_index[1]
    agg = jnp.zeros_like(x).at[dst].add(x[src])
    h = agg @ w_rel + b_rel + x @ w_root
    mean = h.mean(axis=0, keepdims=True)
    var = ((h - mean) ** 2).mean(axis=0, keepdims=True)
    y = (h - mean) / jnp.sqrt(var + EPS) * gamma + beta
    return jnp.maximum(y, 0.0)


if __name__ == "__main__":
    key = jax.random.PRNGKey(0)
    k_x, k_e, k_wr, k_br, k_wo = jax.random.split(key, 5)

    # Small synthetic graph batch; exercises padding (1200 -> 1280 rows), the
    # divisor-friendly tile pick (tm=640) and the resident-X path.
    N, CIN, COUT, E = 1200, 16, 32, 4000

    x = jax.random.normal(k_x, (N, CIN), dtype=jnp.float32)
    edge_index = jax.random.randint(k_e, (2, E), 0, N, dtype=jnp.int32)
    batch = jnp.zeros((N,), jnp.int32)  # data.batch (unused by the forward math)

    # GraphConv params: lin_rel [Cout,Cin]+bias, lin_root [Cout,Cin] no bias
    # (stored pre-transposed as [Cin, Cout]).
    scale = 1.0 / jnp.sqrt(jnp.float32(CIN))
    w_rel = (jax.random.uniform(k_wr, (CIN, COUT), jnp.float32) * 2 - 1) * scale
    b_rel = (jax.random.uniform(k_br, (COUT,), jnp.float32) * 2 - 1) * scale
    w_root = (jax.random.uniform(k_wo, (CIN, COUT), jnp.float32) * 2 - 1) * scale
    gamma = jnp.ones((COUT,), jnp.float32)   # BN affine weight
    beta = jnp.zeros((COUT,), jnp.float32)   # BN affine bias

    out = jax.block_until_ready(
        graph_conv_bn(x, edge_index, w_rel, b_rel, w_root, gamma, beta))
    ref = reference(x, edge_index, w_rel, b_rel, w_root, gamma, beta)

    assert out.shape == (N, COUT)
    max_err = float(jnp.max(jnp.abs(out - ref)))
    # bf16 feature stream (int8 adjacency is exact) vs f32 reference -> bf16 tolerance.
    assert jnp.allclose(out, ref, atol=4e-2, rtol=4e-2), max_err
    print("KERNEL_OK")
</pallas_src>

<mosaic_0001>
module attributes {stable_mosaic.version = 11 : i64} {
  func.func @_conv_kernel(%arg0: i32, %arg1: i32, %arg2: memref<640x1280xi8, #tpu.memory_space<vmem>>, %arg3: memref<1280x128xbf16, #tpu.memory_space<vmem>>, %arg4: memref<640x128xbf16, #tpu.memory_space<vmem>>, %arg5: memref<128x128xf32, #tpu.memory_space<vmem>>, %arg6: memref<128x128xf32, #tpu.memory_space<vmem>>, %arg7: memref<640x128xf32, #tpu.memory_space<vmem>>, %arg8: memref<1x8x128xf32, #tpu.memory_space<vmem>>, %arg9: memref<1x8x128xf32, #tpu.memory_space<vmem>>, %arg10: memref<640x128xf32, #tpu.memory_space<vmem>>) attributes {dimension_semantics = [#tpu.dimension_semantics<parallel>, #tpu.dimension_semantics<arbitrary>], iteration_bounds = array<i64: 2, 1>, scalar_prefetch = 0 : i64, scratch_operands = 1 : i64, tpu.core_type = #tpu.core_type<tc>, window_params = [{transform_indices = @transform_0, window_bounds = array<i64: 640, 1280>}, {pipeline_mode = #tpu.pipeline_mode<synchronous>, transform_indices = @transform_1, window_bounds = array<i64: 1280, 128>}, {transform_indices = @transform_2, window_bounds = array<i64: 640, 128>}, {pipeline_mode = #tpu.pipeline_mode<synchronous>, transform_indices = @transform_3, window_bounds = array<i64: 128, 128>}, {pipeline_mode = #tpu.pipeline_mode<synchronous>, transform_indices = @transform_4, window_bounds = array<i64: 128, 128>}, {transform_indices = @transform_5, window_bounds = array<i64: 640, 128>}, {transform_indices = @transform_6, window_bounds = array<i64: 1, 8, 128>}, {transform_indices = @transform_7, window_bounds = array<i64: 1, 8, 128>}]} {
    %c0_i32 = arith.constant 0 : i32
    %0 = arith.cmpi eq, %arg1, %c0_i32 : i32
    %1 = arith.extui %0 : i1 to i32
    %c0_i32_0 = arith.constant 0 : i32
    %2 = arith.cmpi ne, %1, %c0_i32_0 : i32
    scf.if %2 {
      %cst_9 = arith.constant 0.000000e+00 : f32
      %16 = vector.broadcast %cst_9 : f32 to vector<640x128xf32>
      %c0_10 = arith.constant 0 : index
      %c0_11 = arith.constant 0 : index
      %17 = vector.load %arg10[%c0_10, %c0_11] : memref<640x128xf32, #tpu.memory_space<vmem>>, vector<640x128xf32>
      tpu.vector_store %arg10[%c0_10, %c0_11], %16 {strides = array<i32>} : memref<640x128xf32, #tpu.memory_space<vmem>>, vector<640x128xf32>,
    } else {
    }
    %c0 = arith.constant 0 : index
    %c0_1 = arith.constant 0 : index
    %3 = vector.load %arg2[%c0, %c0_1] : memref<640x1280xi8, #tpu.memory_space<vmem>>, vector<640x1280xi8>
    %4 = arith.sitofp %3 : vector<640x1280xi8> to vector<640x1280xbf16>
    %c1280_i32 = arith.constant 1280 : i32
    %5 = arith.muli %arg1, %c1280_i32 : i32
    %6 = tpu.assume_multiple %5, 128 : i32
    %7 = arith.index_cast %6 : i32 to index
    %c0_2 = arith.constant 0 : index
    %8 = vector.load %arg3[%7, %c0_2] : memref<1280x128xbf16, #tpu.memory_space<vmem>>, vector<1280x128xbf16>
    %c0_3 = arith.constant 0 : index
    %c0_4 = arith.constant 0 : index
    %9 = vector.load %arg10[%c0_3, %c0_4] : memref<640x128xf32, #tpu.memory_space<vmem>>, vector<640x128xf32>
    %cst = arith.constant dense<0.000000e+00> : vector<640x128xf32>
    %10 = tpu.matmul %4, %8, %cst {dimension_numbers = #tpu.dot_dimension_numbers<[1], [0], [0], [1], [0, 0, 1, 1], [], []>} : vector<640x1280xbf16>, vector<1280x128xbf16>, vector<640x128xf32> -> vector<640x128xf32>
    %11 = arith.addf %9, %10 : vector<640x128xf32>
    %c0_5 = arith.constant 0 : index
    %c0_6 = arith.constant 0 : index
    %12 = vector.load %arg10[%c0_5, %c0_6] : memref<640x128xf32, #tpu.memory_space<vmem>>, vector<640x128xf32>
    tpu.vector_store %arg10[%c0_5, %c0_6], %11 {strides = array<i32>} : memref<640x128xf32, #tpu.memory_space<vmem>>, vector<640x128xf32>,
    %c0_i32_7 = arith.constant 0 : i32
    %13 = arith.cmpi eq, %arg1, %c0_i32_7 : i32
    %14 = arith.extui %13 : i1 to i32
    %c0_i32_8 = arith.constant 0 : i32
    %15 = arith.cmpi ne, %14, %c0_i32_8 : i32
    scf.if %15 {
      %c0_9 = arith.constant 0 : index
      %c0_10 = arith.constant 0 : index
      %16 = vector.load %arg10[%c0_9, %c0_10] : memref<640x128xf32, #tpu.memory_space<vmem>>, vector<640x128xf32>
      %c0_11 = arith.constant 0 : index
      %c0_12 = arith.constant 0 : index
      %17 = vector.load %arg5[%c0_11, %c0_12] : memref<128x128xf32, #tpu.memory_space<vmem>>, vector<128x128xf32>
      %cst_13 = arith.constant dense<0.000000e+00> : vector<640x128xf32>
      %18 = tpu.matmul %16, %17, %cst_13 {dimension_numbers = #tpu.dot_dimension_numbers<[1], [0], [0], [1], [0, 0, 1, 1], [], []>} : vector<640x128xf32>, vector<128x128xf32>, vector<640x128xf32> -> vector<640x128xf32>
      %c0_14 = arith.constant 0 : index
      %c0_15 = arith.constant 0 : index
      %19 = vector.load %arg4[%c0_14, %c0_15] : memref<640x128xbf16, #tpu.memory_space<vmem>>, vector<640x128xbf16>
      %20 = arith.extf %19 : vector<640x128xbf16> to vector<640x128xf32>
      %c0_16 = arith.constant 0 : index
      %c0_17 = arith.constant 0 : index
      %21 = vector.load %arg6[%c0_16, %c0_17] : memref<128x128xf32, #tpu.memory_space<vmem>>, vector<128x128xf32>
      %cst_18 = arith.constant dense<0.000000e+00> : vector<640x128xf32>
      %22 = tpu.matmul %20, %21, %cst_18 {dimension_numbers = #tpu.dot_dimension_numbers<[1], [0], [0], [1], [0, 0, 1, 1], [], []>} : vector<640x128xf32>, vector<128x128xf32>, vector<640x128xf32> -> vector<640x128xf32>
      %23 = arith.addf %18, %22 : vector<640x128xf32>
      %c0_19 = arith.constant 0 : index
      %c0_20 = arith.constant 0 : index
      %24 = vector.load %arg7[%c0_19, %c0_20] : memref<640x128xf32, #tpu.memory_space<vmem>>, vector<640x128xf32>
      tpu.vector_store %arg7[%c0_19, %c0_20], %23 {strides = array<i32>} : memref<640x128xf32, #tpu.memory_space<vmem>>, vector<640x128xf32>,
      %cst_21 = arith.constant dense<0.000000e+00> : vector<128xf32>
      %25 = vector.multi_reduction <add>, %23, %cst_21 [0] : vector<640x128xf32> to vector<128xf32>
      %26 = vector.shape_cast %25 : vector<128xf32> to vector<1x1x128xf32>
      %27 = arith.mulf %23, %23 : vector<640x128xf32>
      %cst_22 = arith.constant dense<0.000000e+00> : vector<128xf32>
      %28 = vector.multi_reduction <add>, %27, %cst_22 [0] : vector<640x128xf32> to vector<128xf32>
      %29 = vector.shape_cast %28 : vector<128xf32> to vector<1x1x128xf32>
      %30 = vector.shape_cast %26 : vector<1x1x128xf32> to vector<1x1x128xf32>
      %31 = vector.broadcast %30 : vector<1x1x128xf32> to vector<1x8x128xf32>
      %c0_23 = arith.constant 0 : index
      %c0_24 = arith.constant 0 : index
      %c0_25 = arith.constant 0 : index
      %32 = vector.load %arg8[%c0_23, %c0_24, %c0_25] : memref<1x8x128xf32, #tpu.memory_space<vmem>>, vector<1x8x128xf32>
      tpu.vector_store %arg8[%c0_23, %c0_24, %c0_25], %31 {strides = array<i32>} : memref<1x8x128xf32, #tpu.memory_space<vmem>>, vector<1x8x128xf32>,
      %33 = vector.shape_cast %29 : vector<1x1x128xf32> to vector<1x1x128xf32>
      %34 = vector.broadcast %33 : vector<1x1x128xf32> to vector<1x8x128xf32>
      %c0_26 = arith.constant 0 : index
      %c0_27 = arith.constant 0 : index
      %c0_28 = arith.constant 0 : index
      %35 = vector.load %arg9[%c0_26, %c0_27, %c0_28] : memref<1x8x128xf32, #tpu.memory_space<vmem>>, vector<1x8x128xf32>
      tpu.vector_store %arg9[%c0_26, %c0_27, %c0_28], %34 {strides = array<i32>} : memref<1x8x128xf32, #tpu.memory_space<vmem>>, vector<1x8x128xf32>,
    } else {
    }
    return
  }
  func.func @transform_0(%arg0: i32, %arg1: i32) -> (i32, i32) {
    %c0_i32 = arith.constant 0 : i32
    return %arg0, %arg1 : i32, i32
  }
  func.func @transform_1(%arg0: i32, %arg1: i32) -> (i32, i32) {
    %c0_i32 = arith.constant 0 : i32
    %c0_i32_0 = arith.constant 0 : i32
    %c0_i32_1 = arith.constant 0 : i32
    return %c0_i32, %c0_i32_0 : i32, i32
  }
  func.func @transform_2(%arg0: i32, %arg1: i32) -> (i32, i32) {
    %c0_i32 = arith.constant 0 : i32
    %c0_i32_0 = arith.constant 0 : i32
    return %arg0, %c0_i32 : i32, i32
  }
  func.func @transform_3(%arg0: i32, %arg1: i32) -> (i32, i32) {
    %c0_i32 = arith.constant 0 : i32
    %c0_i32_0 = arith.constant 0 : i32
    %c0_i32_1 = arith.constant 0 : i32
    return %c0_i32, %c0_i32_0 : i32, i32
  }
  func.func @transform_4(%arg0: i32, %arg1: i32) -> (i32, i32) {
    %c0_i32 = arith.constant 0 : i32
    %c0_i32_0 = arith.constant 0 : i32
    %c0_i32_1 = arith.constant 0 : i32
    return %c0_i32, %c0_i32_0 : i32, i32
  }
  func.func @transform_5(%arg0: i32, %arg1: i32) -> (i32, i32) {
    %c0_i32 = arith.constant 0 : i32
    %c0_i32_0 = arith.constant 0 : i32
    return %arg0, %c0_i32 : i32, i32
  }
  func.func @transform_6(%arg0: i32, %arg1: i32) -> (i32, i32, i32) {
    %c0_i32 = arith.constant 0 : i32
    %c0_i32_0 = arith.constant 0 : i32
    %c0_i32_1 = arith.constant 0 : i32
    return %arg0, %c0_i32, %c0_i32_0 : i32, i32, i32
  }
  func.func @transform_7(%arg0: i32, %arg1: i32) -> (i32, i32, i32) {
    %c0_i32 = arith.constant 0 : i32
    %c0_i32_0 = arith.constant 0 : i32
    %c0_i32_1 = arith.constant 0 : i32
    return %arg0, %c0_i32, %c0_i32_0 : i32, i32, i32
  }
}

</mosaic_0001>

<llo_original>
// kernel: tpu_custom_call.1
$region0: #{tpu_custom_call.1}
  #allocation0 [shape = 'u32[]', space=smem, size = 0x4, offset = 0x4, fixed_abs, tag = 'smem constant byte address 0x4 - core index']
  #allocation1 [shape = 'u32[144,128]{1,0:T(1,128)}', space=vmem, size = 0x12000, scoped, tag = 'internal scratch']
  #allocation2 [shape = 'f32[640,128]{1,0:T(8,128)}', space=vmem, size = 0x50000, scoped, tag = 'scratch operand']
  %s0 = inlined_call_operand.hbm [shape: s8[1280,1280], index: 0, kind: input, shape index: {}]
  %s1 = inlined_call_operand.hbm [shape: bf16[1280,128], index: 1, kind: input, shape index: {}]
  %s2 = inlined_call_operand.hbm [shape: bf16[1280,128], index: 2, kind: input, shape index: {}]
  %s3 = inlined_call_operand.hbm [shape: f32[128,128], index: 3, kind: input, shape index: {}]
  %s4 = inlined_call_operand.hbm [shape: f32[128,128], index: 4, kind: input, shape index: {}]
  %s5 = inlined_call_operand.hbm [shape: f32[1280,128], index: 5, kind: output, shape index: {0}]
  %s6 = inlined_call_operand.hbm [shape: f32[2,8,128], index: 6, kind: output, shape index: {1}]
  %s7 = inlined_call_operand.hbm [shape: f32[2,8,128], index: 7, kind: output, shape index: {2}]
  %8 = xla_tuple %s5, %s6, %s7
  %s9 = sld [smem:[#allocation0]]
  $region97: #{tpu_custom_call.1} parent=0
    _
  %s11 = ssub.s32 1, %s9
  %s12 = scalar_select 0, %s11, %s9
  $region1: #{tpu_custom_call.1} parent=0
    #allocation3 [shape = 'u8[1638400]{0}', space=vmem, size = 0x190000, scoped, tag = 'input window, operand 0']
    #allocation4 [shape = 's32[2]{0}', space=sflag, size = 0x8, scoped, tag = 'scoped memory for tpu_custom_call.1']
    #allocation5 [shape = 's32[2]{0}', space=sflag, size = 0x8, scoped, tag = 'scoped memory for tpu_custom_call.1']
    #allocation6 [shape = 'u8[327680]{0}', space=vmem, size = 0x50000, scoped, tag = 'input window, operand 1, single buffered']
    #allocation7 [shape = 's32[1]{0}', space=sflag, size = 0x4, scoped, tag = 'scoped memory for tpu_custom_call.1']
    #allocation8 [shape = 'u8[327680]{0}', space=vmem, size = 0x50000, scoped, tag = 'input window, operand 2']
    #allocation9 [shape = 'u8[65536]{0}', space=vmem, size = 0x10000, scoped, tag = 'input window, operand 3, single buffered']
    #allocation10 [shape = 'u8[65536]{0}', space=vmem, size = 0x10000, scoped, tag = 'input window, operand 4, single buffered']
    #allocation11 [shape = 's32[1]{0}', space=sflag, size = 0x4, scoped, tag = 'scoped memory for tpu_custom_call.1']
    #allocation12 [shape = 'u8[655360]{0}', space=vmem, size = 0xa0000, scoped, tag = 'output window, operand 0']
    #allocation13 [shape = 'u8[8192]{0}', space=vmem, size = 0x2000, scoped, tag = 'output window, operand 1']
    #allocation14 [shape = 's32[2]{0}', space=sflag, size = 0x8, scoped, tag = 'scoped memory for tpu_custom_call.1']
    #allocation15 [shape = 'u8[8192]{0}', space=vmem, size = 0x2000, scoped, tag = 'output window, operand 2']
    %13 = vsyncpa [#allocation4], 0
    %s14 = scalar_lea.sflag [#allocation4], 1
    %15 = vsyncpa %s14, 0
    %16 = vsyncpa [#allocation7], 0
    %17 = vsyncpa [#allocation11], 0
    %18 = vsyncpa [#allocation5], 0
    %s19 = scalar_lea.sflag [#allocation5], 1
    %20 = vsyncpa %s19, 0
    %21 = vsyncpa [#allocation14], 0
    %s22 = scalar_lea.sflag [#allocation14], 1
    %23 = vsyncpa %s22, 0
    loop: start=0, step=1, limit=4
    $region2: #{tpu_custom_call.1} parent=1 // loop_pre_header
      _
    $region3: #{tpu_custom_call.1} parent=1 // loop_header
      %s25 = sphi 0, %s29
      %p26 = scmp.ge.s32.totalorder %s25, 4
      %s32 = sphi 0, %s44
      %s33 = sphi 0, %s40
      %s34 = sphi 0, %s32
      %s35 = sphi 0, %s33
      %s36 = sphi 0, %s34
      %s37 = sphi 0, %s35
      %s49 = sphi 0, %s51
      %s52 = sphi 0, %s49
      %s53 = sphi 0, %s52
      %s69 = sphi 0, %s53
      %s73 = sphi 0, %s73
      %s75 = sphi 0, %s73
      %s76 = sphi 0, %s75
      %s90 = sphi 0, %s76
      %s96 = sphi 0, %s98
      %s99 = sphi 0, %s96
      %s100 = sphi 0, %s99
      %s116 = sphi 0, %s100
      %s120 = sphi 0, %s120
      %s122 = sphi 0, %s120
      %s123 = sphi 0, %s122
      %s137 = sphi 0, %s123
      %s141 = sphi 0, %s141
      %s143 = sphi 0, %s141
      %s144 = sphi 0, %s143
      %s158 = sphi 0, %s144
      %s164 = sphi 0, %s166
      %s167 = sphi 0, %s164
      %s168 = sphi 0, %s167
      %s184 = sphi 0, %s168
      %s190 = sphi 0, %s192
      %s193 = sphi 0, %s190
      %s194 = sphi 0, %s193
      %s210 = sphi 0, %s194
      %s216 = sphi 0, %s218
      %s219 = sphi 0, %s216
      %s220 = sphi 0, %s219
      %s236 = sphi 0, %s220
    $region4: #{tpu_custom_call.1} parent=1 // loop_header_branch
      %28 = sbr.rel (%p26) target = $region8
    $region5: #{tpu_custom_call.1} parent=1 // loop_body
      %s30 = ssub.s32 %s25, 1
      %s31 = ssub.s32 %s25, 2
      %s38 = sadd.s32 1, %s33
      %p39 = scmp.ge.s32.totalorder %s38, 1
      %s40 = scalar_select %p39, 0, %s38
      %s41 = sadd.s32 1, %s32
      %s42 = scalar_select %p39, %s41, %s32
      %p43 = scmp.ge.s32.totalorder %s42, 2
      %s44 = scalar_select %p43, 0, %s42
      %s45 = ssub.s32 %s32, %s44
      %s46 = ssub.s32 %s33, %s40
      %s47 = sor.u32 %s45, %s46
      %p48 = scmp.eq.s32.totalorder %s47, 0
      %s50 = sadd.s32 %s49, 1
      %s51 = scalar_select %p48, %s49, %s50
      %p54 = pneg %p48
      %p55 = scmp.eq.s32.totalorder %s25, 1
      %p56 = por %p54, %p55
      %p57 = scmp.ne.s32.totalorder %s49, %s52
      %p58 = scmp.eq.s32.totalorder %s25, 0
      %p59 = por %p57, %p58
      %p60 = scmp.ne.s32.totalorder %s49, %s52
      %p61 = scmp.eq.s32.totalorder %s30, 1
      %p62 = por %p60, %p61
      %p63 = scmp.ne.s32.totalorder %s52, %s53
      %p64 = scmp.eq.s32.totalorder %s30, 0
      %p65 = por %p63, %p64
      %p66 = scmp.ne.s32.totalorder %s52, %s53
      %p67 = scmp.eq.s32.totalorder %s31, 1
      %p68 = por %p66, %p67
      %p70 = scmp.ne.s32.totalorder %s53, %s69
      %p71 = scmp.eq.s32.totalorder %s31, 0
      %p72 = por %p70, %p71
      %s74 = sadd.s32 %s73, 1
      %p77 = scmp.eq.s32.totalorder %s25, 1
      %p78 = scmp.ne.s32.totalorder %s73, %s75
      %p79 = scmp.eq.s32.totalorder %s25, 0
      %p80 = por %p78, %p79
      %p81 = scmp.ne.s32.totalorder %s73, %s75
      %p82 = scmp.eq.s32.totalorder %s30, 1
      %p83 = por %p81, %p82
      %p84 = scmp.ne.s32.totalorder %s75, %s76
      %p85 = scmp.eq.s32.totalorder %s30, 0
      %p86 = por %p84, %p85
      %p87 = scmp.ne.s32.totalorder %s75, %s76
      %p88 = scmp.eq.s32.totalorder %s31, 1
      %p89 = por %p87, %p88
      %p91 = scmp.ne.s32.totalorder %s76, %s90
      %p92 = scmp.eq.s32.totalorder %s31, 0
      %p93 = por %p91, %p92
      %s94 = ssub.s32 %s32, %s44
      %p95 = scmp.eq.s32.totalorder %s94, 0
      %s97 = sadd.s32 %s96, 1
      %s98 = scalar_select %p95, %s96, %s97
      %p101 = pneg %p95
      %p102 = scmp.eq.s32.totalorder %s25, 1
      %p103 = por %p101, %p102
      %p104 = scmp.ne.s32.totalorder %s96, %s99
      %p105 = scmp.eq.s32.totalorder %s25, 0
      %p106 = por %p104, %p105
      %p107 = scmp.ne.s32.totalorder %s96, %s99
      %p108 = scmp.eq.s32.totalorder %s30, 1
      %p109 = por %p107, %p108
      %p110 = scmp.ne.s32.totalorder %s99, %s100
      %p111 = scmp.eq.s32.totalorder %s30, 0
      %p112 = por %p110, %p111
      %p113 = scmp.ne.s32.totalorder %s99, %s100
      %p114 = scmp.eq.s32.totalorder %s31, 1
      %p115 = por %p113, %p114
      %p117 = scmp.ne.s32.totalorder %s100, %s116
      %p118 = scmp.eq.s32.totalorder %s31, 0
      %p119 = por %p117, %p118
      %s121 = sadd.s32 %s120, 1
      %p124 = scmp.eq.s32.totalorder %s25, 1
      %p125 = scmp.ne.s32.totalorder %s120, %s122
      %p126 = scmp.eq.s32.totalorder %s25, 0
      %p127 = por %p125, %p126
      %p128 = scmp.ne.s32.totalorder %s120, %s122
      %p129 = scmp.eq.s32.totalorder %s30, 1
      %p130 = por %p128, %p129
      %p131 = scmp.ne.s32.totalorder %s122, %s123
      %p132 = scmp.eq.s32.totalorder %s30, 0
      %p133 = por %p131, %p132
      %p134 = scmp.ne.s32.totalorder %s122, %s123
      %p135 = scmp.eq.s32.totalorder %s31, 1
      %p136 = por %p134, %p135
      %p138 = scmp.ne.s32.totalorder %s123, %s137
      %p139 = scmp.eq.s32.totalorder %s31, 0
      %p140 = por %p138, %p139
      %s142 = sadd.s32 %s141, 1
      %p145 = scmp.eq.s32.totalorder %s25, 1
      %p146 = scmp.ne.s32.totalorder %s141, %s143
      %p147 = scmp.eq.s32.totalorder %s25, 0
      %p148 = por %p146, %p147
      %p149 = scmp.ne.s32.totalorder %s141, %s143
      %p150 = scmp.eq.s32.totalorder %s30, 1
      %p151 = por %p149, %p150
      %p152 = scmp.ne.s32.totalorder %s143, %s144
      %p153 = scmp.eq.s32.totalorder %s30, 0
      %p154 = por %p152, %p153
      %p155 = scmp.ne.s32.totalorder %s143, %s144
      %p156 = scmp.eq.s32.totalorder %s31, 1
      %p157 = por %p155, %p156
      %p159 = scmp.ne.s32.totalorder %s144, %s158
      %p160 = scmp.eq.s32.totalorder %s31, 0
      %p161 = por %p159, %p160
      %s162 = ssub.s32 %s32, %s44
      %p163 = scmp.eq.s32.totalorder %s162, 0
      %s165 = sadd.s32 %s164, 1
      %s166 = scalar_select %p163, %s164, %s165
      %p169 = pneg %p163
      %p170 = scmp.eq.s32.totalorder %s25, 1
      %p171 = por %p169, %p170
      %p172 = scmp.ne.s32.totalorder %s164, %s167
      %p173 = scmp.eq.s32.totalorder %s25, 0
      %p174 = por %p172, %p173
      %p175 = scmp.ne.s32.totalorder %s164, %s167
      %p176 = scmp.eq.s32.totalorder %s30, 1
      %p177 = por %p175, %p176
      %p178 = scmp.ne.s32.totalorder %s167, %s168
      %p179 = scmp.eq.s32.totalorder %s30, 0
      %p180 = por %p178, %p179
      %p181 = scmp.ne.s32.totalorder %s167, %s168
      %p182 = scmp.eq.s32.totalorder %s31, 1
      %p183 = por %p181, %p182
      %p185 = scmp.ne.s32.totalorder %s168, %s184
      %p186 = scmp.eq.s32.totalorder %s31, 0
      %p187 = por %p185, %p186
      %s188 = ssub.s32 %s32, %s44
      %p189 = scmp.eq.s32.totalorder %s188, 0
      %s191 = sadd.s32 %s190, 1
      %s192 = scalar_select %p189, %s190, %s191
      %p195 = pneg %p189
      %p196 = scmp.eq.s32.totalorder %s25, 1
      %p197 = por %p195, %p196
      %p198 = scmp.ne.s32.totalorder %s190, %s193
      %p199 = scmp.eq.s32.totalorder %s25, 0
      %p200 = por %p198, %p199
      %p201 = scmp.ne.s32.totalorder %s190, %s193
      %p202 = scmp.eq.s32.totalorder %s30, 1
      %p203 = por %p201, %p202
      %p204 = scmp.ne.s32.totalorder %s193, %s194
      %p205 = scmp.eq.s32.totalorder %s30, 0
      %p206 = por %p204, %p205
      %p207 = scmp.ne.s32.totalorder %s193, %s194
      %p208 = scmp.eq.s32.totalorder %s31, 1
      %p209 = por %p207, %p208
      %p211 = scmp.ne.s32.totalorder %s194, %s210
      %p212 = scmp.eq.s32.totalorder %s31, 0
      %p213 = por %p211, %p212
      %s214 = ssub.s32 %s32, %s44
      %p215 = scmp.eq.s32.totalorder %s214, 0
      %s217 = sadd.s32 %s216, 1
      %s218 = scalar_select %p215, %s216, %s217
      %p221 = pneg %p215
      %p222 = scmp.eq.s32.totalorder %s25, 1
      %p223 = por %p221, %p222
      %p224 = scmp.ne.s32.totalorder %s216, %s219
      %p225 = scmp.eq.s32.totalorder %s25, 0
      %p226 = por %p224, %p225
      %p227 = scmp.ne.s32.totalorder %s216, %s219
      %p228 = scmp.eq.s32.totalorder %s30, 1
      %p229 = por %p227, %p228
      %p230 = scmp.ne.s32.totalorder %s219, %s220
      %p231 = scmp.eq.s32.totalorder %s30, 0
      %p232 = por %p230, %p231
      %p233 = scmp.ne.s32.totalorder %s219, %s220
      %p234 = scmp.eq.s32.totalorder %s31, 1
      %p235 = por %p233, %p234
      %p237 = scmp.ne.s32.totalorder %s220, %s236
      %p238 = scmp.eq.s32.totalorder %s31, 0
      %p239 = por %p237, %p238
      %p240 = scmp.le.s32.totalorder 1, %s25
      %p241 = scmp.lt.s32.totalorder %s25, 3
      %p242 = pnand %p240, %p241
      %p243 = pneg %p242
      // Predicated region
      $region9: #{tpu_custom_call.1} parent=5 // pred_check
        _
      $region10: #{tpu_custom_call.1} parent=5 // pred_check_branch
        %245 = sbr.rel (%p242) target = $region12
      $region11: #{tpu_custom_call.1} parent=5 // pred_region
        %s246 = ssub.s32 %s25, 1
        // Predicated region
        $region13: #{tpu_custom_call.1} parent=11 // pred_check
          %p247 = pneg %p86
        $region14: #{tpu_custom_call.1} parent=11 // pred_check_branch
          %249 = sbr.rel (%p247) target = $region16
        $region15: #{tpu_custom_call.1} parent=11 // pred_region
          %s251 = ssub.s32 10240, 10240
          %252 = vsyncadd [#allocation7], %s251
          %s253 = sshll.u32 [#allocation6], 4
          %s254 = int_to_ptr.vmem [resolvable:$true] %s253
          %259 = dma.hbm_to_vmem [thread:$0]  %s1, 10240, %s254, [#allocation7], 64, 64, 4
        $region16: #{tpu_custom_call.1} parent=11 // pred_fallthru
          _
        // Predicated region
        $region17: #{tpu_custom_call.1} parent=11 // pred_check
          %p260 = pneg %p133
        $region18: #{tpu_custom_call.1} parent=11 // pred_check_branch
          %262 = sbr.rel (%p260) target = $region20
        $region19: #{tpu_custom_call.1} parent=11 // pred_region
          %s264 = ssub.s32 2048, 2048
          %265 = vsyncadd [#allocation7], %s264
          %s266 = sshll.u32 [#allocation9], 4
          %s267 = int_to_ptr.vmem [resolvable:$true] %s266
          %272 = dma.hbm_to_vmem [thread:$0]  %s3, 2048, %s267, [#allocation7], 128, 128, 8
        $region20: #{tpu_custom_call.1} parent=11 // pred_fallthru
          _
        // Predicated region
        $region21: #{tpu_custom_call.1} parent=11 // pred_check
          %p273 = pneg %p154
        $region22: #{tpu_custom_call.1} parent=11 // pred_check_branch
          %275 = sbr.rel (%p273) target = $region24
        $region23: #{tpu_custom_call.1} parent=11 // pred_region
          %s277 = ssub.s32 2048, 2048
          %278 = vsyncadd [#allocation11], %s277
          %s279 = sshll.u32 [#allocation10], 4
          %s280 = int_to_ptr.vmem [resolvable:$true] %s279
          %285 = dma.hbm_to_vmem [thread:$0]  %s4, 2048, %s280, [#allocation11], 128, 128, 8
        $region24: #{tpu_custom_call.1} parent=11 // pred_fallthru
          _
      $region12: #{tpu_custom_call.1} parent=5 // pred_fallthru
        _
      %p286 = scmp.lt.s32.totalorder %s25, 2
      // Predicated region
      $region25: #{tpu_custom_call.1} parent=5 // pred_check
        %p287 = pneg %p286
      $region26: #{tpu_custom_call.1} parent=5 // pred_check_branch
        %289 = sbr.rel (%p287) target = $region28
      $region27: #{tpu_custom_call.1} parent=5 // pred_region
        // Predicated region
        $region29: #{tpu_custom_call.1} parent=27 // pred_check
          %p290 = pneg %p59
        $region30: #{tpu_custom_call.1} parent=27 // pred_check_branch
          %292 = sbr.rel (%p290) target = $region32
        $region31: #{tpu_custom_call.1} parent=27 // pred_region
          %s293 = sand.u32 %s25, 1
          %s294 = scalar_lea.sflag [#allocation4], %s293
          %s295 = sand.u32 %s49, 1
          %s296 = smul.addr %s295, 1600
          %s297 = scalar_lea.vmem [#allocation3], %s296
          %s298 = smul.u32 20, %s32
          %s299 = smul.u32 10, %s33
          %s301 = ssub.s32 25600, 25600
          %302 = vsyncadd %s294, %s301
          %s303 = smul.addr %s298, 10
          %s304 = sadd.s32 %s299, %s303
          %s305 = smul.addr %s304, 128
          %s306 = scalar_lea.hbm %s0, %s305
          %s307 = sshll.u32 %s297, 4
          %s308 = int_to_ptr.vmem [resolvable:$true] %s307
          %313 = dma.hbm_to_vmem [thread:$0]  %s306, 25600, %s308, %s294, 1280, 1280, 80
        $region32: #{tpu_custom_call.1} parent=27 // pred_fallthru
          _
        // Predicated region
        $region33: #{tpu_custom_call.1} parent=27 // pred_check
          %p314 = pneg %p106
        $region34: #{tpu_custom_call.1} parent=27 // pred_check_branch
          %316 = sbr.rel (%p314) target = $region36
        $region35: #{tpu_custom_call.1} parent=27 // pred_region
          %s317 = sand.u32 %s25, 1
          %s318 = scalar_lea.sflag [#allocation4], %s317
          %s319 = sand.u32 %s96, 1
          %s320 = smul.addr %s319, 320
          %s321 = scalar_lea.vmem [#allocation8], %s320
          %s322 = smul.u32 80, %s32
          %s324 = ssub.s32 5120, 5120
          %325 = vsyncadd %s318, %s324
          %s326 = smul.addr %s322, 64
          %s327 = scalar_lea.hbm %s2, %s326
          %s328 = sshll.u32 %s321, 4
          %s329 = int_to_ptr.vmem [resolvable:$true] %s328
          %334 = dma.hbm_to_vmem [thread:$0]  %s327, 5120, %s329, %s318, 64, 64, 4
        $region36: #{tpu_custom_call.1} parent=27 // pred_fallthru
          _
      $region28: #{tpu_custom_call.1} parent=5 // pred_fallthru
        _
      %p335 = scmp.le.s32.totalorder 1, %s25
      %p336 = scmp.lt.s32.totalorder %s25, 3
      %p337 = pnand %p335, %p336
      %p338 = pneg %p337
      // Predicated region
      $region37: #{tpu_custom_call.1} parent=5 // pred_check
        _
      $region38: #{tpu_custom_call.1} parent=5 // pred_check_branch
        %340 = sbr.rel (%p337) target = $region40
      $region39: #{tpu_custom_call.1} parent=5 // pred_region
        %s341 = ssub.s32 %s25, 1
        %s342 = sand.u32 %s30, 1
        %s343 = scalar_lea.sflag [#allocation4], %s342
        %s344 = sand.u32 %s52, 1
        %s345 = smul.addr %s344, 1600
        %s346 = scalar_lea.vmem [#allocation3], %s345
        // Predicated region
        $region41: #{tpu_custom_call.1} parent=39 // pred_check
          %p347 = pneg %p65
        $region42: #{tpu_custom_call.1} parent=39 // pred_check_branch
          %349 = sbr.rel (%p347) target = $region44
        $region43: #{tpu_custom_call.1} parent=39 // pred_region
          %350 = dma.done %s343, 25600
        $region44: #{tpu_custom_call.1} parent=39 // pred_fallthru
          _
        // Predicated region
        $region45: #{tpu_custom_call.1} parent=39 // pred_check
          %p351 = pneg %p86
        $region46: #{tpu_custom_call.1} parent=39 // pred_check_branch
          %353 = sbr.rel (%p351) target = $region48
        $region47: #{tpu_custom_call.1} parent=39 // pred_region
          %354 = dma.done [#allocation7], 10240
        $region48: #{tpu_custom_call.1} parent=39 // pred_fallthru
          _
        %s355 = sand.u32 %s30, 1
        %s356 = scalar_lea.sflag [#allocation4], %s355
        %s357 = sand.u32 %s99, 1
        %s358 = smul.addr %s357, 320
        %s359 = scalar_lea.vmem [#allocation8], %s358
        // Predicated region
        $region49: #{tpu_custom_call.1} parent=39 // pred_check
          %p360 = pneg %p112
        $region50: #{tpu_custom_call.1} parent=39 // pred_check_branch
          %362 = sbr.rel (%p360) target = $region52
        $region51: #{tpu_custom_call.1} parent=39 // pred_region
          %363 = dma.done %s356, 5120
        $region52: #{tpu_custom_call.1} parent=39 // pred_fallthru
          _
        // Predicated region
        $region53: #{tpu_custom_call.1} parent=39 // pred_check
          %p364 = pneg %p133
        $region54: #{tpu_custom_call.1} parent=39 // pred_check_branch
          %366 = sbr.rel (%p364) target = $region56
        $region55: #{tpu_custom_call.1} parent=39 // pred_region
          %367 = dma.done [#allocation7], 2048
        $region56: #{tpu_custom_call.1} parent=39 // pred_fallthru
          _
        // Predicated region
        $region57: #{tpu_custom_call.1} parent=39 // pred_check
          %p368 = pneg %p154
        $region58: #{tpu_custom_call.1} parent=39 // pred_check_branch
          %370 = sbr.rel (%p368) target = $region60
        $region59: #{tpu_custom_call.1} parent=39 // pred_region
          %371 = dma.done [#allocation11], 2048
        $region60: #{tpu_custom_call.1} parent=39 // pred_fallthru
          _
        %s372 = sand.u32 %s30, 1
        %s373 = scalar_lea.sflag [#allocation4], %s372
        %s374 = sand.u32 %s52, 1
        %s375 = smul.addr %s374, 1600
        %s376 = scalar_lea.vmem [#allocation3], %s375
        %p377 = pneg %p65
        %p378 = pneg %p62
        %p379 = pneg %p86
        %p380 = pneg %p83
        %s381 = sand.u32 %s30, 1
        %s382 = scalar_lea.sflag [#allocation4], %s381
        %s383 = sand.u32 %s99, 1
        %s384 = smul.addr %s383, 320
        %s385 = scalar_lea.vmem [#allocation8], %s384
        %p386 = pneg %p112
        %p387 = pneg %p109
        %p388 = pneg %p133
        %p389 = pneg %p130
        %p390 = pneg %p154
        %p391 = pneg %p151
        %p392 = pneg %p180
        %p393 = pneg %p177
        %s394 = sand.u32 %s167, 1
        %s395 = scalar_lea.sflag [#allocation5], %s394
        %s396 = sand.u32 %s167, 1
        %s397 = smul.addr %s396, 640
        %s398 = scalar_lea.vmem [#allocation12], %s397
        %p399 = pneg %p206
        %p400 = pneg %p203
        %s401 = sand.u32 %s30, 1
        %s402 = scalar_lea.sflag [#allocation14], %s401
        %s403 = sand.u32 %s193, 1
        %s404 = smul.addr %s403, 8
        %s405 = scalar_lea.vmem [#allocation13], %s404
        %p406 = pneg %p232
        %p407 = pneg %p229
        %s408 = sand.u32 %s30, 1
        %s409 = scalar_lea.sflag [#allocation14], %s408
        %s410 = sand.u32 %s219, 1
        %s411 = smul.addr %s410, 8
        %s412 = scalar_lea.vmem [#allocation15], %s411
        %s413 = smul.u32 20, %s34
        %s414 = smul.u32 10, %s35
        %s415 = smul.u32 80, %s34
        %s416 = smul.u32 80, %s34
        %p418 = scmp.eq.s32.totalorder %s35, 0
        // Predicated region
        $region61: #{tpu_custom_call.1} parent=39 // pred_check
          %p419 = pneg %p418
        $region62: #{tpu_custom_call.1} parent=39 // pred_check_branch
          %421 = sbr.rel (%p419) target = $region64
        $region63: #{tpu_custom_call.1} parent=39 // pred_region
          %422 = vst [vmem:[#allocation2] sm:$0xff] 0.0
          %423 = vst [vmem:[#allocation2 + $0x8] sm:$0xff] 0.0
          %424 = vst [vmem:[#allocation2 + $0x10] sm:$0xff] 0.0
          %425 = vst [vmem:[#allocation2 + $0x18] sm:$0xff] 0.0
          %426 = vst [vmem:[#allocation2 + $0x20] sm:$0xff] 0.0
          %427 = vst [vmem:[#allocation2 + $0x28] sm:$0xff] 0.0
          %428 = vst [vmem:[#allocation2 + $0x30] sm:$0xff] 0.0
          %429 = vst [vmem:[#allocation2 + $0x38] sm:$0xff] 0.0
          %430 = vst [vmem:[#allocation2 + $0x40] sm:$0xff] 0.0
          %431 = vst [vmem:[#allocation2 + $0x48] sm:$0xff] 0.0
          %432 = vst [vmem:[#allocation2 + $0x50] sm:$0xff] 0.0
          %433 = vst [vmem:[#allocation2 + $0x58] sm:$0xff] 0.0
          %434 = vst [vmem:[#allocation2 + $0x60] sm:$0xff] 0.0
          %435 = vst [vmem:[#allocation2 + $0x68] sm:$0xff] 0.0
          %436 = vst [vmem:[#allocation2 + $0x70] sm:$0xff] 0.0
          %437 = vst [vmem:[#allocation2 + $0x78] sm:$0xff] 0.0
          %438 = vst [vmem:[#allocation2 + $0x80] sm:$0xff] 0.0
          %439 = vst [vmem:[#allocation2 + $0x88] sm:$0xff] 0.0
          %440 = vst [vmem:[#allocation2 + $0x90] sm:$0xff] 0.0
          %441 = vst [vmem:[#allocation2 + $0x98] sm:$0xff] 0.0
          %442 = vst [vmem:[#allocation2 + $0xa0] sm:$0xff] 0.0
          %443 = vst [vmem:[#allocation2 + $0xa8] sm:$0xff] 0.0
          %444 = vst [vmem:[#allocation2 + $0xb0] sm:$0xff] 0.0
          %445 = vst [vmem:[#allocation2 + $0xb8] sm:$0xff] 0.0
          %446 = vst [vmem:[#allocation2 + $0xc0] sm:$0xff] 0.0
          %447 = vst [vmem:[#allocation2 + $0xc8] sm:$0xff] 0.0
          %448 = vst [vmem:[#allocation2 + $0xd0] sm:$0xff] 0.0
          %449 = vst [vmem:[#allocation2 + $0xd8] sm:$0xff] 0.0
          %450 = vst [vmem:[#allocation2 + $0xe0] sm:$0xff] 0.0
          %451 = vst [vmem:[#allocation2 + $0xe8] sm:$0xff] 0.0
          %452 = vst [vmem:[#allocation2 + $0xf0] sm:$0xff] 0.0
          %453 = vst [vmem:[#allocation2 + $0xf8] sm:$0xff] 0.0
          %454 = vst [vmem:[#allocation2 + $0x100] sm:$0xff] 0.0
          %455 = vst [vmem:[#allocation2 + $0x108] sm:$0xff] 0.0
          %456 = vst [vmem:[#allocation2 + $0x110] sm:$0xff] 0.0
          %457 = vst [vmem:[#allocation2 + $0x118] sm:$0xff] 0.0
          %458 = vst [vmem:[#allocation2 + $0x120] sm:$0xff] 0.0
          %459 = vst [vmem:[#allocation2 + $0x128] sm:$0xff] 0.0
          %460 = vst [vmem:[#allocation2 + $0x130] sm:$0xff] 0.0
          %461 = vst [vmem:[#allocation2 + $0x138] sm:$0xff] 0.0
          %462 = vst [vmem:[#allocation2 + $0x140] sm:$0xff] 0.0
          %463 = vst [vmem:[#allocation2 + $0x148] sm:$0xff] 0.0
          %464 = vst [vmem:[#allocation2 + $0x150] sm:$0xff] 0.0
          %465 = vst [vmem:[#allocation2 + $0x158] sm:$0xff] 0.0
          %466 = vst [vmem:[#allocation2 + $0x160] sm:$0xff] 0.0
          %467 = vst [vmem:[#allocation2 + $0x168] sm:$0xff] 0.0
          %468 = vst [vmem:[#allocation2 + $0x170] sm:$0xff] 0.0
          %469 = vst [vmem:[#allocation2 + $0x178] sm:$0xff] 0.0
          %470 = vst [vmem:[#allocation2 + $0x180] sm:$0xff] 0.0
          %471 = vst [vmem:[#allocation2 + $0x188] sm:$0xff] 0.0
          %472 = vst [vmem:[#allocation2 + $0x190] sm:$0xff] 0.0
          %473 = vst [vmem:[#allocation2 + $0x198] sm:$0xff] 0.0
          %474 = vst [vmem:[#allocation2 + $0x1a0] sm:$0xff] 0.0
          %475 = vst [vmem:[#allocation2 + $0x1a8] sm:$0xff] 0.0
          %476 = vst [vmem:[#allocation2 + $0x1b0] sm:$0xff] 0.0
          %477 = vst [vmem:[#allocation2 + $0x1b8] sm:$0xff] 0.0
          %478 = vst [vmem:[#allocation2 + $0x1c0] sm:$0xff] 0.0
          %479 = vst [vmem:[#allocation2 + $0x1c8] sm:$0xff] 0.0
          %480 = vst [vmem:[#allocation2 + $0x1d0] sm:$0xff] 0.0
          %481 = vst [vmem:[#allocation2 + $0x1d8] sm:$0xff] 0.0
          %482 = vst [vmem:[#allocation2 + $0x1e0] sm:$0xff] 0.0
          %483 = vst [vmem:[#allocation2 + $0x1e8] sm:$0xff] 0.0
          %484 = vst [vmem:[#allocation2 + $0x1f0] sm:$0xff] 0.0
          %485 = vst [vmem:[#allocation2 + $0x1f8] sm:$0xff] 0.0
          %486 = vst [vmem:[#allocation2 + $0x200] sm:$0xff] 0.0
          %487 = vst [vmem:[#allocation2 + $0x208] sm:$0xff] 0.0
          %488 = vst [vmem:[#allocation2 + $0x210] sm:$0xff] 0.0
          %489 = vst [vmem:[#allocation2 + $0x218] sm:$0xff] 0.0
          %490 = vst [vmem:[#allocation2 + $0x220] sm:$0xff] 0.0
          %491 = vst [vmem:[#allocation2 + $0x228] sm:$0xff] 0.0
          %492 = vst [vmem:[#allocation2 + $0x230] sm:$0xff] 0.0
          %493 = vst [vmem:[#allocation2 + $0x238] sm:$0xff] 0.0
          %494 = vst [vmem:[#allocation2 + $0x240] sm:$0xff] 0.0
          %495 = vst [vmem:[#allocation2 + $0x248] sm:$0xff] 0.0
          %496 = vst [vmem:[#allocation2 + $0x250] sm:$0xff] 0.0
          %497 = vst [vmem:[#allocation2 + $0x258] sm:$0xff] 0.0
          %498 = vst [vmem:[#allocation2 + $0x260] sm:$0xff] 0.0
          %499 = vst [vmem:[#allocation2 + $0x268] sm:$0xff] 0.0
          %500 = vst [vmem:[#allocation2 + $0x270] sm:$0xff] 0.0
          %501 = vst [vmem:[#allocation2 + $0x278] sm:$0xff] 0.0
        $region64: #{tpu_custom_call.1} parent=39 // pred_fallthru
          _
        %v502 = vld [vmem:[%s346] sm:$0xff]
        %v503 = vld [vmem:[%s346 + $0x8] sm:$0xff]
        %v504 = vld [vmem:[%s346 + $0x10] sm:$0xff]
        %v505 = vld [vmem:[%s346 + $0x18] sm:$0xff]
        %v506 = vld [vmem:[%s346 + $0x20] sm:$0xff]
        %v507 = vld [vmem:[%s346 + $0x28] sm:$0xff]
        %v508 = vld [vmem:[%s346 + $0x30] sm:$0xff]
        %v509 = vld [vmem:[%s346 + $0x38] sm:$0xff]
        %v510 = vld [vmem:[%s346 + $0x40] sm:$0xff]
        %v511 = vld [vmem:[%s346 + $0x48] sm:$0xff]
        %v512 = vld [vmem:[%s346 + $0x50] sm:$0xff]
        %v513 = vld [vmem:[%s346 + $0x58] sm:$0xff]
        %v514 = vld [vmem:[%s346 + $0x60] sm:$0xff]
        %v515 = vld [vmem:[%s346 + $0x68] sm:$0xff]
        %v516 = vld [vmem:[%s346 + $0x70] sm:$0xff]
        %v517 = vld [vmem:[%s346 + $0x78] sm:$0xff]
        %v518 = vld [vmem:[%s346 + $0x80] sm:$0xff]
        %v519 = vld [vmem:[%s346 + $0x88] sm:$0xff]
        %v520 = vld [vmem:[%s346 + $0x90] sm:$0xff]
        %v521 = vld [vmem:[%s346 + $0x98] sm:$0xff]
        %v522 = vld [vmem:[%s346 + $0xa0] sm:$0xff]
        %v523 = vld [vmem:[%s346 + $0xa8] sm:$0xff]
        %v524 = vld [vmem:[%s346 + $0xb0] sm:$0xff]
        %v525 = vld [vmem:[%s346 + $0xb8] sm:$0xff]
        %v526 = vld [vmem:[%s346 + $0xc0] sm:$0xff]
        %v527 = vld [vmem:[%s346 + $0xc8] sm:$0xff]
        %v528 = vld [vmem:[%s346 + $0xd0] sm:$0xff]
        %v529 = vld [vmem:[%s346 + $0xd8] sm:$0xff]
        %v530 = vld [vmem:[%s346 + $0xe0] sm:$0xff]
        %v531 = vld [vmem:[%s346 + $0xe8] sm:$0xff]
        %v532 = vld [vmem:[%s346 + $0xf0] sm:$0xff]
        %v533 = vld [vmem:[%s346 + $0xf8] sm:$0xff]
        %v534 = vld [vmem:[%s346 + $0x100] sm:$0xff]
        %v535 = vld [vmem:[%s346 + $0x108] sm:$0xff]
        %v536 = vld [vmem:[%s346 + $0x110] sm:$0xff]
        %v537 = vld [vmem:[%s346 + $0x118] sm:$0xff]
        %v538 = vld [vmem:[%s346 + $0x120] sm:$0xff]
        %v539 = vld [vmem:[%s346 + $0x128] sm:$0xff]
        %v540 = vld [vmem:[%s346 + $0x130] sm:$0xff]
        %v541 = vld [vmem:[%s346 + $0x138] sm:$0xff]
        %v542 = vld [vmem:[%s346 + $0x140] sm:$0xff]
        %v543 = vld [vmem:[%s346 + $0x148] sm:$0xff]
        %v544 = vld [vmem:[%s346 + $0x150] sm:$0xff]
        %v545 = vld [vmem:[%s346 + $0x158] sm:$0xff]
        %v546 = vld [vmem:[%s346 + $0x160] sm:$0xff]
        %v547 = vld [vmem:[%s346 + $0x168] sm:$0xff]
        %v548 = vld [vmem:[%s346 + $0x170] sm:$0xff]
        %v549 = vld [vmem:[%s346 + $0x178] sm:$0xff]
        %v550 = vld [vmem:[%s346 + $0x180] sm:$0xff]
        %v551 = vld [vmem:[%s346 + $0x188] sm:$0xff]
        %v552 = vld [vmem:[%s346 + $0x190] sm:$0xff]
        %v553 = vld [vmem:[%s346 + $0x198] sm:$0xff]
        %v554 = vld [vmem:[%s346 + $0x1a0] sm:$0xff]
        %v555 = vld [vmem:[%s346 + $0x1a8] sm:$0xff]
        %v556 = vld [vmem:[%s346 + $0x1b0] sm:$0xff]
        %v557 = vld [vmem:[%s346 + $0x1b8] sm:$0xff]
        %v558 = vld [vmem:[%s346 + $0x1c0] sm:$0xff]
        %v559 = vld [vmem:[%s346 + $0x1c8] sm:$0xff]
        %v560 = vld [vmem:[%s346 + $0x1d0] sm:$0xff]
        %v561 = vld [vmem:[%s346 + $0x1d8] sm:$0xff]
        %v562 = vld [vmem:[%s346 + $0x1e0] sm:$0xff]
        %v563 = vld [vmem:[%s346 + $0x1e8] sm:$0xff]
        %v564 = vld [vmem:[%s346 + $0x1f0] sm:$0xff]
        %v565 = vld [vmem:[%s346 + $0x1f8] sm:$0xff]
        %v566 = vld [vmem:[%s346 + $0x200] sm:$0xff]
        %v567 = vld [vmem:[%s346 + $0x208] sm:$0xff]
        %v568 = vld [vmem:[%s346 + $0x210] sm:$0xff]
        %v569 = vld [vmem:[%s346 + $0x218] sm:$0xff]
        %v570 = vld [vmem:[%s346 + $0x220] sm:$0xff]
        %v571 = vld [vmem:[%s346 + $0x228] sm:$0xff]
        %v572 = vld [vmem:[%s346 + $0x230] sm:$0xff]
        %v573 = vld [vmem:[%s346 + $0x238] sm:$0xff]
        %v574 = vld [vmem:[%s346 + $0x240] sm:$0xff]
        %v575 = vld [vmem:[%s346 + $0x248] sm:$0xff]
        %v576 = vld [vmem:[%s346 + $0x250] sm:$0xff]
        %v577 = vld [vmem:[%s346 + $0x258] sm:$0xff]
        %v578 = vld [vmem:[%s346 + $0x260] sm:$0xff]
        %v579 = vld [vmem:[%s346 + $0x268] sm:$0xff]
        %v580 = vld [vmem:[%s346 + $0x270] sm:$0xff]
        %v581 = vld [vmem:[%s346 + $0x278] sm:$0xff]
        %v582 = vld [vmem:[%s346 + $0x280] sm:$0xff]
        %v583 = vld [vmem:[%s346 + $0x288] sm:$0xff]
        %v584 = vld [vmem:[%s346 + $0x290] sm:$0xff]
        %v585 = vld [vmem:[%s346 + $0x298] sm:$0xff]
        %v586 = vld [vmem:[%s346 + $0x2a0] sm:$0xff]
        %v587 = vld [vmem:[%s346 + $0x2a8] sm:$0xff]
        %v588 = vld [vmem:[%s346 + $0x2b0] sm:$0xff]
        %v589 = vld [vmem:[%s346 + $0x2b8] sm:$0xff]
        %v590 = vld [vmem:[%s346 + $0x2c0] sm:$0xff]
        %v591 = vld [vmem:[%s346 + $0x2c8] sm:$0xff]
        %v592 = vld [vmem:[%s346 + $0x2d0] sm:$0xff]
        %v593 = vld [vmem:[%s346 + $0x2d8] sm:$0xff]
        %v594 = vld [vmem:[%s346 + $0x2e0] sm:$0xff]
        %v595 = vld [vmem:[%s346 + $0x2e8] sm:$0xff]
        %v596 = vld [vmem:[%s346 + $0x2f0] sm:$0xff]
        %v597 = vld [vmem:[%s346 + $0x2f8] sm:$0xff]
        %v598 = vld [vmem:[%s346 + $0x300] sm:$0xff]
        %v599 = vld [vmem:[%s346 + $0x308] sm:$0xff]
        %v600 = vld [vmem:[%s346 + $0x310] sm:$0xff]
        %v601 = vld [vmem:[%s346 + $0x318] sm:$0xff]
        %v602 = vld [vmem:[%s346 + $0x320] sm:$0xff]
        %v603 = vld [vmem:[%s346 + $0x328] sm:$0xff]
        %v604 = vld [vmem:[%s346 + $0x330] sm:$0xff]
        %v605 = vld [vmem:[%s346 + $0x338] sm:$0xff]
        %v606 = vld [vmem:[%s346 + $0x340] sm:$0xff]
        %v607 = vld [vmem:[%s346 + $0x348] sm:$0xff]
        %v608 = vld [vmem:[%s346 + $0x350] sm:$0xff]
        %v609 = vld [vmem:[%s346 + $0x358] sm:$0xff]
        %v610 = vld [vmem:[%s346 + $0x360] sm:$0xff]
        %v611 = vld [vmem:[%s346 + $0x368] sm:$0xff]
        %v612 = vld [vmem:[%s346 + $0x370] sm:$0xff]
        %v613 = vld [vmem:[%s346 + $0x378] sm:$0xff]
        %v614 = vld [vmem:[%s346 + $0x380] sm:$0xff]
        %v615 = vld [vmem:[%s346 + $0x388] sm:$0xff]
        %v616 = vld [vmem:[%s346 + $0x390] sm:$0xff]
        %v617 = vld [vmem:[%s346 + $0x398] sm:$0xff]
        %v618 = vld [vmem:[%s346 + $0x3a0] sm:$0xff]
        %v619 = vld [vmem:[%s346 + $0x3a8] sm:$0xff]
        %v620 = vld [vmem:[%s346 + $0x3b0] sm:$0xff]
        %v621 = vld [vmem:[%s346 + $0x3b8] sm:$0xff]
        %v622 = vld [vmem:[%s346 + $0x3c0] sm:$0xff]
        %v623 = vld [vmem:[%s346 + $0x3c8] sm:$0xff]
        %v624 = vld [vmem:[%s346 + $0x3d0] sm:$0xff]
        %v625 = vld [vmem:[%s346 + $0x3d8] sm:$0xff]
        %v626 = vld [vmem:[%s346 + $0x3e0] sm:$0xff]
        %v627 = vld [vmem:[%s346 + $0x3e8] sm:$0xff]
        %v628 = vld [vmem:[%s346 + $0x3f0] sm:$0xff]
        %v629 = vld [vmem:[%s346 + $0x3f8] sm:$0xff]
        %v630 = vld [vmem:[%s346 + $0x400] sm:$0xff]
        %v631 = vld [vmem:[%s346 + $0x408] sm:$0xff]
        %v632 = vld [vmem:[%s346 + $0x410] sm:$0xff]
        %v633 = vld [vmem:[%s346 + $0x418] sm:$0xff]
        %v634 = vld [vmem:[%s346 + $0x420] sm:$0xff]
        %v635 = vld [vmem:[%s346 + $0x428] sm:$0xff]
        %v636 = vld [vmem:[%s346 + $0x430] sm:$0xff]
        %v637 = vld [vmem:[%s346 + $0x438] sm:$0xff]
        %v638 = vld [vmem:[%s346 + $0x440] sm:$0xff]
        %v639 = vld [vmem:[%s346 + $0x448] sm:$0xff]
        %v640 = vld [vmem:[%s346 + $0x450] sm:$0xff]
        %v641 = vld [vmem:[%s346 + $0x458] sm:$0xff]
        %v642 = vld [vmem:[%s346 + $0x460] sm:$0xff]
        %v643 = vld [vmem:[%s346 + $0x468] sm:$0xff]
        %v644 = vld [vmem:[%s346 + $0x470] sm:$0xff]
        %v645 = vld [vmem:[%s346 + $0x478] sm:$0xff]
        %v646 = vld [vmem:[%s346 + $0x480] sm:$0xff]
        %v647 = vld [vmem:[%s346 + $0x488] sm:$0xff]
        %v648 = vld [vmem:[%s346 + $0x490] sm:$0xff]
        %v649 = vld [vmem:[%s346 + $0x498] sm:$0xff]
        %v650 = vld [vmem:[%s346 + $0x4a0] sm:$0xff]
        %v651 = vld [vmem:[%s346 + $0x4a8] sm:$0xff]
        %v652 = vld [vmem:[%s346 + $0x4b0] sm:$0xff]
        %v653 = vld [vmem:[%s346 + $0x4b8] sm:$0xff]
        %v654 = vld [vmem:[%s346 + $0x4c0] sm:$0xff]
        %v655 = vld [vmem:[%s346 + $0x4c8] sm:$0xff]
        %v656 = vld [vmem:[%s346 + $0x4d0] sm:$0xff]
        %v657 = vld [vmem:[%s346 + $0x4d8] sm:$0xff]
        %v658 = vld [vmem:[%s346 + $0x4e0] sm:$0xff]
        %v659 = vld [vmem:[%s346 + $0x4e8] sm:$0xff]
        %v660 = vld [vmem:[%s346 + $0x4f0] sm:$0xff]
        %v661 = vld [vmem:[%s346 + $0x4f8] sm:$0xff]
        %v662 = vld [vmem:[%s346 + $0x500] sm:$0xff]
        %v663 = vld [vmem:[%s346 + $0x508] sm:$0xff]
        %v664 = vld [vmem:[%s346 + $0x510] sm:$0xff]
        %v665 = vld [vmem:[%s346 + $0x518] sm:$0xff]
        %v666 = vld [vmem:[%s346 + $0x520] sm:$0xff]
        %v667 = vld [vmem:[%s346 + $0x528] sm:$0xff]
        %v668 = vld [vmem:[%s346 + $0x530] sm:$0xff]
        %v669 = vld [vmem:[%s346 + $0x538] sm:$0xff]
        %v670 = vld [vmem:[%s346 + $0x540] sm:$0xff]
        %v671 = vld [vmem:[%s346 + $0x548] sm:$0xff]
        %v672 = vld [vmem:[%s346 + $0x550] sm:$0xff]
        %v673 = vld [vmem:[%s346 + $0x558] sm:$0xff]
        %v674 = vld [vmem:[%s346 + $0x560] sm:$0xff]
        %v675 = vld [vmem:[%s346 + $0x568] sm:$0xff]
        %v676 = vld [vmem:[%s346 + $0x570] sm:$0xff]
        %v677 = vld [vmem:[%s346 + $0x578] sm:$0xff]
        %v678 = vld [vmem:[%s346 + $0x580] sm:$0xff]
        %v679 = vld [vmem:[%s346 + $0x588] sm:$0xff]
        %v680 = vld [vmem:[%s346 + $0x590] sm:$0xff]
        %v681 = vld [vmem:[%s346 + $0x598] sm:$0xff]
        %v682 = vld [vmem:[%s346 + $0x5a0] sm:$0xff]
        %v683 = vld [vmem:[%s346 + $0x5a8] sm:$0xff]
        %v684 = vld [vmem:[%s346 + $0x5b0] sm:$0xff]
        %v685 = vld [vmem:[%s346 + $0x5b8] sm:$0xff]
        %v686 = vld [vmem:[%s346 + $0x5c0] sm:$0xff]
        %v687 = vld [vmem:[%s346 + $0x5c8] sm:$0xff]
        %v688 = vld [vmem:[%s346 + $0x5d0] sm:$0xff]
        %v689 = vld [vmem:[%s346 + $0x5d8] sm:$0xff]
        %v690 = vld [vmem:[%s346 + $0x5e0] sm:$0xff]
        %v691 = vld [vmem:[%s346 + $0x5e8] sm:$0xff]
        %v692 = vld [vmem:[%s346 + $0x5f0] sm:$0xff]
        %v693 = vld [vmem:[%s346 + $0x5f8] sm:$0xff]
        %v694 = vld [vmem:[%s346 + $0x600] sm:$0xff]
        %v695 = vld [vmem:[%s346 + $0x608] sm:$0xff]
        %v696 = vld [vmem:[%s346 + $0x610] sm:$0xff]
        %v697 = vld [vmem:[%s346 + $0x618] sm:$0xff]
        %v698 = vld [vmem:[%s346 + $0x620] sm:$0xff]
        %v699 = vld [vmem:[%s346 + $0x628] sm:$0xff]
        %v700 = vld [vmem:[%s346 + $0x630] sm:$0xff]
        %v701 = vld [vmem:[%s346 + $0x638] sm:$0xff]
        %v702 = vunpack.c.l.s8.bf16 %v502
        %v703 = vunpack.c.l.s8.bf16 %v503
        %v704 = vunpack.c.l.s8.bf16 %v504
        %v705 = vunpack.c.l.s8.bf16 %v505
        %v706 = vunpack.c.l.s8.bf16 %v506
        %v707 = vunpack.c.l.s8.bf16 %v507
        %v708 = vunpack.c.l.s8.bf16 %v508
        %v709 = vunpack.c.l.s8.bf16 %v509
        %v710 = vunpack.c.l.s8.bf16 %v510
        %v711 = vunpack.c.l.s8.bf16 %v511
        %v712 = vunpack.c.h.s8.bf16 %v502
        %v713 = vunpack.c.h.s8.bf16 %v503
        %v714 = vunpack.c.h.s8.bf16 %v504
        %v715 = vunpack.c.h.s8.bf16 %v505
        %v716 = vunpack.c.h.s8.bf16 %v506
        %v717 = vunpack.c.h.s8.bf16 %v507
        %v718 = vunpack.c.h.s8.bf16 %v508
        %v719 = vunpack.c.h.s8.bf16 %v509
        %v720 = vunpack.c.h.s8.bf16 %v510
        %v721 = vunpack.c.h.s8.bf16 %v511
        %v722 = vunpack.c.l.s8.bf16 %v512
        %v723 = vunpack.c.l.s8.bf16 %v513
        %v724 = vunpack.c.l.s8.bf16 %v514
        %v725 = vunpack.c.l.s8.bf16 %v515
        %v726 = vunpack.c.l.s8.bf16 %v516
        %v727 = vunpack.c.l.s8.bf16 %v517
        %v728 = vunpack.c.l.s8.bf16 %v518
        %v729 = vunpack.c.l.s8.bf16 %v519
        %v730 = vunpack.c.l.s8.bf16 %v520
        %v731 = vunpack.c.l.s8.bf16 %v521
        %v732 = vunpack.c.h.s8.bf16 %v512
        %v733 = vunpack.c.h.s8.bf16 %v513
        %v734 = vunpack.c.h.s8.bf16 %v514
        %v735 = vunpack.c.h.s8.bf16 %v515
        %v736 = vunpack.c.h.s8.bf16 %v516
        %v737 = vunpack.c.h.s8.bf16 %v517
        %v738 = vunpack.c.h.s8.bf16 %v518
        %v739 = vunpack.c.h.s8.bf16 %v519
        %v740 = vunpack.c.h.s8.bf16 %v520
        %v741 = vunpack.c.h.s8.bf16 %v521
        %v742 = vunpack.c.l.s8.bf16 %v522
        %v743 = vunpack.c.l.s8.bf16 %v523
        %v744 = vunpack.c.l.s8.bf16 %v524
        %v745 = vunpack.c.l.s8.bf16 %v525
        %v746 = vunpack.c.l.s8.bf16 %v526
        %v747 = vunpack.c.l.s8.bf16 %v527
        %v748 = vunpack.c.l.s8.bf16 %v528
        %v749 = vunpack.c.l.s8.bf16 %v529
        %v750 = vunpack.c.l.s8.bf16 %v530
        %v751 = vunpack.c.l.s8.bf16 %v531
        %v752 = vunpack.c.h.s8.bf16 %v522
        %v753 = vunpack.c.h.s8.bf16 %v523
        %v754 = vunpack.c.h.s8.bf16 %v524
        %v755 = vunpack.c.h.s8.bf16 %v525
        %v756 = vunpack.c.h.s8.bf16 %v526
        %v757 = vunpack.c.h.s8.bf16 %v527
        %v758 = vunpack.c.h.s8.bf16 %v528
        %v759 = vunpack.c.h.s8.bf16 %v529
        %v760 = vunpack.c.h.s8.bf16 %v530
        %v761 = vunpack.c.h.s8.bf16 %v531
        %v762 = vunpack.c.l.s8.bf16 %v532
        %v763 = vunpack.c.l.s8.bf16 %v533
        %v764 = vunpack.c.l.s8.bf16 %v534
        %v765 = vunpack.c.l.s8.bf16 %v535
        %v766 = vunpack.c.l.s8.bf16 %v536
        %v767 = vunpack.c.l.s8.bf16 %v537
        %v768 = vunpack.c.l.s8.bf16 %v538
        %v769 = vunpack.c.l.s8.bf16 %v539
        %v770 = vunpack.c.l.s8.bf16 %v540
        %v771 = vunpack.c.l.s8.bf16 %v541
        %v772 = vunpack.c.h.s8.bf16 %v532
        %v773 = vunpack.c.h.s8.bf16 %v533
        %v774 = vunpack.c.h.s8.bf16 %v534
        %v775 = vunpack.c.h.s8.bf16 %v535
        %v776 = vunpack.c.h.s8.bf16 %v536
        %v777 = vunpack.c.h.s8.bf16 %v537
        %v778 = vunpack.c.h.s8.bf16 %v538
        %v779 = vunpack.c.h.s8.bf16 %v539
        %v780 = vunpack.c.h.s8.bf16 %v540
        %v781 = vunpack.c.h.s8.bf16 %v541
        %v782 = vunpack.c.l.s8.bf16 %v542
        %v783 = vunpack.c.l.s8.bf16 %v543
        %v784 = vunpack.c.l.s8.bf16 %v544
        %v785 = vunpack.c.l.s8.bf16 %v545
        %v786 = vunpack.c.l.s8.bf16 %v546
        %v787 = vunpack.c.l.s8.bf16 %v547
        %v788 = vunpack.c.l.s8.bf16 %v548
        %v789 = vunpack.c.l.s8.bf16 %v549
        %v790 = vunpack.c.l.s8.bf16 %v550
        %v791 = vunpack.c.l.s8.bf16 %v551
        %v792 = vunpack.c.h.s8.bf16 %v542
        %v793 = vunpack.c.h.s8.bf16 %v543
        %v794 = vunpack.c.h.s8.bf16 %v544
        %v795 = vunpack.c.h.s8.bf16 %v545
        %v796 = vunpack.c.h.s8.bf16 %v546
        %v797 = vunpack.c.h.s8.bf16 %v547
        %v798 = vunpack.c.h.s8.bf16 %v548
        %v799 = vunpack.c.h.s8.bf16 %v549
        %v800 = vunpack.c.h.s8.bf16 %v550
        %v801 = vunpack.c.h.s8.bf16 %v551
        %v802 = vunpack.c.l.s8.bf16 %v552
        %v803 = vunpack.c.l.s8.bf16 %v553
        %v804 = vunpack.c.l.s8.bf16 %v554
        %v805 = vunpack.c.l.s8.bf16 %v555
        %v806 = vunpack.c.l.s8.bf16 %v556
        %v807 = vunpack.c.l.s8.bf16 %v557
        %v808 = vunpack.c.l.s8.bf16 %v558
        %v809 = vunpack.c.l.s8.bf16 %v559
        %v810 = vunpack.c.l.s8.bf16 %v560
        %v811 = vunpack.c.l.s8.bf16 %v561
        %v812 = vunpack.c.h.s8.bf16 %v552
        %v813 = vunpack.c.h.s8.bf16 %v553
        %v814 = vunpack.c.h.s8.bf16 %v554
        %v815 = vunpack.c.h.s8.bf16 %v555
        %v816 = vunpack.c.h.s8.bf16 %v556
        %v817 = vunpack.c.h.s8.bf16 %v557
        %v818 = vunpack.c.h.s8.bf16 %v558
        %v819 = vunpack.c.h.s8.bf16 %v559
        %v820 = vunpack.c.h.s8.bf16 %v560
        %v821 = vunpack.c.h.s8.bf16 %v561
        %v822 = vunpack.c.l.s8.bf16 %v562
        %v823 = vunpack.c.l.s8.bf16 %v563
        %v824 = vunpack.c.l.s8.bf16 %v564
        %v825 = vunpack.c.l.s8.bf16 %v565
        %v826 = vunpack.c.l.s8.bf16 %v566
        %v827 = vunpack.c.l.s8.bf16 %v567
        %v828 = vunpack.c.l.s8.bf16 %v568
        %v829 = vunpack.c.l.s8.bf16 %v569
        %v830 = vunpack.c.l.s8.bf16 %v570
        %v831 = vunpack.c.l.s8.bf16 %v571
        %v832 = vunpack.c.h.s8.bf16 %v562
        %v833 = vunpack.c.h.s8.bf16 %v563
        %v834 = vunpack.c.h.s8.bf16 %v564
        %v835 = vunpack.c.h.s8.bf16 %v565
        %v836 = vunpack.c.h.s8.bf16 %v566
        %v837 = vunpack.c.h.s8.bf16 %v567
        %v838 = vunpack.c.h.s8.bf16 %v568
        %v839 = vunpack.c.h.s8.bf16 %v569
        %v840 = vunpack.c.h.s8.bf16 %v570
        %v841 = vunpack.c.h.s8.bf16 %v571
        %v842 = vunpack.c.l.s8.bf16 %v572
        %v843 = vunpack.c.l.s8.bf16 %v573
        %v844 = vunpack.c.l.s8.bf16 %v574
        %v845 = vunpack.c.l.s8.bf16 %v575
        %v846 = vunpack.c.l.s8.bf16 %v576
        %v847 = vunpack.c.l.s8.bf16 %v577
        %v848 = vunpack.c.l.s8.bf16 %v578
        %v849 = vunpack.c.l.s8.bf16 %v579
        %v850 = vunpack.c.l.s8.bf16 %v580
        %v851 = vunpack.c.l.s8.bf16 %v581
        %v852 = vunpack.c.h.s8.bf16 %v572
        %v853 = vunpack.c.h.s8.bf16 %v573
        %v854 = vunpack.c.h.s8.bf16 %v574
        %v855 = vunpack.c.h.s8.bf16 %v575
        %v856 = vunpack.c.h.s8.bf16 %v576
        %v857 = vunpack.c.h.s8.bf16 %v577
        %v858 = vunpack.c.h.s8.bf16 %v578
        %v859 = vunpack.c.h.s8.bf16 %v579
        %v860 = vunpack.c.h.s8.bf16 %v580
        %v861 = vunpack.c.h.s8.bf16 %v581
        %v862 = vunpack.c.l.s8.bf16 %v582
        %v863 = vunpack.c.l.s8.bf16 %v583
        %v864 = vunpack.c.l.s8.bf16 %v584
        %v865 = vunpack.c.l.s8.bf16 %v585
        %v866 = vunpack.c.l.s8.bf16 %v586
        %v867 = vunpack.c.l.s8.bf16 %v587
        %v868 = vunpack.c.l.s8.bf16 %v588
        %v869 = vunpack.c.l.s8.bf16 %v589
        %v870 = vunpack.c.l.s8.bf16 %v590
        %v871 = vunpack.c.l.s8.bf16 %v591
        %v872 = vunpack.c.h.s8.bf16 %v582
        %v873 = vunpack.c.h.s8.bf16 %v583
        %v874 = vunpack.c.h.s8.bf16 %v584
        %v875 = vunpack.c.h.s8.bf16 %v585
        %v876 = vunpack.c.h.s8.bf16 %v586
        %v877 = vunpack.c.h.s8.bf16 %v587
        %v878 = vunpack.c.h.s8.bf16 %v588
        %v879 = vunpack.c.h.s8.bf16 %v589
        %v880 = vunpack.c.h.s8.bf16 %v590
        %v881 = vunpack.c.h.s8.bf16 %v591
        %v882 = vunpack.c.l.s8.bf16 %v592
        %v883 = vunpack.c.l.s8.bf16 %v593
        %v884 = vunpack.c.l.s8.bf16 %v594
        %v885 = vunpack.c.l.s8.bf16 %v595
        %v886 = vunpack.c.l.s8.bf16 %v596
        %v887 = vunpack.c.l.s8.bf16 %v597
        %v888 = vunpack.c.l.s8.bf16 %v598
        %v889 = vunpack.c.l.s8.bf16 %v599
        %v890 = vunpack.c.l.s8.bf16 %v600
        %v891 = vunpack.c.l.s8.bf16 %v601
        %v892 = vunpack.c.h.s8.bf16 %v592
        %v893 = vunpack.c.h.s8.bf16 %v593
        %v894 = vunpack.c.h.s8.bf16 %v594
        %v895 = vunpack.c.h.s8.bf16 %v595
        %v896 = vunpack.c.h.s8.bf16 %v596
        %v897 = vunpack.c.h.s8.bf16 %v597
        %v898 = vunpack.c.h.s8.bf16 %v598
        %v899 = vunpack.c.h.s8.bf16 %v599
        %v900 = vunpack.c.h.s8.bf16 %v600
        %v901 = vunpack.c.h.s8.bf16 %v601
        %v902 = vunpack.c.l.s8.bf16 %v602
        %v903 = vunpack.c.l.s8.bf16 %v603
        %v904 = vunpack.c.l.s8.bf16 %v604
        %v905 = vunpack.c.l.s8.bf16 %v605
        %v906 = vunpack.c.l.s8.bf16 %v606
        %v907 = vunpack.c.l.s8.bf16 %v607
        %v908 = vunpack.c.l.s8.bf16 %v608
        %v909 = vunpack.c.l.s8.bf16 %v609
        %v910 = vunpack.c.l.s8.bf16 %v610
        %v911 = vunpack.c.l.s8.bf16 %v611
        %v912 = vunpack.c.h.s8.bf16 %v602
        %v913 = vunpack.c.h.s8.bf16 %v603
        %v914 = vunpack.c.h.s8.bf16 %v604
        %v915 = vunpack.c.h.s8.bf16 %v605
        %v916 = vunpack.c.h.s8.bf16 %v606
        %v917 = vunpack.c.h.s8.bf16 %v607
        %v918 = vunpack.c.h.s8.bf16 %v608
        %v919 = vunpack.c.h.s8.bf16 %v609
        %v920 = vunpack.c.h.s8.bf16 %v610
        %v921 = vunpack.c.h.s8.bf16 %v611
        %v922 = vunpack.c.l.s8.bf16 %v612
        %v923 = vunpack.c.l.s8.bf16 %v613
        %v924 = vunpack.c.l.s8.bf16 %v614
        %v925 = vunpack.c.l.s8.bf16 %v615
        %v926 = vunpack.c.l.s8.bf16 %v616
        %v927 = vunpack.c.l.s8.bf16 %v617
        %v928 = vunpack.c.l.s8.bf16 %v618
        %v929 = vunpack.c.l.s8.bf16 %v619
        %v930 = vunpack.c.l.s8.bf16 %v620
        %v931 = vunpack.c.l.s8.bf16 %v621
        %v932 = vunpack.c.h.s8.bf16 %v612
        %v933 = vunpack.c.h.s8.bf16 %v613
        %v934 = vunpack.c.h.s8.bf16 %v614
        %v935 = vunpack.c.h.s8.bf16 %v615
        %v936 = vunpack.c.h.s8.bf16 %v616
        %v937 = vunpack.c.h.s8.bf16 %v617
        %v938 = vunpack.c.h.s8.bf16 %v618
        %v939 = vunpack.c.h.s8.bf16 %v619
        %v940 = vunpack.c.h.s8.bf16 %v620
        %v941 = vunpack.c.h.s8.bf16 %v621
        %v942 = vunpack.c.l.s8.bf16 %v622
        %v943 = vunpack.c.l.s8.bf16 %v623
        %v944 = vunpack.c.l.s8.bf16 %v624
        %v945 = vunpack.c.l.s8.bf16 %v625
        %v946 = vunpack.c.l.s8.bf16 %v626
        %v947 = vunpack.c.l.s8.bf16 %v627
        %v948 = vunpack.c.l.s8.bf16 %v628
        %v949 = vunpack.c.l.s8.bf16 %v629
        %v950 = vunpack.c.l.s8.bf16 %v630
        %v951 = vunpack.c.l.s8.bf16 %v631
        %v952 = vunpack.c.h.s8.bf16 %v622
        %v953 = vunpack.c.h.s8.bf16 %v623
        %v954 = vunpack.c.h.s8.bf16 %v624
        %v955 = vunpack.c.h.s8.bf16 %v625
        %v956 = vunpack.c.h.s8.bf16 %v626
        %v957 = vunpack.c.h.s8.bf16 %v627
        %v958 = vunpack.c.h.s8.bf16 %v628
        %v959 = vunpack.c.h.s8.bf16 %v629
        %v960 = vunpack.c.h.s8.bf16 %v630
        %v961 = vunpack.c.h.s8.bf16 %v631
        %v962 = vunpack.c.l.s8.bf16 %v632
        %v963 = vunpack.c.l.s8.bf16 %v633
        %v964 = vunpack.c.l.s8.bf16 %v634
        %v965 = vunpack.c.l.s8.bf16 %v635
        %v966 = vunpack.c.l.s8.bf16 %v636
        %v967 = vunpack.c.l.s8.bf16 %v637
        %v968 = vunpack.c.l.s8.bf16 %v638
        %v969 = vunpack.c.l.s8.bf16 %v639
        %v970 = vunpack.c.l.s8.bf16 %v640
        %v971 = vunpack.c.l.s8.bf16 %v641
        %v972 = vunpack.c.h.s8.bf16 %v632
        %v973 = vunpack.c.h.s8.bf16 %v633
        %v974 = vunpack.c.h.s8.bf16 %v634
        %v975 = vunpack.c.h.s8.bf16 %v635
        %v976 = vunpack.c.h.s8.bf16 %v636
        %v977 = vunpack.c.h.s8.bf16 %v637
        %v978 = vunpack.c.h.s8.bf16 %v638
        %v979 = vunpack.c.h.s8.bf16 %v639
        %v980 = vunpack.c.h.s8.bf16 %v640
        %v981 = vunpack.c.h.s8.bf16 %v641
        %v982 = vunpack.c.l.s8.bf16 %v642
        %v983 = vunpack.c.l.s8.bf16 %v643
        %v984 = vunpack.c.l.s8.bf16 %v644
        %v985 = vunpack.c.l.s8.bf16 %v645
        %v986 = vunpack.c.l.s8.bf16 %v646
        %v987 = vunpack.c.l.s8.bf16 %v647
        %v988 = vunpack.c.l.s8.bf16 %v648
        %v989 = vunpack.c.l.s8.bf16 %v649
        %v990 = vunpack.c.l.s8.bf16 %v650
        %v991 = vunpack.c.l.s8.bf16 %v651
        %v992 = vunpack.c.h.s8.bf16 %v642
        %v993 = vunpack.c.h.s8.bf16 %v643
        %v994 = vunpack.c.h.s8.bf16 %v644
        %v995 = vunpack.c.h.s8.bf16 %v645
        %v996 = vunpack.c.h.s8.bf16 %v646
        %v997 = vunpack.c.h.s8.bf16 %v647
        %v998 = vunpack.c.h.s8.bf16 %v648
        %v999 = vunpack.c.h.s8.bf16 %v649
        %v1000 = vunpack.c.h.s8.bf16 %v650
        %v1001 = vunpack.c.h.s8.bf16 %v651
        %v1002 = vunpack.c.l.s8.bf16 %v652
        %v1003 = vunpack.c.l.s8.bf16 %v653
        %v1004 = vunpack.c.l.s8.bf16 %v654
        %v1005 = vunpack.c.l.s8.bf16 %v655
        %v1006 = vunpack.c.l.s8.bf16 %v656
        %v1007 = vunpack.c.l.s8.bf16 %v657
        %v1008 = vunpack.c.l.s8.bf16 %v658
        %v1009 = vunpack.c.l.s8.bf16 %v659
        %v1010 = vunpack.c.l.s8.bf16 %v660
        %v1011 = vunpack.c.l.s8.bf16 %v661
        %v1012 = vunpack.c.h.s8.bf16 %v652
        %v1013 = vunpack.c.h.s8.bf16 %v653
        %v1014 = vunpack.c.h.s8.bf16 %v654
        %v1015 = vunpack.c.h.s8.bf16 %v655
        %v1016 = vunpack.c.h.s8.bf16 %v656
        %v1017 = vunpack.c.h.s8.bf16 %v657
        %v1018 = vunpack.c.h.s8.bf16 %v658
        %v1019 = vunpack.c.h.s8.bf16 %v659
        %v1020 = vunpack.c.h.s8.bf16 %v660
        %v1021 = vunpack.c.h.s8.bf16 %v661
        %v1022 = vunpack.c.l.s8.bf16 %v662
        %v1023 = vunpack.c.l.s8.bf16 %v663
        %v1024 = vunpack.c.l.s8.bf16 %v664
        %v1025 = vunpack.c.l.s8.bf16 %v665
        %v1026 = vunpack.c.l.s8.bf16 %v666
        %v1027 = vunpack.c.l.s8.bf16 %v667
        %v1028 = vunpack.c.l.s8.bf16 %v668
        %v1029 = vunpack.c.l.s8.bf16 %v669
        %v1030 = vunpack.c.l.s8.bf16 %v670
        %v1031 = vunpack.c.l.s8.bf16 %v671
        %v1032 = vunpack.c.h.s8.bf16 %v662
        %v1033 = vunpack.c.h.s8.bf16 %v663
        %v1034 = vunpack.c.h.s8.bf16 %v664
        %v1035 = vunpack.c.h.s8.bf16 %v665
        %v1036 = vunpack.c.h.s8.bf16 %v666
        %v1037 = vunpack.c.h.s8.bf16 %v667
        %v1038 = vunpack.c.h.s8.bf16 %v668
        %v1039 = vunpack.c.h.s8.bf16 %v669
        %v1040 = vunpack.c.h.s8.bf16 %v670
        %v1041 = vunpack.c.h.s8.bf16 %v671
        %v1042 = vunpack.c.l.s8.bf16 %v672
        %v1043 = vunpack.c.l.s8.bf16 %v673
        %v1044 = vunpack.c.l.s8.bf16 %v674
        %v1045 = vunpack.c.l.s8.bf16 %v675
        %v1046 = vunpack.c.l.s8.bf16 %v676
        %v1047 = vunpack.c.l.s8.bf16 %v677
        %v1048 = vunpack.c.l.s8.bf16 %v678
        %v1049 = vunpack.c.l.s8.bf16 %v679
        %v1050 = vunpack.c.l.s8.bf16 %v680
        %v1051 = vunpack.c.l.s8.bf16 %v681
        %v1052 = vunpack.c.h.s8.bf16 %v672
        %v1053 = vunpack.c.h.s8.bf16 %v673
        %v1054 = vunpack.c.h.s8.bf16 %v674
        %v1055 = vunpack.c.h.s8.bf16 %v675
        %v1056 = vunpack.c.h.s8.bf16 %v676
        %v1057 = vunpack.c.h.s8.bf16 %v677
        %v1058 = vunpack.c.h.s8.bf16 %v678
        %v1059 = vunpack.c.h.s8.bf16 %v679
        %v1060 = vunpack.c.h.s8.bf16 %v680
        %v1061 = vunpack.c.h.s8.bf16 %v681
        %v1062 = vunpack.c.l.s8.bf16 %v682
        %v1063 = vunpack.c.l.s8.bf16 %v683
        %v1064 = vunpack.c.l.s8.bf16 %v684
        %v1065 = vunpack.c.l.s8.bf16 %v685
        %v1066 = vunpack.c.l.s8.bf16 %v686
        %v1067 = vunpack.c.l.s8.bf16 %v687
        %v1068 = vunpack.c.l.s8.bf16 %v688
        %v1069 = vunpack.c.l.s8.bf16 %v689
        %v1070 = vunpack.c.l.s8.bf16 %v690
        %v1071 = vunpack.c.l.s8.bf16 %v691
        %v1072 = vunpack.c.h.s8.bf16 %v682
        %v1073 = vunpack.c.h.s8.bf16 %v683
        %v1074 = vunpack.c.h.s8.bf16 %v684
        %v1075 = vunpack.c.h.s8.bf16 %v685
        %v1076 = vunpack.c.h.s8.bf16 %v686
        %v1077 = vunpack.c.h.s8.bf16 %v687
        %v1078 = vunpack.c.h.s8.bf16 %v688
        %v1079 = vunpack.c.h.s8.bf16 %v689
        %v1080 = vunpack.c.h.s8.bf16 %v690
        %v1081 = vunpack.c.h.s8.bf16 %v691
        %v1082 = vunpack.c.l.s8.bf16 %v692
        %v1083 = vunpack.c.l.s8.bf16 %v693
        %v1084 = vunpack.c.l.s8.bf16 %v694
        %v1085 = vunpack.c.l.s8.bf16 %v695
        %v1086 = vunpack.c.l.s8.bf16 %v696
        %v1087 = vunpack.c.l.s8.bf16 %v697
        %v1088 = vunpack.c.l.s8.bf16 %v698
        %v1089 = vunpack.c.l.s8.bf16 %v699
        %v1090 = vunpack.c.l.s8.bf16 %v700
        %v1091 = vunpack.c.l.s8.bf16 %v701
        %v1092 = vunpack.c.h.s8.bf16 %v692
        %v1093 = vunpack.c.h.s8.bf16 %v693
        %v1094 = vunpack.c.h.s8.bf16 %v694
        %v1095 = vunpack.c.h.s8.bf16 %v695
        %v1096 = vunpack.c.h.s8.bf16 %v696
        %v1097 = vunpack.c.h.s8.bf16 %v697
        %v1098 = vunpack.c.h.s8.bf16 %v698
        %v1099 = vunpack.c.h.s8.bf16 %v699
        %v1100 = vunpack.c.h.s8.bf16 %v700
        %v1101 = vunpack.c.h.s8.bf16 %v701
        %s1102 = smul.u32 %s35, 1280
        %s1103 = sshra.s32 %s1102, 3
        %s1104 = sand.u32 %s1102, 7
        %s1105 = smul.addr %s1103, 4
        %s1106 = scalar_lea.vmem [#allocation6], %s1105
        %v1107 = vld [vmem:[%s1106] sm:$0xf]
        %v1108 = vld [vmem:[%s1106 + $0x4] sm:$0xf]
        %v1109 = vld [vmem:[%s1106 + $0x8] sm:$0xf]
        %v1110 = vld [vmem:[%s1106 + $0xc] sm:$0xf]
        %v1111 = vld [vmem:[%s1106 + $0x10] sm:$0xf]
        %v1112 = vld [vmem:[%s1106 + $0x14] sm:$0xf]
        %v1113 = vld [vmem:[%s1106 + $0x18] sm:$0xf]
        %v1114 = vld [vmem:[%s1106 + $0x1c] sm:$0xf]
        %v1115 = vld [vmem:[%s1106 + $0x20] sm:$0xf]
        %v1116 = vld [vmem:[%s1106 + $0x24] sm:$0xf]
        %v1117 = vld [vmem:[%s1106 + $0x28] sm:$0xf]
        %v1118 = vld [vmem:[%s1106 + $0x2c] sm:$0xf]
        %v1119 = vld [vmem:[%s1106 + $0x30] sm:$0xf]
        %v1120 = vld [vmem:[%s1106 + $0x34] sm:$0xf]
        %v1121 = vld [vmem:[%s1106 + $0x38] sm:$0xf]
        %v1122 = vld [vmem:[%s1106 + $0x3c] sm:$0xf]
        %v1123 = vld [vmem:[%s1106 + $0x40] sm:$0xf]
        %v1124 = vld [vmem:[%s1106 + $0x44] sm:$0xf]
        %v1125 = vld [vmem:[%s1106 + $0x48] sm:$0xf]
        %v1126 = vld [vmem:[%s1106 + $0x4c] sm:$0xf]
        %v1127 = vld [vmem:[%s1106 + $0x50] sm:$0xf]
        %v1128 = vld [vmem:[%s1106 + $0x54] sm:$0xf]
        %v1129 = vld [vmem:[%s1106 + $0x58] sm:$0xf]
        %v1130 = vld [vmem:[%s1106 + $0x5c] sm:$0xf]
        %v1131 = vld [vmem:[%s1106 + $0x60] sm:$0xf]
        %v1132 = vld [vmem:[%s1106 + $0x64] sm:$0xf]
        %v1133 = vld [vmem:[%s1106 + $0x68] sm:$0xf]
        %v1134 = vld [vmem:[%s1106 + $0x6c] sm:$0xf]
        %v1135 = vld [vmem:[%s1106 + $0x70] sm:$0xf]
        %v1136 = vld [vmem:[%s1106 + $0x74] sm:$0xf]
        %v1137 = vld [vmem:[%s1106 + $0x78] sm:$0xf]
        %v1138 = vld [vmem:[%s1106 + $0x7c] sm:$0xf]
        %v1139 = vld [vmem:[%s1106 + $0x80] sm:$0xf]
        %v1140 = vld [vmem:[%s1106 + $0x84] sm:$0xf]
        %v1141 = vld [vmem:[%s1106 + $0x88] sm:$0xf]
        %v1142 = vld [vmem:[%s1106 + $0x8c] sm:$0xf]
        %v1143 = vld [vmem:[%s1106 + $0x90] sm:$0xf]
        %v1144 = vld [vmem:[%s1106 + $0x94] sm:$0xf]
        %v1145 = vld [vmem:[%s1106 + $0x98] sm:$0xf]
        %v1146 = vld [vmem:[%s1106 + $0x9c] sm:$0xf]
        %v1147 = vld [vmem:[%s1106 + $0xa0] sm:$0xf]
        %v1148 = vld [vmem:[%s1106 + $0xa4] sm:$0xf]
        %v1149 = vld [vmem:[%s1106 + $0xa8] sm:$0xf]
        %v1150 = vld [vmem:[%s1106 + $0xac] sm:$0xf]
        %v1151 = vld [vmem:[%s1106 + $0xb0] sm:$0xf]
        %v1152 = vld [vmem:[%s1106 + $0xb4] sm:$0xf]
        %v1153 = vld [vmem:[%s1106 + $0xb8] sm:$0xf]
        %v1154 = vld [vmem:[%s1106 + $0xbc] sm:$0xf]
        %v1155 = vld [vmem:[%s1106 + $0xc0] sm:$0xf]
        %v1156 = vld [vmem:[%s1106 + $0xc4] sm:$0xf]
        %v1157 = vld [vmem:[%s1106 + $0xc8] sm:$0xf]
        %v1158 = vld [vmem:[%s1106 + $0xcc] sm:$0xf]
        %v1159 = vld [vmem:[%s1106 + $0xd0] sm:$0xf]
        %v1160 = vld [vmem:[%s1106 + $0xd4] sm:$0xf]
        %v1161 = vld [vmem:[%s1106 + $0xd8] sm:$0xf]
        %v1162 = vld [vmem:[%s1106 + $0xdc] sm:$0xf]
        %v1163 = vld [vmem:[%s1106 + $0xe0] sm:$0xf]
        %v1164 = vld [vmem:[%s1106 + $0xe4] sm:$0xf]
        %v1165 = vld [vmem:[%s1106 + $0xe8] sm:$0xf]
        %v1166 = vld [vmem:[%s1106 + $0xec] sm:$0xf]
        %v1167 = vld [vmem:[%s1106 + $0xf0] sm:$0xf]
        %v1168 = vld [vmem:[%s1106 + $0xf4] sm:$0xf]
        %v1169 = vld [vmem:[%s1106 + $0xf8] sm:$0xf]
        %v1170 = vld [vmem:[%s1106 + $0xfc] sm:$0xf]
        %v1171 = vld [vmem:[%s1106 + $0x100] sm:$0xf]
        %v1172 = vld [vmem:[%s1106 + $0x104] sm:$0xf]
        %v1173 = vld [vmem:[%s1106 + $0x108] sm:$0xf]
        %v1174 = vld [vmem:[%s1106 + $0x10c] sm:$0xf]
        %v1175 = vld [vmem:[%s1106 + $0x110] sm:$0xf]
        %v1176 = vld [vmem:[%s1106 + $0x114] sm:$0xf]
        %v1177 = vld [vmem:[%s1106 + $0x118] sm:$0xf]
        %v1178 = vld [vmem:[%s1106 + $0x11c] sm:$0xf]
        %v1179 = vld [vmem:[%s1106 + $0x120] sm:$0xf]
        %v1180 = vld [vmem:[%s1106 + $0x124] sm:$0xf]
        %v1181 = vld [vmem:[%s1106 + $0x128] sm:$0xf]
        %v1182 = vld [vmem:[%s1106 + $0x12c] sm:$0xf]
        %v1183 = vld [vmem:[%s1106 + $0x130] sm:$0xf]
        %v1184 = vld [vmem:[%s1106 + $0x134] sm:$0xf]
        %v1185 = vld [vmem:[%s1106 + $0x138] sm:$0xf]
        %v1186 = vld [vmem:[%s1106 + $0x13c] sm:$0xf]
        %v1187 = vld [vmem:[%s1106 + $0x140] sm:$0xf]
        %v1188 = vld [vmem:[%s1106 + $0x144] sm:$0xf]
        %v1189 = vld [vmem:[%s1106 + $0x148] sm:$0xf]
        %v1190 = vld [vmem:[%s1106 + $0x14c] sm:$0xf]
        %v1191 = vld [vmem:[%s1106 + $0x150] sm:$0xf]
        %v1192 = vld [vmem:[%s1106 + $0x154] sm:$0xf]
        %v1193 = vld [vmem:[%s1106 + $0x158] sm:$0xf]
        %v1194 = vld [vmem:[%s1106 + $0x15c] sm:$0xf]
        %v1195 = vld [vmem:[%s1106 + $0x160] sm:$0xf]
        %v1196 = vld [vmem:[%s1106 + $0x164] sm:$0xf]
        %v1197 = vld [vmem:[%s1106 + $0x168] sm:$0xf]
        %v1198 = vld [vmem:[%s1106 + $0x16c] sm:$0xf]
        %v1199 = vld [vmem:[%s1106 + $0x170] sm:$0xf]
        %v1200 = vld [vmem:[%s1106 + $0x174] sm:$0xf]
        %v1201 = vld [vmem:[%s1106 + $0x178] sm:$0xf]
        %v1202 = vld [vmem:[%s1106 + $0x17c] sm:$0xf]
        %v1203 = vld [vmem:[%s1106 + $0x180] sm:$0xf]
        %v1204 = vld [vmem:[%s1106 + $0x184] sm:$0xf]
        %v1205 = vld [vmem:[%s1106 + $0x188] sm:$0xf]
        %v1206 = vld [vmem:[%s1106 + $0x18c] sm:$0xf]
        %v1207 = vld [vmem:[%s1106 + $0x190] sm:$0xf]
        %v1208 = vld [vmem:[%s1106 + $0x194] sm:$0xf]
        %v1209 = vld [vmem:[%s1106 + $0x198] sm:$0xf]
        %v1210 = vld [vmem:[%s1106 + $0x19c] sm:$0xf]
        %v1211 = vld [vmem:[%s1106 + $0x1a0] sm:$0xf]
        %v1212 = vld [vmem:[%s1106 + $0x1a4] sm:$0xf]
        %v1213 = vld [vmem:[%s1106 + $0x1a8] sm:$0xf]
        %v1214 = vld [vmem:[%s1106 + $0x1ac] sm:$0xf]
        %v1215 = vld [vmem:[%s1106 + $0x1b0] sm:$0xf]
        %v1216 = vld [vmem:[%s1106 + $0x1b4] sm:$0xf]
        %v1217 = vld [vmem:[%s1106 + $0x1b8] sm:$0xf]
        %v1218 = vld [vmem:[%s1106 + $0x1bc] sm:$0xf]
        %v1219 = vld [vmem:[%s1106 + $0x1c0] sm:$0xf]
        %v1220 = vld [vmem:[%s1106 + $0x1c4] sm:$0xf]
        %v1221 = vld [vmem:[%s1106 + $0x1c8] sm:$0xf]
        %v1222 = vld [vmem:[%s1106 + $0x1cc] sm:$0xf]
        %v1223 = vld [vmem:[%s1106 + $0x1d0] sm:$0xf]
        %v1224 = vld [vmem:[%s1106 + $0x1d4] sm:$0xf]
        %v1225 = vld [vmem:[%s1106 + $0x1d8] sm:$0xf]
        %v1226 = vld [vmem:[%s1106 + $0x1dc] sm:$0xf]
        %v1227 = vld [vmem:[%s1106 + $0x1e0] sm:$0xf]
        %v1228 = vld [vmem:[%s1106 + $0x1e4] sm:$0xf]
        %v1229 = vld [vmem:[%s1106 + $0x1e8] sm:$0xf]
        %v1230 = vld [vmem:[%s1106 + $0x1ec] sm:$0xf]
        %v1231 = vld [vmem:[%s1106 + $0x1f0] sm:$0xf]
        %v1232 = vld [vmem:[%s1106 + $0x1f4] sm:$0xf]
        %v1233 = vld [vmem:[%s1106 + $0x1f8] sm:$0xf]
        %v1234 = vld [vmem:[%s1106 + $0x1fc] sm:$0xf]
        %v1235 = vld [vmem:[%s1106 + $0x200] sm:$0xf]
        %v1236 = vld [vmem:[%s1106 + $0x204] sm:$0xf]
        %v1237 = vld [vmem:[%s1106 + $0x208] sm:$0xf]
        %v1238 = vld [vmem:[%s1106 + $0x20c] sm:$0xf]
        %v1239 = vld [vmem:[%s1106 + $0x210] sm:$0xf]
        %v1240 = vld [vmem:[%s1106 + $0x214] sm:$0xf]
        %v1241 = vld [vmem:[%s1106 + $0x218] sm:$0xf]
        %v1242 = vld [vmem:[%s1106 + $0x21c] sm:$0xf]
        %v1243 = vld [vmem:[%s1106 + $0x220] sm:$0xf]
        %v1244 = vld [vmem:[%s1106 + $0x224] sm:$0xf]
        %v1245 = vld [vmem:[%s1106 + $0x228] sm:$0xf]
        %v1246 = vld [vmem:[%s1106 + $0x22c] sm:$0xf]
        %v1247 = vld [vmem:[%s1106 + $0x230] sm:$0xf]
        %v1248 = vld [vmem:[%s1106 + $0x234] sm:$0xf]
        %v1249 = vld [vmem:[%s1106 + $0x238] sm:$0xf]
        %v1250 = vld [vmem:[%s1106 + $0x23c] sm:$0xf]
        %v1251 = vld [vmem:[%s1106 + $0x240] sm:$0xf]
        %v1252 = vld [vmem:[%s1106 + $0x244] sm:$0xf]
        %v1253 = vld [vmem:[%s1106 + $0x248] sm:$0xf]
        %v1254 = vld [vmem:[%s1106 + $0x24c] sm:$0xf]
        %v1255 = vld [vmem:[%s1106 + $0x250] sm:$0xf]
        %v1256 = vld [vmem:[%s1106 + $0x254] sm:$0xf]
        %v1257 = vld [vmem:[%s1106 + $0x258] sm:$0xf]
        %v1258 = vld [vmem:[%s1106 + $0x25c] sm:$0xf]
        %v1259 = vld [vmem:[%s1106 + $0x260] sm:$0xf]
        %v1260 = vld [vmem:[%s1106 + $0x264] sm:$0xf]
        %v1261 = vld [vmem:[%s1106 + $0x268] sm:$0xf]
        %v1262 = vld [vmem:[%s1106 + $0x26c] sm:$0xf]
        %v1263 = vld [vmem:[%s1106 + $0x270] sm:$0xf]
        %v1264 = vld [vmem:[%s1106 + $0x274] sm:$0xf]
        %v1265 = vld [vmem:[%s1106 + $0x278] sm:$0xf]
        %v1266 = vld [vmem:[%s1106 + $0x27c] sm:$0xf]
        %v1267 = vld [vmem:[#allocation2] sm:$0xff]
        %v1268 = vld [vmem:[#allocation2 + $0x8] sm:$0xff]
        %v1269 = vld [vmem:[#allocation2 + $0x10] sm:$0xff]
        %v1270 = vld [vmem:[#allocation2 + $0x18] sm:$0xff]
        %v1271 = vld [vmem:[#allocation2 + $0x20] sm:$0xff]
        %v1272 = vld [vmem:[#allocation2 + $0x28] sm:$0xff]
        %v1273 = vld [vmem:[#allocation2 + $0x30] sm:$0xff]
        %v1274 = vld [vmem:[#allocation2 + $0x38] sm:$0xff]
        %v1275 = vld [vmem:[#allocation2 + $0x40] sm:$0xff]
        %v1276 = vld [vmem:[#allocation2 + $0x48] sm:$0xff]
        %v1277 = vld [vmem:[#allocation2 + $0x50] sm:$0xff]
        %v1278 = vld [vmem:[#allocation2 + $0x58] sm:$0xff]
        %v1279 = vld [vmem:[#allocation2 + $0x60] sm:$0xff]
        %v1280 = vld [vmem:[#allocation2 + $0x68] sm:$0xff]
        %v1281 = vld [vmem:[#allocation2 + $0x70] sm:$0xff]
        %v1282 = vld [vmem:[#allocation2 + $0x78] sm:$0xff]
        %v1283 = vld [vmem:[#allocation2 + $0x80] sm:$0xff]
        %v1284 = vld [vmem:[#allocation2 + $0x88] sm:$0xff]
        %v1285 = vld [vmem:[#allocation2 + $0x90] sm:$0xff]
        %v1286 = vld [vmem:[#allocation2 + $0x98] sm:$0xff]
        %v1287 = vld [vmem:[#allocation2 + $0xa0] sm:$0xff]
        %v1288 = vld [vmem:[#allocation2 + $0xa8] sm:$0xff]
        %v1289 = vld [vmem:[#allocation2 + $0xb0] sm:$0xff]
        %v1290 = vld [vmem:[#allocation2 + $0xb8] sm:$0xff]
        %v1291 = vld [vmem:[#allocation2 + $0xc0] sm:$0xff]
        %v1292 = vld [vmem:[#allocation2 + $0xc8] sm:$0xff]
        %v1293 = vld [vmem:[#allocation2 + $0xd0] sm:$0xff]
        %v1294 = vld [vmem:[#allocation2 + $0xd8] sm:$0xff]
        %v1295 = vld [vmem:[#allocation2 + $0xe0] sm:$0xff]
        %v1296 = vld [vmem:[#allocation2 + $0xe8] sm:$0xff]
        %v1297 = vld [vmem:[#allocation2 + $0xf0] sm:$0xff]
        %v1298 = vld [vmem:[#allocation2 + $0xf8] sm:$0xff]
        %v1299 = vld [vmem:[#allocation2 + $0x100] sm:$0xff]
        %v1300 = vld [vmem:[#allocation2 + $0x108] sm:$0xff]
        %v1301 = vld [vmem:[#allocation2 + $0x110] sm:$0xff]
        %v1302 = vld [vmem:[#allocation2 + $0x118] sm:$0xff]
        %v1303 = vld [vmem:[#allocation2 + $0x120] sm:$0xff]
        %v1304 = vld [vmem:[#allocation2 + $0x128] sm:$0xff]
        %v1305 = vld [vmem:[#allocation2 + $0x130] sm:$0xff]
        %v1306 = vld [vmem:[#allocation2 + $0x138] sm:$0xff]
        %v1307 = vld [vmem:[#allocation2 + $0x140] sm:$0xff]
        %v1308 = vld [vmem:[#allocation2 + $0x148] sm:$0xff]
        %v1309 = vld [vmem:[#allocation2 + $0x150] sm:$0xff]
        %v1310 = vld [vmem:[#allocation2 + $0x158] sm:$0xff]
        %v1311 = vld [vmem:[#allocation2 + $0x160] sm:$0xff]
        %v1312 = vld [vmem:[#allocation2 + $0x168] sm:$0xff]
        %v1313 = vld [vmem:[#allocation2 + $0x170] sm:$0xff]
        %v1314 = vld [vmem:[#allocation2 + $0x178] sm:$0xff]
        %v1315 = vld [vmem:[#allocation2 + $0x180] sm:$0xff]
        %v1316 = vld [vmem:[#allocation2 + $0x188] sm:$0xff]
        %v1317 = vld [vmem:[#allocation2 + $0x190] sm:$0xff]
        %v1318 = vld [vmem:[#allocation2 + $0x198] sm:$0xff]
        %v1319 = vld [vmem:[#allocation2 + $0x1a0] sm:$0xff]
        %v1320 = vld [vmem:[#allocation2 + $0x1a8] sm:$0xff]
        %v1321 = vld [vmem:[#allocation2 + $0x1b0] sm:$0xff]
        %v1322 = vld [vmem:[#allocation2 + $0x1b8] sm:$0xff]
        %v1323 = vld [vmem:[#allocation2 + $0x1c0] sm:$0xff]
        %v1324 = vld [vmem:[#allocation2 + $0x1c8] sm:$0xff]
        %v1325 = vld [vmem:[#allocation2 + $0x1d0] sm:$0xff]
        %v1326 = vld [vmem:[#allocation2 + $0x1d8] sm:$0xff]
        %v1327 = vld [vmem:[#allocation2 + $0x1e0] sm:$0xff]
        %v1328 = vld [vmem:[#allocation2 + $0x1e8] sm:$0xff]
        %v1329 = vld [vmem:[#allocation2 + $0x1f0] sm:$0xff]
        %v1330 = vld [vmem:[#allocation2 + $0x1f8] sm:$0xff]
        %v1331 = vld [vmem:[#allocation2 + $0x200] sm:$0xff]
        %v1332 = vld [vmem:[#allocation2 + $0x208] sm:$0xff]
        %v1333 = vld [vmem:[#allocation2 + $0x210] sm:$0xff]
        %v1334 = vld [vmem:[#allocation2 + $0x218] sm:$0xff]
        %v1335 = vld [vmem:[#allocation2 + $0x220] sm:$0xff]
        %v1336 = vld [vmem:[#allocation2 + $0x228] sm:$0xff]
        %v1337 = vld [vmem:[#allocation2 + $0x230] sm:$0xff]
        %v1338 = vld [vmem:[#allocation2 + $0x238] sm:$0xff]
        %v1339 = vld [vmem:[#allocation2 + $0x240] sm:$0xff]
        %v1340 = vld [vmem:[#allocation2 + $0x248] sm:$0xff]
        %v1341 = vld [vmem:[#allocation2 + $0x250] sm:$0xff]
        %v1342 = vld [vmem:[#allocation2 + $0x258] sm:$0xff]
        %v1343 = vld [vmem:[#allocation2 + $0x260] sm:$0xff]
        %v1344 = vld [vmem:[#allocation2 + $0x268] sm:$0xff]
        %v1345 = vld [vmem:[#allocation2 + $0x270] sm:$0xff]
        %v1346 = vld [vmem:[#allocation2 + $0x278] sm:$0xff]
        %v1507 = vunpack.c.l.b16 %v1107
        %v1508 = vunpack.c.l.b16 %v1108
        %v1509 = vunpack.c.l.b16 %v1109
        %v1510 = vunpack.c.l.b16 %v1110
        %v1511 = vunpack.c.l.b16 %v1111
        %v1512 = vunpack.c.l.b16 %v1112
        %v1513 = vunpack.c.l.b16 %v1113
        %v1514 = vunpack.c.l.b16 %v1114
        %v1515 = vunpack.c.l.b16 %v1115
        %v1516 = vunpack.c.l.b16 %v1116
        %v1517 = vunpack.c.l.b16 %v1117
        %v1518 = vunpack.c.l.b16 %v1118
        %v1519 = vunpack.c.l.b16 %v1119
        %v1520 = vunpack.c.l.b16 %v1120
        %v1521 = vunpack.c.l.b16 %v1121
        %v1522 = vunpack.c.l.b16 %v1122
        %v1523 = vunpack.c.l.b16 %v1123
        %v1524 = vunpack.c.l.b16 %v1124
        %v1525 = vunpack.c.l.b16 %v1125
        %v1526 = vunpack.c.l.b16 %v1126
        %v1527 = vunpack.c.l.b16 %v1127
        %v1528 = vunpack.c.l.b16 %v1128
        %v1529 = vunpack.c.l.b16 %v1129
        %v1530 = vunpack.c.l.b16 %v1130
        %v1531 = vunpack.c.l.b16 %v1131
        %v1532 = vunpack.c.l.b16 %v1132
        %v1533 = vunpack.c.l.b16 %v1133
        %v1534 = vunpack.c.l.b16 %v1134
        %v1535 = vunpack.c.l.b16 %v1135
        %v1536 = vunpack.c.l.b16 %v1136
        %v1537 = vunpack.c.l.b16 %v1137
        %v1538 = vunpack.c.l.b16 %v1138
        %v1539 = vunpack.c.l.b16 %v1139
        %v1540 = vunpack.c.l.b16 %v1140
        %v1541 = vunpack.c.l.b16 %v1141
        %v1542 = vunpack.c.l.b16 %v1142
        %v1543 = vunpack.c.l.b16 %v1143
        %v1544 = vunpack.c.l.b16 %v1144
        %v1545 = vunpack.c.l.b16 %v1145
        %v1546 = vunpack.c.l.b16 %v1146
        %v1547 = vunpack.c.l.b16 %v1147
        %v1548 = vunpack.c.l.b16 %v1148
        %v1549 = vunpack.c.l.b16 %v1149
        %v1550 = vunpack.c.l.b16 %v1150
        %v1551 = vunpack.c.l.b16 %v1151
        %v1552 = vunpack.c.l.b16 %v1152
        %v1553 = vunpack.c.l.b16 %v1153
        %v1554 = vunpack.c.l.b16 %v1154
        %v1555 = vunpack.c.l.b16 %v1155
        %v1556 = vunpack.c.l.b16 %v1156
        %v1557 = vunpack.c.l.b16 %v1157
        %v1558 = vunpack.c.l.b16 %v1158
        %v1559 = vunpack.c.l.b16 %v1159
        %v1560 = vunpack.c.l.b16 %v1160
        %v1561 = vunpack.c.l.b16 %v1161
        %v1562 = vunpack.c.l.b16 %v1162
        %v1563 = vunpack.c.l.b16 %v1163
        %v1564 = vunpack.c.l.b16 %v1164
        %v1565 = vunpack.c.l.b16 %v1165
        %v1566 = vunpack.c.l.b16 %v1166
        %v1567 = vunpack.c.l.b16 %v1167
        %v1568 = vunpack.c.l.b16 %v1168
        %v1569 = vunpack.c.l.b16 %v1169
        %v1570 = vunpack.c.l.b16 %v1170
        %v1571 = vunpack.c.l.b16 %v1171
        %v1572 = vunpack.c.l.b16 %v1172
        %v1573 = vunpack.c.l.b16 %v1173
        %v1574 = vunpack.c.l.b16 %v1174
        %v1575 = vunpack.c.l.b16 %v1175
        %v1576 = vunpack.c.l.b16 %v1176
        %v1577 = vunpack.c.l.b16 %v1177
        %v1578 = vunpack.c.l.b16 %v1178
        %v1579 = vunpack.c.l.b16 %v1179
        %v1580 = vunpack.c.l.b16 %v1180
        %v1581 = vunpack.c.l.b16 %v1181
        %v1582 = vunpack.c.l.b16 %v1182
        %v1583 = vunpack.c.l.b16 %v1183
        %v1584 = vunpack.c.l.b16 %v1184
        %v1585 = vunpack.c.l.b16 %v1185
        %v1586 = vunpack.c.l.b16 %v1186
        %v1587 = vunpack.c.l.b16 %v1187
        %v1588 = vunpack.c.l.b16 %v1188
        %v1589 = vunpack.c.l.b16 %v1189
        %v1590 = vunpack.c.l.b16 %v1190
        %v1591 = vunpack.c.l.b16 %v1191
        %v1592 = vunpack.c.l.b16 %v1192
        %v1593 = vunpack.c.l.b16 %v1193
        %v1594 = vunpack.c.l.b16 %v1194
        %v1595 = vunpack.c.l.b16 %v1195
        %v1596 = vunpack.c.l.b16 %v1196
        %v1597 = vunpack.c.l.b16 %v1197
        %v1598 = vunpack.c.l.b16 %v1198
        %v1599 = vunpack.c.l.b16 %v1199
        %v1600 = vunpack.c.l.b16 %v1200
        %v1601 = vunpack.c.l.b16 %v1201
        %v1602 = vunpack.c.l.b16 %v1202
        %v1603 = vunpack.c.l.b16 %v1203
        %v1604 = vunpack.c.l.b16 %v1204
        %v1605 = vunpack.c.l.b16 %v1205
        %v1606 = vunpack.c.l.b16 %v1206
        %v1607 = vunpack.c.l.b16 %v1207
        %v1608 = vunpack.c.l.b16 %v1208
        %v1609 = vunpack.c.l.b16 %v1209
        %v1610 = vunpack.c.l.b16 %v1210
        %v1611 = vunpack.c.l.b16 %v1211
        %v1612 = vunpack.c.l.b16 %v1212
        %v1613 = vunpack.c.l.b16 %v1213
        %v1614 = vunpack.c.l.b16 %v1214
        %v1615 = vunpack.c.l.b16 %v1215
        %v1616 = vunpack.c.l.b16 %v1216
        %v1617 = vunpack.c.l.b16 %v1217
        %v1618 = vunpack.c.l.b16 %v1218
        %v1619 = vunpack.c.l.b16 %v1219
        %v1620 = vunpack.c.l.b16 %v1220
        %v1621 = vunpack.c.l.b16 %v1221
        %v1622 = vunpack.c.l.b16 %v1222
        %v1623 = vunpack.c.l.b16 %v1223
        %v1624 = vunpack.c.l.b16 %v1224
        %v1625 = vunpack.c.l.b16 %v1225
        %v1626 = vunpack.c.l.b16 %v1226
        %v1627 = vunpack.c.l.b16 %v1227
        %v1628 = vunpack.c.l.b16 %v1228
        %v1629 = vunpack.c.l.b16 %v1229
        %v1630 = vunpack.c.l.b16 %v1230
        %v1631 = vunpack.c.l.b16 %v1231
        %v1632 = vunpack.c.l.b16 %v1232
        %v1633 = vunpack.c.l.b16 %v1233
        %v1634 = vunpack.c.l.b16 %v1234
        %v1635 = vunpack.c.l.b16 %v1235
        %v1636 = vunpack.c.l.b16 %v1236
        %v1637 = vunpack.c.l.b16 %v1237
        %v1638 = vunpack.c.l.b16 %v1238
        %v1639 = vunpack.c.l.b16 %v1239
        %v1640 = vunpack.c.l.b16 %v1240
        %v1641 = vunpack.c.l.b16 %v1241
        %v1642 = vunpack.c.l.b16 %v1242
        %v1643 = vunpack.c.l.b16 %v1243
        %v1644 = vunpack.c.l.b16 %v1244
        %v1645 = vunpack.c.l.b16 %v1245
        %v1646 = vunpack.c.l.b16 %v1246
        %v1647 = vunpack.c.l.b16 %v1247
        %v1648 = vunpack.c.l.b16 %v1248
        %v1649 = vunpack.c.l.b16 %v1249
        %v1650 = vunpack.c.l.b16 %v1250
        %v1651 = vunpack.c.l.b16 %v1251
        %v1652 = vunpack.c.l.b16 %v1252
        %v1653 = vunpack.c.l.b16 %v1253
        %v1654 = vunpack.c.l.b16 %v1254
        %v1655 = vunpack.c.l.b16 %v1255
        %v1656 = vunpack.c.l.b16 %v1256
        %v1657 = vunpack.c.l.b16 %v1257
        %v1658 = vunpack.c.l.b16 %v1258
        %v1659 = vunpack.c.l.b16 %v1259
        %v1660 = vunpack.c.l.b16 %v1260
        %v1661 = vunpack.c.l.b16 %v1261
        %v1662 = vunpack.c.l.b16 %v1262
        %v1663 = vunpack.c.l.b16 %v1263
        %v1664 = vunpack.c.l.b16 %v1264
        %v1665 = vunpack.c.l.b16 %v1265
        %v1666 = vunpack.c.l.b16 %v1266
        %v1667 = vpack.c.b16 %v1508, %v1507
        %v1668 = vpack.c.b16 %v1510, %v1509
        %v1669 = vpack.c.b16 %v1512, %v1511
        %v1670 = vpack.c.b16 %v1514, %v1513
        %v1671 = vpack.c.b16 %v1516, %v1515
        %v1672 = vpack.c.b16 %v1518, %v1517
        %v1673 = vpack.c.b16 %v1520, %v1519
        %v1674 = vpack.c.b16 %v1522, %v1521
        %v1675 = vpack.c.b16 %v1524, %v1523
        %v1676 = vpack.c.b16 %v1526, %v1525
        %v1677 = vpack.c.b16 %v1528, %v1527
        %v1678 = vpack.c.b16 %v1530, %v1529
        %v1679 = vpack.c.b16 %v1532, %v1531
        %v1680 = vpack.c.b16 %v1534, %v1533
        %v1681 = vpack.c.b16 %v1536, %v1535
        %v1682 = vpack.c.b16 %v1538, %v1537
        %v1683 = vpack.c.b16 %v1540, %v1539
        %v1684 = vpack.c.b16 %v1542, %v1541
        %v1685 = vpack.c.b16 %v1544, %v1543
        %v1686 = vpack.c.b16 %v1546, %v1545
        %v1687 = vpack.c.b16 %v1548, %v1547
        %v1688 = vpack.c.b16 %v1550, %v1549
        %v1689 = vpack.c.b16 %v1552, %v1551
        %v1690 = vpack.c.b16 %v1554, %v1553
        %v1691 = vpack.c.b16 %v1556, %v1555
        %v1692 = vpack.c.b16 %v1558, %v1557
        %v1693 = vpack.c.b16 %v1560, %v1559
        %v1694 = vpack.c.b16 %v1562, %v1561
        %v1695 = vpack.c.b16 %v1564, %v1563
        %v1696 = vpack.c.b16 %v1566, %v1565
        %v1697 = vpack.c.b16 %v1568, %v1567
        %v1698 = vpack.c.b16 %v1570, %v1569
        %v1699 = vpack.c.b16 %v1572, %v1571
        %v1700 = vpack.c.b16 %v1574, %v1573
        %v1701 = vpack.c.b16 %v1576, %v1575
        %v1702 = vpack.c.b16 %v1578, %v1577
        %v1703 = vpack.c.b16 %v1580, %v1579
        %v1704 = vpack.c.b16 %v1582, %v1581
        %v1705 = vpack.c.b16 %v1584, %v1583
        %v1706 = vpack.c.b16 %v1586, %v1585
        %v1707 = vpack.c.b16 %v1588, %v1587
        %v1708 = vpack.c.b16 %v1590, %v1589
        %v1709 = vpack.c.b16 %v1592, %v1591
        %v1710 = vpack.c.b16 %v1594, %v1593
        %v1711 = vpack.c.b16 %v1596, %v1595
        %v1712 = vpack.c.b16 %v1598, %v1597
        %v1713 = vpack.c.b16 %v1600, %v1599
        %v1714 = vpack.c.b16 %v1602, %v1601
        %v1715 = vpack.c.b16 %v1604, %v1603
        %v1716 = vpack.c.b16 %v1606, %v1605
        %v1717 = vpack.c.b16 %v1608, %v1607
        %v1718 = vpack.c.b16 %v1610, %v1609
        %v1719 = vpack.c.b16 %v1612, %v1611
        %v1720 = vpack.c.b16 %v1614, %v1613
        %v1721 = vpack.c.b16 %v1616, %v1615
        %v1722 = vpack.c.b16 %v1618, %v1617
        %v1723 = vpack.c.b16 %v1620, %v1619
        %v1724 = vpack.c.b16 %v1622, %v1621
        %v1725 = vpack.c.b16 %v1624, %v1623
        %v1726 = vpack.c.b16 %v1626, %v1625
        %v1727 = vpack.c.b16 %v1628, %v1627
        %v1728 = vpack.c.b16 %v1630, %v1629
        %v1729 = vpack.c.b16 %v1632, %v1631
        %v1730 = vpack.c.b16 %v1634, %v1633
        %v1731 = vpack.c.b16 %v1636, %v1635
        %v1732 = vpack.c.b16 %v1638, %v1637
        %v1733 = vpack.c.b16 %v1640, %v1639
        %v1734 = vpack.c.b16 %v1642, %v1641
        %v1735 = vpack.c.b16 %v1644, %v1643
        %v1736 = vpack.c.b16 %v1646, %v1645
        %v1737 = vpack.c.b16 %v1648, %v1647
        %v1738 = vpack.c.b16 %v1650, %v1649
        %v1739 = vpack.c.b16 %v1652, %v1651
        %v1740 = vpack.c.b16 %v1654, %v1653
        %v1741 = vpack.c.b16 %v1656, %v1655
        %v1742 = vpack.c.b16 %v1658, %v1657
        %v1743 = vpack.c.b16 %v1660, %v1659
        %v1744 = vpack.c.b16 %v1662, %v1661
        %v1745 = vpack.c.b16 %v1664, %v1663
        %v1746 = vpack.c.b16 %v1666, %v1665
        %1827 = vmatprep.subr.bf16.mxu0 0
        %1828 = vmatpush1.bf16.msra.mxu0 %v1667
        %1829 = vmatprep.subr.bf16.mxu0 0
        %1830 = vmatpush1.bf16.msra.mxu0 %v1668
        %1831 = vmatprep.subr.bf16.mxu0 0
        %1832 = vmatpush1.bf16.msra.mxu0 %v1669
        %1833 = vmatprep.subr.bf16.mxu0 0
        %1834 = vmatpush1.bf16.msra.mxu0 %v1670
        %1835 = vmatprep.subr.bf16.mxu0 0
        %1836 = vmatpush1.bf16.msra.mxu0 %v1671
        %1837 = vmatprep.subr.bf16.mxu0 0
        %1838 = vmatpush1.bf16.msra.mxu0 %v1672
        %1839 = vmatprep.subr.bf16.mxu0 0
        %1840 = vmatpush1.bf16.msra.mxu0 %v1673
        %1841 = vmatprep.subr.bf16.mxu0 0
        %1842 = vmatpush1.bf16.msra.mxu0 %v1674
        %1843 = vmatprep.subr.bf16.mxu0 0
        %1844 = vmatpush1.bf16.msra.mxu0 %v1675
        %1845 = vmatprep.subr.bf16.mxu0 0
        %1846 = vmatpush1.bf16.msra.mxu0 %v1676
        %1847 = vmatprep.subr.bf16.mxu0 0
        %1848 = vmatpush1.bf16.msra.mxu0 %v1677
        %1849 = vmatprep.subr.bf16.mxu0 0
        %1850 = vmatpush1.bf16.msra.mxu0 %v1678
        %1851 = vmatprep.subr.bf16.mxu0 0
        %1852 = vmatpush1.bf16.msra.mxu0 %v1679
        %1853 = vmatprep.subr.bf16.mxu0 0
        %1854 = vmatpush1.bf16.msra.mxu0 %v1680
        %1855 = vmatprep.subr.bf16.mxu0 0
        %1856 = vmatpush1.bf16.msra.mxu0 %v1681
        %1857 = vmatprep.subr.bf16.mxu0 0
        %1858 = vmatpush1.bf16.msra.mxu0 %v1682
        %1859 = vmatprep.mubr.bf16.mxu0 %v703
        %1860 = vmatmul.mubr.bf16.gmra.mrb[0].mxu0 %v702
        %v1861 = vpop.f32.mrb[0].mxu0
        %v1862 = vadd.f32 0.0, %v1861
        %v1863 = vpop.f32.mrb[0].mxu0
        %v1864 = vpop.f32.mrb[0].mxu0
        %v1865 = vadd.f32 0.0, %v1864
        %v1866 = vpop.f32.mrb[0].mxu0
        %1867 = vmatprep.mubr.bf16.mxu0 %v713
        %1868 = vmatmul.mubr.bf16.gmra.mrb[0].mxu0 %v712
        %v1869 = vpop.f32.mrb[0].mxu0
        %v1870 = vadd.f32 0.0, %v1869
        %v1871 = vpop.f32.mrb[0].mxu0
        %v1872 = vpop.f32.mrb[0].mxu0
        %v1873 = vadd.f32 0.0, %v1872
        %v1874 = vpop.f32.mrb[0].mxu0
        %1875 = vmatprep.mubr.bf16.mxu0 %v723
        %1876 = vmatmul.mubr.bf16.gmra.mrb[0].mxu0 %v722
        %v1877 = vpop.f32.mrb[0].mxu0
        %v1878 = vadd.f32 0.0, %v1877
        %v1879 = vpop.f32.mrb[0].mxu0
        %v1880 = vpop.f32.mrb[0].mxu0
        %v1881 = vadd.f32 0.0, %v1880
        %v1882 = vpop.f32.mrb[0].mxu0
        %1883 = vmatprep.mubr.bf16.mxu0 %v733
        %1884 = vmatmul.mubr.bf16.gmra.mrb[0].mxu0 %v732
        %v1885 = vpop.f32.mrb[0].mxu0
        %v1886 = vadd.f32 0.0, %v1885
        %v1887 = vpop.f32.mrb[0].mxu0
        %v1888 = vpop.f32.mrb[0].mxu0
        %v1889 = vadd.f32 0.0, %v1888
        %v1890 = vpop.f32.mrb[0].mxu0
        %1891 = vmatprep.mubr.bf16.mxu0 %v743
        %1892 = vmatmul.mubr.bf16.gmra.mrb[0].mxu0 %v742
        %v1893 = vpop.f32.mrb[0].mxu0
        %v1894 = vadd.f32 0.0, %v1893
        %v1895 = vpop.f32.mrb[0].mxu0
        %v1896 = vpop.f32.mrb[0].mxu0
        %v1897 = vadd.f32 0.0, %v1896
        %v1898 = vpop.f32.mrb[0].mxu0
        %1899 = vmatprep.mubr.bf16.mxu0 %v753
        %1900 = vmatmul.mubr.bf16.gmra.mrb[0].mxu0 %v752
        %v1901 = vpop.f32.mrb[0].mxu0
        %v1902 = vadd.f32 0.0, %v1901
        %v1903 = vpop.f32.mrb[0].mxu0
        %v1904 = vpop.f32.mrb[0].mxu0
        %v1905 = vadd.f32 0.0, %v1904
        %v1906 = vpop.f32.mrb[0].mxu0
        %1907 = vmatprep.mubr.bf16.mxu0 %v763
        %1908 = vmatmul.mubr.bf16.gmra.mrb[0].mxu0 %v762
        %v1909 = vpop.f32.mrb[0].mxu0
        %v1910 = vadd.f32 0.0, %v1909
        %v1911 = vpop.f32.mrb[0].mxu0
        %v1912 = vpop.f32.mrb[0].mxu0
        %v1913 = vadd.f32 0.0, %v1912
        %v1914 = vpop.f32.mrb[0].mxu0
        %1915 = vmatprep.mubr.bf16.mxu0 %v773
        %1916 = vmatmul.mubr.bf16.gmra.mrb[0].mxu0 %v772
        %v1917 = vpop.f32.mrb[0].mxu0
        %v1918 = vadd.f32 0.0, %v1917
        %v1919 = vpop.f32.mrb[0].mxu0
        %v1920 = vpop.f32.mrb[0].mxu0
        %v1921 = vadd.f32 0.0, %v1920
        %v1922 = vpop.f32.mrb[0].mxu0
        %1923 = vmatprep.mubr.bf16.mxu0 %v783
        %1924 = vmatmul.mubr.bf16.gmra.mrb[0].mxu0 %v782
        %v1925 = vpop.f32.mrb[0].mxu0
        %v1926 = vadd.f32 0.0, %v1925
        %v1927 = vpop.f32.mrb[0].mxu0
        %v1928 = vpop.f32.mrb[0].mxu0
        %v1929 = vadd.f32 0.0, %v1928
        %v1930 = vpop.f32.mrb[0].mxu0
        %1931 = vmatprep.mubr.bf16.mxu0 %v793
        %1932 = vmatmul.mubr.bf16.gmra.mrb[0].mxu0 %v792
        %v1933 = vpop.f32.mrb[0].mxu0
        %v1934 = vadd.f32 0.0, %v1933
        %v1935 = vpop.f32.mrb[0].mxu0
        %v1936 = vpop.f32.mrb[0].mxu0
        %v1937 = vadd.f32 0.0, %v1936
        %v1938 = vpop.f32.mrb[0].mxu0
        %1939 = vmatprep.mubr.bf16.mxu0 %v803
        %1940 = vmatmul.mubr.bf16.gmra.mrb[0].mxu0 %v802
        %v1941 = vpop.f32.mrb[0].mxu0
        %v1942 = vadd.f32 0.0, %v1941
        %v1943 = vpop.f32.mrb[0].mxu0
        %v1944 = vpop.f32.mrb[0].mxu0
        %v1945 = vadd.f32 0.0, %v1944
        %v1946 = vpop.f32.mrb[0].mxu0
        %1947 = vmatprep.mubr.bf16.mxu0 %v813
        %1948 = vmatmul.mubr.bf16.gmra.mrb[0].mxu0 %v812
        %v1949 = vpop.f32.mrb[0].mxu0
        %v1950 = vadd.f32 0.0, %v1949
        %v1951 = vpop.f32.mrb[0].mxu0
        %v1952 = vpop.f32.mrb[0].mxu0
        %v1953 = vadd.f32 0.0, %v1952
        %v1954 = vpop.f32.mrb[0].mxu0
        %1955 = vmatprep.mubr.bf16.mxu0 %v823
        %1956 = vmatmul.mubr.bf16.gmra.mrb[0].mxu0 %v822
        %v1957 = vpop.f32.mrb[0].mxu0
        %v1958 = vadd.f32 0.0, %v1957
        %v1959 = vpop.f32.mrb[0].mxu0
        %v1960 = vpop.f32.mrb[0].mxu0
        %v1961 = vadd.f32 0.0, %v1960
        %v1962 = vpop.f32.mrb[0].mxu0
        %1963 = vmatprep.mubr.bf16.mxu0 %v833
        %1964 = vmatmul.mubr.bf16.gmra.mrb[0].mxu0 %v832
        %v1965 = vpop.f32.mrb[0].mxu0
        %v1966 = vadd.f32 0.0, %v1965
        %v1967 = vpop.f32.mrb[0].mxu0
        %v1968 = vpop.f32.mrb[0].mxu0
        %v1969 = vadd.f32 0.0, %v1968
        %v1970 = vpop.f32.mrb[0].mxu0
        %1971 = vmatprep.mubr.bf16.mxu0 %v843
        %1972 = vmatmul.mubr.bf16.gmra.mrb[0].mxu0 %v842
        %v1973 = vpop.f32.mrb[0].mxu0
        %v1974 = vadd.f32 0.0, %v1973
        %v1975 = vpop.f32.mrb[0].mxu0
        %v1976 = vpop.f32.mrb[0].mxu0
        %v1977 = vadd.f32 0.0, %v1976
        %v1978 = vpop.f32.mrb[0].mxu0
        %1979 = vmatprep.mubr.bf16.mxu0 %v853
        %1980 = vmatmul.mubr.bf16.gmra.mrb[0].mxu0 %v852
        %v1981 = vpop.f32.mrb[0].mxu0
        %v1982 = vadd.f32 0.0, %v1981
        %v1983 = vpop.f32.mrb[0].mxu0
        %v1984 = vpop.f32.mrb[0].mxu0
        %v1985 = vadd.f32 0.0, %v1984
        %v1986 = vpop.f32.mrb[0].mxu0
        %1987 = vmatprep.mubr.bf16.mxu0 %v863
        %1988 = vmatmul.mubr.bf16.gmra.mrb[0].mxu0 %v862
        %v1989 = vpop.f32.mrb[0].mxu0
        %v1990 = vadd.f32 0.0, %v1989
        %v1991 = vpop.f32.mrb[0].mxu0
        %v1992 = vpop.f32.mrb[0].mxu0
        %v1993 = vadd.f32 0.0, %v1992
        %v1994 = vpop.f32.mrb[0].mxu0
        %1995 = vmatprep.mubr.bf16.mxu0 %v873
        %1996 = vmatmul.mubr.bf16.gmra.mrb[0].mxu0 %v872
        %v1997 = vpop.f32.mrb[0].mxu0
        %v1998 = vadd.f32 0.0, %v1997
        %v1999 = vpop.f32.mrb[0].mxu0
        %v2000 = vpop.f32.mrb[0].mxu0
        %v2001 = vadd.f32 0.0, %v2000
        %v2002 = vpop.f32.mrb[0].mxu0
        %2003 = vmatprep.mubr.bf16.mxu0 %v883
        %2004 = vmatmul.mubr.bf16.gmra.mrb[0].mxu0 %v882
        %v2005 = vpop.f32.mrb[0].mxu0
        %v2006 = vadd.f32 0.0, %v2005
        %v2007 = vpop.f32.mrb[0].mxu0
        %v2008 = vpop.f32.mrb[0].mxu0
        %v2009 = vadd.f32 0.0, %v2008
        %v2010 = vpop.f32.mrb[0].mxu0
        %2011 = vmatprep.mubr.bf16.mxu0 %v893
        %2012 = vmatmul.mubr.bf16.gmra.mrb[0].mxu0 %v892
        %v2013 = vpop.f32.mrb[0].mxu0
        %v2014 = vadd.f32 0.0, %v2013
        %v2015 = vpop.f32.mrb[0].mxu0
        %v2016 = vpop.f32.mrb[0].mxu0
        %v2017 = vadd.f32 0.0, %v2016
        %v2018 = vpop.f32.mrb[0].mxu0
        %2019 = vmatprep.mubr.bf16.mxu0 %v903
        %2020 = vmatmul.mubr.bf16.gmra.mrb[0].mxu0 %v902
        %v2021 = vpop.f32.mrb[0].mxu0
        %v2022 = vadd.f32 0.0, %v2021
        %v2023 = vpop.f32.mrb[0].mxu0
        %v2024 = vpop.f32.mrb[0].mxu0
        %v2025 = vadd.f32 0.0, %v2024
        %v2026 = vpop.f32.mrb[0].mxu0
        %2027 = vmatprep.mubr.bf16.mxu0 %v913
        %2028 = vmatmul.mubr.bf16.gmra.mrb[0].mxu0 %v912
        %v2029 = vpop.f32.mrb[0].mxu0
        %v2030 = vadd.f32 0.0, %v2029
        %v2031 = vpop.f32.mrb[0].mxu0
        %v2032 = vpop.f32.mrb[0].mxu0
        %v2033 = vadd.f32 0.0, %v2032
        %v2034 = vpop.f32.mrb[0].mxu0
        %2035 = vmatprep.mubr.bf16.mxu0 %v923
        %2036 = vmatmul.mubr.bf16.gmra.mrb[0].mxu0 %v922
        %v2037 = vpop.f32.mrb[0].mxu0
        %v2038 = vadd.f32 0.0, %v2037
        %v2039 = vpop.f32.mrb[0].mxu0
        %v2040 = vpop.f32.mrb[0].mxu0
        %v2041 = vadd.f32 0.0, %v2040
        %v2042 = vpop.f32.mrb[0].mxu0
        %2043 = vmatprep.mubr.bf16.mxu0 %v933
        %2044 = vmatmul.mubr.bf16.gmra.mrb[0].mxu0 %v932
        %v2045 = vpop.f32.mrb[0].mxu0
        %v2046 = vadd.f32 0.0, %v2045
        %v2047 = vpop.f32.mrb[0].mxu0
        %v2048 = vpop.f32.mrb[0].mxu0
        %v2049 = vadd.f32 0.0, %v2048
        %v2050 = vpop.f32.mrb[0].mxu0
        %2051 = vmatprep.mubr.bf16.mxu0 %v943
        %2052 = vmatmul.mubr.bf16.gmra.mrb[0].mxu0 %v942
        %v2053 = vpop.f32.mrb[0].mxu0
        %v2054 = vadd.f32 0.0, %v2053
        %v2055 = vpop.f32.mrb[0].mxu0
        %v2056 = vpop.f32.mrb[0].mxu0
        %v2057 = vadd.f32 0.0, %v2056
        %v2058 = vpop.f32.mrb[0].mxu0
        %2059 = vmatprep.mubr.bf16.mxu0 %v953
        %2060 = vmatmul.mubr.bf16.gmra.mrb[0].mxu0 %v952
        %v2061 = vpop.f32.mrb[0].mxu0
        %v2062 = vadd.f32 0.0, %v2061
        %v2063 = vpop.f32.mrb[0].mxu0
        %v2064 = vpop.f32.mrb[0].mxu0
        %v2065 = vadd.f32 0.0, %v2064
        %v2066 = vpop.f32.mrb[0].mxu0
        %2067 = vmatprep.mubr.bf16.mxu0 %v963
        %2068 = vmatmul.mubr.bf16.gmra.mrb[0].mxu0 %v962
        %v2069 = vpop.f32.mrb[0].mxu0
        %v2070 = vadd.f32 0.0, %v2069
        %v2071 = vpop.f32.mrb[0].mxu0
        %v2072 = vpop.f32.mrb[0].mxu0
        %v2073 = vadd.f32 0.0, %v2072
        %v2074 = vpop.f32.mrb[0].mxu0
        %2075 = vmatprep.mubr.bf16.mxu0 %v973
        %2076 = vmatmul.mubr.bf16.gmra.mrb[0].mxu0 %v972
        %v2077 = vpop.f32.mrb[0].mxu0
        %v2078 = vadd.f32 0.0, %v2077
        %v2079 = vpop.f32.mrb[0].mxu0
        %v2080 = vpop.f32.mrb[0].mxu0
        %v2081 = vadd.f32 0.0, %v2080
        %v2082 = vpop.f32.mrb[0].mxu0
        %2083 = vmatprep.mubr.bf16.mxu0 %v983
        %2084 = vmatmul.mubr.bf16.gmra.mrb[0].mxu0 %v982
        %v2085 = vpop.f32.mrb[0].mxu0
        %v2086 = vadd.f32 0.0, %v2085
        %v2087 = vpop.f32.mrb[0].mxu0
        %v2088 = vpop.f32.mrb[0].mxu0
        %v2089 = vadd.f32 0.0, %v2088
        %v2090 = vpop.f32.mrb[0].mxu0
        %2091 = vmatprep.mubr.bf16.mxu0 %v993
        %2092 = vmatmul.mubr.bf16.gmra.mrb[0].mxu0 %v992
        %v2093 = vpop.f32.mrb[0].mxu0
        %v2094 = vadd.f32 0.0, %v2093
        %v2095 = vpop.f32.mrb[0].mxu0
        %v2096 = vpop.f32.mrb[0].mxu0
        %v2097 = vadd.f32 0.0, %v2096
        %v2098 = vpop.f32.mrb[0].mxu0
        %2099 = vmatprep.mubr.bf16.mxu0 %v1003
        %2100 = vmatmul.mubr.bf16.gmra.mrb[0].mxu0 %v1002
        %v2101 = vpop.f32.mrb[0].mxu0
        %v2102 = vadd.f32 0.0, %v2101
        %v2103 = vpop.f32.mrb[0].mxu0
        %v2104 = vpop.f32.mrb[0].mxu0
        %v2105 = vadd.f32 0.0, %v2104
        %v2106 = vpop.f32.mrb[0].mxu0
        %2107 = vmatprep.mubr.bf16.mxu0 %v1013
        %2108 = vmatmul.mubr.bf16.gmra.mrb[0].mxu0 %v1012
        %v2109 = vpop.f32.mrb[0].mxu0
        %v2110 = vadd.f32 0.0, %v2109
        %v2111 = vpop.f32.mrb[0].mxu0
        %v2112 = vpop.f32.mrb[0].mxu0
        %v2113 = vadd.f32 0.0, %v2112
        %v2114 = vpop.f32.mrb[0].mxu0
        %2115 = vmatprep.mubr.bf16.mxu0 %v1023
        %2116 = vmatmul.mubr.bf16.gmra.mrb[0].mxu0 %v1022
        %v2117 = vpop.f32.mrb[0].mxu0
        %v2118 = vadd.f32 0.0, %v2117
        %v2119 = vpop.f32.mrb[0].mxu0
        %v2120 = vpop.f32.mrb[0].mxu0
        %v2121 = vadd.f32 0.0, %v2120
        %v2122 = vpop.f32.mrb[0].mxu0
        %2123 = vmatprep.mubr.bf16.mxu0 %v1033
        %2124 = vmatmul.mubr.bf16.gmra.mrb[0].mxu0 %v1032
        %v2125 = vpop.f32.mrb[0].mxu0
        %v2126 = vadd.f32 0.0, %v2125
        %v2127 = vpop.f32.mrb[0].mxu0
        %v2128 = vpop.f32.mrb[0].mxu0
        %v2129 = vadd.f32 0.0, %v2128
        %v2130 = vpop.f32.mrb[0].mxu0
        %2131 = vmatprep.mubr.bf16.mxu0 %v1043
        %2132 = vmatmul.mubr.bf16.gmra.mrb[0].mxu0 %v1042
        %v2133 = vpop.f32.mrb[0].mxu0
        %v2134 = vadd.f32 0.0, %v2133
        %v2135 = vpop.f32.mrb[0].mxu0
        %v2136 = vpop.f32.mrb[0].mxu0
        %v2137 = vadd.f32 0.0, %v2136
        %v2138 = vpop.f32.mrb[0].mxu0
        %2139 = vmatprep.mubr.bf16.mxu0 %v1053
        %2140 = vmatmul.mubr.bf16.gmra.mrb[0].mxu0 %v1052
        %v2141 = vpop.f32.mrb[0].mxu0
        %v2142 = vadd.f32 0.0, %v2141
        %v2143 = vpop.f32.mrb[0].mxu0
        %v2144 = vpop.f32.mrb[0].mxu0
        %v2145 = vadd.f32 0.0, %v2144
        %v2146 = vpop.f32.mrb[0].mxu0
        %2147 = vmatprep.mubr.bf16.mxu0 %v1063
        %2148 = vmatmul.mubr.bf16.gmra.mrb[0].mxu0 %v1062
        %v2149 = vpop.f32.mrb[0].mxu0
        %v2150 = vadd.f32 0.0, %v2149
        %v2151 = vpop.f32.mrb[0].mxu0
        %v2152 = vpop.f32.mrb[0].mxu0
        %v2153 = vadd.f32 0.0, %v2152
        %v2154 = vpop.f32.mrb[0].mxu0
        %2155 = vmatprep.mubr.bf16.mxu0 %v1073
        %2156 = vmatmul.mubr.bf16.gmra.mrb[0].mxu0 %v1072
        %v2157 = vpop.f32.mrb[0].mxu0
        %v2158 = vadd.f32 0.0, %v2157
        %v2159 = vpop.f32.mrb[0].mxu0
        %v2160 = vpop.f32.mrb[0].mxu0
        %v2161 = vadd.f32 0.0, %v2160
        %v2162 = vpop.f32.mrb[0].mxu0
        %2163 = vmatprep.mubr.bf16.mxu0 %v1083
        %2164 = vmatmul.mubr.bf16.gmra.mrb[0].mxu0 %v1082
        %v2165 = vpop.f32.mrb[0].mxu0
        %v2166 = vadd.f32 0.0, %v2165
        %v2167 = vpop.f32.mrb[0].mxu0
        %v2168 = vpop.f32.mrb[0].mxu0
        %v2169 = vadd.f32 0.0, %v2168
        %v2170 = vpop.f32.mrb[0].mxu0
        %2171 = vmatprep.mubr.bf16.mxu0 %v1093
        %2172 = vmatmul.mubr.bf16.gmra.mrb[0].mxu0 %v1092
        %v2173 = vpop.f32.mrb[0].mxu0
        %v2174 = vadd.f32 0.0, %v2173
        %v2175 = vpop.f32.mrb[0].mxu0
        %v2176 = vpop.f32.mrb[0].mxu0
        %v2177 = vadd.f32 0.0, %v2176
        %v2178 = vpop.f32.mrb[0].mxu0
        %2179 = vdwg.mxu0
        %2180 = vmatprep.subr.bf16.mxu0 0
        %2181 = vmatpush1.bf16.msra.mxu0 %v1683
        %2182 = vmatprep.subr.bf16.mxu0 0
        %2183 = vmatpush1.bf16.msra.mxu0 %v1684
        %2184 = vmatprep.subr.bf16.mxu0 0
        %2185 = vmatpush1.bf16.msra.mxu0 %v1685
        %2186 = vmatprep.subr.bf16.mxu0 0
        %2187 = vmatpush1.bf16.msra.mxu0 %v1686
        %2188 = vmatprep.subr.bf16.mxu0 0
        %2189 = vmatpush1.bf16.msra.mxu0 %v1687
        %2190 = vmatprep.subr.bf16.mxu0 0
        %2191 = vmatpush1.bf16.msra.mxu0 %v1688
        %2192 = vmatprep.subr.bf16.mxu0 0
        %2193 = vmatpush1.bf16.msra.mxu0 %v1689
        %2194 = vmatprep.subr.bf16.mxu0 0
        %2195 = vmatpush1.bf16.msra.mxu0 %v1690
        %2196 = vmatprep.subr.bf16.mxu0 0
        %2197 = vmatpush1.bf16.msra.mxu0 %v1691
        %2198 = vmatprep.subr.bf16.mxu0 0
        %2199 = vmatpush1.bf16.msra.mxu0 %v1692
        %2200 = vmatprep.subr.bf16.mxu0 0
        %2201 = vmatpush1.bf16.msra.mxu0 %v1693
        %2202 = vmatprep.subr.bf16.mxu0 0
        %2203 = vmatpush1.bf16.msra.mxu0 %v1694
        %2204 = vmatprep.subr.bf16.mxu0 0
        %2205 = vmatpush1.bf16.msra.mxu0 %v1695
        %2206 = vmatprep.subr.bf16.mxu0 0
        %2207 = vmatpush1.bf16.msra.mxu0 %v1696
        %2208 = vmatprep.subr.bf16.mxu0 0
        %2209 = vmatpush1.bf16.msra.mxu0 %v1697
        %2210 = vmatprep.subr.bf16.mxu0 0
        %2211 = vmatpush1.bf16.msra.mxu0 %v1698
        %2212 = vmatprep.mubr.bf16.mxu0 %v705
        %2213 = vmatmul.mubr.bf16.gmra.mrb[0].mxu0 %v704
        %v2214 = vpop.f32.mrb[0].mxu0
        %v2215 = vadd.f32 %v1862, %v2214
        %v2216 = vpop.f32.mrb[0].mxu0
        %v2217 = vpop.f32.mrb[0].mxu0
        %v2218 = vadd.f32 %v1865, %v2217
        %v2219 = vpop.f32.mrb[0].mxu0
        %2220 = vmatprep.mubr.bf16.mxu0 %v715
        %2221 = vmatmul.mubr.bf16.gmra.mrb[0].mxu0 %v714
        %v2222 = vpop.f32.mrb[0].mxu0
        %v2223 = vadd.f32 %v1870, %v2222
        %v2224 = vpop.f32.mrb[0].mxu0
        %v2225 = vpop.f32.mrb[0].mxu0
        %v2226 = vadd.f32 %v1873, %v2225
        %v2227 = vpop.f32.mrb[0].mxu0
        %2228 = vmatprep.mubr.bf16.mxu0 %v725
        %2229 = vmatmul.mubr.bf16.gmra.mrb[0].mxu0 %v724
        %v2230 = vpop.f32.mrb[0].mxu0
        %v2231 = vadd.f32 %v1878, %v2230
        %v2232 = vpop.f32.mrb[0].mxu0
        %v2233 = vpop.f32.mrb[0].mxu0
        %v2234 = vadd.f32 %v1881, %v2233
        %v2235 = vpop.f32.mrb[0].mxu0
        %2236 = vmatprep.mubr.bf16.mxu0 %v735
        %2237 = vmatmul.mubr.bf16.gmra.mrb[0].mxu0 %v734
        %v2238 = vpop.f32.mrb[0].mxu0
        %v2239 = vadd.f32 %v1886, %v2238
        %v2240 = vpop.f32.mrb[0].mxu0
        %v2241 = vpop.f32.mrb[0].mxu0
        %v2242 = vadd.f32 %v1889, %v2241
        %v2243 = vpop.f32.mrb[0].mxu0
        %2244 = vmatprep.mubr.bf16.mxu0 %v745
        %2245 = vmatmul.mubr.bf16.gmra.mrb[0].mxu0 %v744
        %v2246 = vpop.f32.mrb[0].mxu0
        %v2247 = vadd.f32 %v1894, %v2246
        %v2248 = vpop.f32.mrb[0].mxu0
        %v2249 = vpop.f32.mrb[0].mxu0
        %v2250 = vadd.f32 %v1897, %v2249
        %v2251 = vpop.f32.mrb[0].mxu0
        %2252 = vmatprep.mubr.bf16.mxu0 %v755
        %2253 = vmatmul.mubr.bf16.gmra.mrb[0].mxu0 %v754
        %v2254 = vpop.f32.mrb[0].mxu0
        %v2255 = vadd.f32 %v1902, %v2254
        %v2256 = vpop.f32.mrb[0].mxu0
        %v2257 = vpop.f32.mrb[0].mxu0
        %v2258 = vadd.f32 %v1905, %v2257
        %v2259 = vpop.f32.mrb[0].mxu0
        %2260 = vmatprep.mubr.bf16.mxu0 %v765
        %2261 = vmatmul.mubr.bf16.gmra.mrb[0].mxu0 %v764
        %v2262 = vpop.f32.mrb[0].mxu0
        %v2263 = vadd.f32 %v1910, %v2262
        %v2264 = vpop.f32.mrb[0].mxu0
        %v2265 = vpop.f32.mrb[0].mxu0
        %v2266 = vadd.f32 %v1913, %v2265
        %v2267 = vpop.f32.mrb[0].mxu0
        %2268 = vmatprep.mubr.bf16.mxu0 %v775
        %2269 = vmatmul.mubr.bf16.gmra.mrb[0].mxu0 %v774
        %v2270 = vpop.f32.mrb[0].mxu0
        %v2271 = vadd.f32 %v1918, %v2270
        %v2272 = vpop.f32.mrb[0].mxu0
        %v2273 = vpop.f32.mrb[0].mxu0
        %v2274 = vadd.f32 %v1921, %v2273
        %v2275 = vpop.f32.mrb[0].mxu0
        %2276 = vmatprep.mubr.bf16.mxu0 %v785
        %2277 = vmatmul.mubr.bf16.gmra.mrb[0].mxu0 %v784
        %v2278 = vpop.f32.mrb[0].mxu0
        %v2279 = vadd.f32 %v1926, %v2278
        %v2280 = vpop.f32.mrb[0].mxu0
        %v2281 = vpop.f32.mrb[0].mxu0
        %v2282 = vadd.f32 %v1929, %v2281
        %v2283 = vpop.f32.mrb[0].mxu0
        %2284 = vmatprep.mubr.bf16.mxu0 %v795
        %2285 = vmatmul.mubr.bf16.gmra.mrb[0].mxu0 %v794
        %v2286 = vpop.f32.mrb[0].mxu0
        %v2287 = vadd.f32 %v1934, %v2286
        %v2288 = vpop.f32.mrb[0].mxu0
        %v2289 = vpop.f32.mrb[0].mxu0
        %v2290 = vadd.f32 %v1937, %v2289
        %v2291 = vpop.f32.mrb[0].mxu0
        %2292 = vmatprep.mubr.bf16.mxu0 %v805
        %2293 = vmatmul.mubr.bf16.gmra.mrb[0].mxu0 %v804
        %v2294 = vpop.f32.mrb[0].mxu0
        %v2295 = vadd.f32 %v1942, %v2294
        %v2296 = vpop.f32.mrb[0].mxu0
        %v2297 = vpop.f32.mrb[0].mxu0
        %v2298 = vadd.f32 %v1945, %v2297
        %v2299 = vpop.f32.mrb[0].mxu0
        %2300 = vmatprep.mubr.bf16.mxu0 %v815
        %2301 = vmatmul.mubr.bf16.gmra.mrb[0].mxu0 %v814
        %v2302 = vpop.f32.mrb[0].mxu0
        %v2303 = vadd.f32 %v1950, %v2302
        %v2304 = vpop.f32.mrb[0].mxu0
        %v2305 = vpop.f32.mrb[0].mxu0
        %v2306 = vadd.f32 %v1953, %v2305
        %v2307 = vpop.f32.mrb[0].mxu0
        %2308 = vmatprep.mubr.bf16.mxu0 %v825
        %2309 = vmatmul.mubr.bf16.gmra.mrb[0].mxu0 %v824
        %v2310 = vpop.f32.mrb[0].mxu0
        %v2311 = vadd.f32 %v1958, %v2310
        %v2312 = vpop.f32.mrb[0].mxu0
        %v2313 = vpop.f32.mrb[0].mxu0
        %v2314 = vadd.f32 %v1961, %v2313
        %v2315 = vpop.f32.mrb[0].mxu0
        %2316 = vmatprep.mubr.bf16.mxu0 %v835
        %2317 = vmatmul.mubr.bf16.gmra.mrb[0].mxu0 %v834
        %v2318 = vpop.f32.mrb[0].mxu0
        %v2319 = vadd.f32 %v1966, %v2318
        %v2320 = vpop.f32.mrb[0].mxu0
        %v2321 = vpop.f32.mrb[0].mxu0
        %v2322 = vadd.f32 %v1969, %v2321
        %v2323 = vpop.f32.mrb[0].mxu0
        %2324 = vmatprep.mubr.bf16.mxu0 %v845
        %2325 = vmatmul.mubr.bf16.gmra.mrb[0].mxu0 %v844
        %v2326 = vpop.f32.mrb[0].mxu0
        %v2327 = vadd.f32 %v1974, %v2326
        %v2328 = vpop.f32.mrb[0].mxu0
        %v2329 = vpop.f32.mrb[0].mxu0
        %v2330 = vadd.f32 %v1977, %v2329
        %v2331 = vpop.f32.mrb[0].mxu0
        %2332 = vmatprep.mubr.bf16.mxu0 %v855
        %2333 = vmatmul.mubr.bf16.gmra.mrb[0].mxu0 %v854
        %v2334 = vpop.f32.mrb[0].mxu0
        %v2335 = vadd.f32 %v1982, %v2334
        %v2336 = vpop.f32.mrb[0].mxu0
        %v2337 = vpop.f32.mrb[0].mxu0
        %v2338 = vadd.f32 %v1985, %v2337
        %v2339 = vpop.f32.mrb[0].mxu0
        %2340 = vmatprep.mubr.bf16.mxu0 %v865
        %2341 = vmatmul.mubr.bf16.gmra.mrb[0].mxu0 %v864
        %v2342 = vpop.f32.mrb[0].mxu0
        %v2343 = vadd.f32 %v1990, %v2342
        %v2344 = vpop.f32.mrb[0].mxu0
        %v2345 = vpop.f32.mrb[0].mxu0
        %v2346 = vadd.f32 %v1993, %v2345
        %v2347 = vpop.f32.mrb[0].mxu0
        %2348 = vmatprep.mubr.bf16.mxu0 %v875
        %2349 = vmatmul.mubr.bf16.gmra.mrb[0].mxu0 %v874
        %v2350 = vpop.f32.mrb[0].mxu0
        %v2351 = vadd.f32 %v1998, %v2350
        %v2352 = vpop.f32.mrb[0].mxu0
        %v2353 = vpop.f32.mrb[0].mxu0
        %v2354 = vadd.f32 %v2001, %v2353
        %v2355 = vpop.f32.mrb[0].mxu0
        %2356 = vmatprep.mubr.bf16.mxu0 %v885
        %2357 = vmatmul.mubr.bf16.gmra.mrb[0].mxu0 %v884
        %v2358 = vpop.f32.mrb[0].mxu0
        %v2359 = vadd.f32 %v2006, %v2358
        %v2360 = vpop.f32.mrb[0].mxu0
        %v2361 = vpop.f32.mrb[0].mxu0
        %v2362 = vadd.f32 %v2009, %v2361
        %v2363 = vpop.f32.mrb[0].mxu0
        %2364 = vmatprep.mubr.bf16.mxu0 %v895
        %2365 = vmatmul.mubr.bf16.gmra.mrb[0].mxu0 %v894
        %v2366 = vpop.f32.mrb[0].mxu0
        %v2367 = vadd.f32 %v2014, %v2366
        %v2368 = vpop.f32.mrb[0].mxu0
        %v2369 = vpop.f32.mrb[0].mxu0
        %v2370 = vadd.f32 %v2017, %v2369
        %v2371 = vpop.f32.mrb[0].mxu0
        %2372 = vmatprep.mubr.bf16.mxu0 %v905
        %2373 = vmatmul.mubr.bf16.gmra.mrb[0].mxu0 %v904
        %v2374 = vpop.f32.mrb[0].mxu0
        %v2375 = vadd.f32 %v2022, %v2374
        %v2376 = vpop.f32.mrb[0].mxu0
        %v2377 = vpop.f32.mrb[0].mxu0
        %v2378 = vadd.f32 %v2025, %v2377
        %v2379 = vpop.f32.mrb[0].mxu0
        %2380 = vmatprep.mubr.bf16.mxu0 %v915
        %2381 = vmatmul.mubr.bf16.gmra.mrb[0].mxu0 %v914
        %v2382 = vpop.f32.mrb[0].mxu0
        %v2383 = vadd.f32 %v2030, %v2382
        %v2384 = vpop.f32.mrb[0].mxu0
        %v2385 = vpop.f32.mrb[0].mxu0
        %v2386 = vadd.f32 %v2033, %v2385
        %v2387 = vpop.f32.mrb[0].mxu0
        %2388 = vmatprep.mubr.bf16.mxu0 %v925
        %2389 = vmatmul.mubr.bf16.gmra.mrb[0].mxu0 %v924
        %v2390 = vpop.f32.mrb[0].mxu0
        %v2391 = vadd.f32 %v2038, %v2390
        %v2392 = vpop.f32.mrb[0].mxu0
        %v2393 = vpop.f32.mrb[0].mxu0
        %v2394 = vadd.f32 %v2041, %v2393
        %v2395 = vpop.f32.mrb[0].mxu0
        %2396 = vmatprep.mubr.bf16.mxu0 %v935
        %2397 = vmatmul.mubr.bf16.gmra.mrb[0].mxu0 %v934
        %v2398 = vpop.f32.mrb[0].mxu0
        %v2399 = vadd.f32 %v2046, %v2398
        %v2400 = vpop.f32.mrb[0].mxu0
        %v2401 = vpop.f32.mrb[0].mxu0
        %v2402 = vadd.f32 %v2049, %v2401
        %v2403 = vpop.f32.mrb[0].mxu0
        %2404 = vmatprep.mubr.bf16.mxu0 %v945
        %2405 = vmatmul.mubr.bf16.gmra.mrb[0].mxu0 %v944
        %v2406 = vpop.f32.mrb[0].mxu0
        %v2407 = vadd.f32 %v2054, %v2406
        %v2408 = vpop.f32.mrb[0].mxu0
        %v2409 = vpop.f32.mrb[0].mxu0
        %v2410 = vadd.f32 %v2057, %v2409
        %v2411 = vpop.f32.mrb[0].mxu0
        %2412 = vmatprep.mubr.bf16.mxu0 %v955
        %2413 = vmatmul.mubr.bf16.gmra.mrb[0].mxu0 %v954
        %v2414 = vpop.f32.mrb[0].mxu0
        %v2415 = vadd.f32 %v2062, %v2414
        %v2416 = vpop.f32.mrb[0].mxu0
        %v2417 = vpop.f32.mrb[0].mxu0
        %v2418 = vadd.f32 %v2065, %v2417
        %v2419 = vpop.f32.mrb[0].mxu0
        %2420 = vmatprep.mubr.bf16.mxu0 %v965
        %2421 = vmatmul.mubr.bf16.gmra.mrb[0].mxu0 %v964
        %v2422 = vpop.f32.mrb[0].mxu0
        %v2423 = vadd.f32 %v2070, %v2422
        %v2424 = vpop.f32.mrb[0].mxu0
        %v2425 = vpop.f32.mrb[0].mxu0
        %v2426 = vadd.f32 %v2073, %v2425
        %v2427 = vpop.f32.mrb[0].mxu0
        %2428 = vmatprep.mubr.bf16.mxu0 %v975
        %2429 = vmatmul.mubr.bf16.gmra.mrb[0].mxu0 %v974
        %v2430 = vpop.f32.mrb[0].mxu0
        %v2431 = vadd.f32 %v2078, %v2430
        %v2432 = vpop.f32.mrb[0].mxu0
        %v2433 = vpop.f32.mrb[0].mxu0
        %v2434 = vadd.f32 %v2081, %v2433
        %v2435 = vpop.f32.mrb[0].mxu0
        %2436 = vmatprep.mubr.bf16.mxu0 %v985
        %2437 = vmatmul.mubr.bf16.gmra.mrb[0].mxu0 %v984
        %v2438 = vpop.f32.mrb[0].mxu0
        %v2439 = vadd.f32 %v2086, %v2438
        %v2440 = vpop.f32.mrb[0].mxu0
        %v2441 = vpop.f32.mrb[0].mxu0
        %v2442 = vadd.f32 %v2089, %v2441
        %v2443 = vpop.f32.mrb[0].mxu0
        %2444 = vmatprep.mubr.bf16.mxu0 %v995
        %2445 = vmatmul.mubr.bf16.gmra.mrb[0].mxu0 %v994
        %v2446 = vpop.f32.mrb[0].mxu0
        %v2447 = vadd.f32 %v2094, %v2446
        %v2448 = vpop.f32.mrb[0].mxu0
        %v2449 = vpop.f32.mrb[0].mxu0
        %v2450 = vadd.f32 %v2097, %v2449
        %v2451 = vpop.f32.mrb[0].mxu0
        %2452 = vmatprep.mubr.bf16.mxu0 %v1005
        %2453 = vmatmul.mubr.bf16.gmra.mrb[0].mxu0 %v1004
        %v2454 = vpop.f32.mrb[0].mxu0
        %v2455 = vadd.f32 %v2102, %v2454
        %v2456 = vpop.f32.mrb[0].mxu0
        %v2457 = vpop.f32.mrb[0].mxu0
        %v2458 = vadd.f32 %v2105, %v2457
        %v2459 = vpop.f32.mrb[0].mxu0
        %2460 = vmatprep.mubr.bf16.mxu0 %v1015
        %2461 = vmatmul.mubr.bf16.gmra.mrb[0].mxu0 %v1014
        %v2462 = vpop.f32.mrb[0].mxu0
        %v2463 = vadd.f32 %v2110, %v2462
        %v2464 = vpop.f32.mrb[0].mxu0
        %v2465 = vpop.f32.mrb[0].mxu0
        %v2466 = vadd.f32 %v2113, %v2465
        %v2467 = vpop.f32.mrb[0].mxu0
        %2468 = vmatprep.mubr.bf16.mxu0 %v1025
        %2469 = vmatmul.mubr.bf16.gmra.mrb[0].mxu0 %v1024
        %v2470 = vpop.f32.mrb[0].mxu0
        %v2471 = vadd.f32 %v2118, %v2470
        %v2472 = vpop.f32.mrb[0].mxu0
        %v2473 = vpop.f32.mrb[0].mxu0
        %v2474 = vadd.f32 %v2121, %v2473
        %v2475 = vpop.f32.mrb[0].mxu0
        %2476 = vmatprep.mubr.bf16.mxu0 %v1035
        %2477 = vmatmul.mubr.bf16.gmra.mrb[0].mxu0 %v1034
        %v2478 = vpop.f32.mrb[0].mxu0
        %v2479 = vadd.f32 %v2126, %v2478
        %v2480 = vpop.f32.mrb[0].mxu0
        %v2481 = vpop.f32.mrb[0].mxu0
        %v2482 = vadd.f32 %v2129, %v2481
        %v2483 = vpop.f32.mrb[0].mxu0
        %2484 = vmatprep.mubr.bf16.mxu0 %v1045
        %2485 = vmatmul.mubr.bf16.gmra.mrb[0].mxu0 %v1044
        %v2486 = vpop.f32.mrb[0].mxu0
        %v2487 = vadd.f32 %v2134, %v2486
        %v2488 = vpop.f32.mrb[0].mxu0
        %v2489 = vpop.f32.mrb[0].mxu0
        %v2490 = vadd.f32 %v2137, %v2489
        %v2491 = vpop.f32.mrb[0].mxu0
        %2492 = vmatprep.mubr.bf16.mxu0 %v1055
        %2493 = vmatmul.mubr.bf16.gmra.mrb[0].mxu0 %v1054
        %v2494 = vpop.f32.mrb[0].mxu0
        %v2495 = vadd.f32 %v2142, %v2494
        %v2496 = vpop.f32.mrb[0].mxu0
        %v2497 = vpop.f32.mrb[0].mxu0
        %v2498 = vadd.f32 %v2145, %v2497
        %v2499 = vpop.f32.mrb[0].mxu0
        %2500 = vmatprep.mubr.bf16.mxu0 %v1065
        %2501 = vmatmul.mubr.bf16.gmra.mrb[0].mxu0 %v1064
        %v2502 = vpop.f32.mrb[0].mxu0
        %v2503 = vadd.f32 %v2150, %v2502
        %v2504 = vpop.f32.mrb[0].mxu0
        %v2505 = vpop.f32.mrb[0].mxu0
        %v2506 = vadd.f32 %v2153, %v2505
        %v2507 = vpop.f32.mrb[0].mxu0
        %2508 = vmatprep.mubr.bf16.mxu0 %v1075
        %2509 = vmatmul.mubr.bf16.gmra.mrb[0].mxu0 %v1074
        %v2510 = vpop.f32.mrb[0].mxu0
        %v2511 = vadd.f32 %v2158, %v2510
        %v2512 = vpop.f32.mrb[0].mxu0
        %v2513 = vpop.f32.mrb[0].mxu0
        %v2514 = vadd.f32 %v2161, %v2513
        %v2515 = vpop.f32.mrb[0].mxu0
        %2516 = vmatprep.mubr.bf16.mxu0 %v1085
        %2517 = vmatmul.mubr.bf16.gmra.mrb[0].mxu0 %v1084
        %v2518 = vpop.f32.mrb[0].mxu0
        %v2519 = vadd.f32 %v2166, %v2518
        %v2520 = vpop.f32.mrb[0].mxu0
        %v2521 = vpop.f32.mrb[0].mxu0
        %v2522 = vadd.f32 %v2169, %v2521
        %v2523 = vpop.f32.mrb[0].mxu0
        %2524 = vmatprep.mubr.bf16.mxu0 %v1095
        %2525 = vmatmul.mubr.bf16.gmra.mrb[0].mxu0 %v1094
        %v2526 = vpop.f32.mrb[0].mxu0
        %v2527 = vadd.f32 %v2174, %v2526
        %v2528 = vpop.f32.mrb[0].mxu0
        %v2529 = vpop.f32.mrb[0].mxu0
        %v2530 = vadd.f32 %v2177, %v2529
        %v2531 = vpop.f32.mrb[0].mxu0
        %2532 = vdwg.mxu0
        %2533 = vmatprep.subr.bf16.mxu0 0
        %2534 = vmatpush1.bf16.msra.mxu0 %v1699
        %2535 = vmatprep.subr.bf16.mxu0 0
        %2536 = vmatpush1.bf16.msra.mxu0 %v1700
        %2537 = vmatprep.subr.bf16.mxu0 0
        %2538 = vmatpush1.bf16.msra.mxu0 %v1701
        %2539 = vmatprep.subr.bf16.mxu0 0
        %2540 = vmatpush1.bf16.msra.mxu0 %v1702
        %2541 = vmatprep.subr.bf16.mxu0 0
        %2542 = vmatpush1.bf16.msra.mxu0 %v1703
        %2543 = vmatprep.subr.bf16.mxu0 0
        %2544 = vmatpush1.bf16.msra.mxu0 %v1704
        %2545 = vmatprep.subr.bf16.mxu0 0
        %2546 = vmatpush1.bf16.msra.mxu0 %v1705
        %2547 = vmatprep.subr.bf16.mxu0 0
        %2548 = vmatpush1.bf16.msra.mxu0 %v1706
        %2549 = vmatprep.subr.bf16.mxu0 0
        %2550 = vmatpush1.bf16.msra.mxu0 %v1707
        %2551 = vmatprep.subr.bf16.mxu0 0
        %2552 = vmatpush1.bf16.msra.mxu0 %v1708
        %2553 = vmatprep.subr.bf16.mxu0 0
        %2554 = vmatpush1.bf16.msra.mxu0 %v1709
        %2555 = vmatprep.subr.bf16.mxu0 0
        %2556 = vmatpush1.bf16.msra.mxu0 %v1710
        %2557 = vmatprep.subr.bf16.mxu0 0
        %2558 = vmatpush1.bf16.msra.mxu0 %v1711
        %2559 = vmatprep.subr.bf16.mxu0 0
        %2560 = vmatpush1.bf16.msra.mxu0 %v1712
        %2561 = vmatprep.subr.bf16.mxu0 0
        %2562 = vmatpush1.bf16.msra.mxu0 %v1713
        %2563 = vmatprep.subr.bf16.mxu0 0
        %2564 = vmatpush1.bf16.msra.mxu0 %v1714
        %2565 = vmatprep.mubr.bf16.mxu0 %v707
        %2566 = vmatmul.mubr.bf16.gmra.mrb[0].mxu0 %v706
        %v2567 = vpop.f32.mrb[0].mxu0
        %v2568 = vadd.f32 %v2215, %v2567
        %v2569 = vpop.f32.mrb[0].mxu0
        %v2570 = vpop.f32.mrb[0].mxu0
        %v2571 = vadd.f32 %v2218, %v2570
        %v2572 = vpop.f32.mrb[0].mxu0
        %2573 = vmatprep.mubr.bf16.mxu0 %v717
        %2574 = vmatmul.mubr.bf16.gmra.mrb[0].mxu0 %v716
        %v2575 = vpop.f32.mrb[0].mxu0
        %v2576 = vadd.f32 %v2223, %v2575
        %v2577 = vpop.f32.mrb[0].mxu0
        %v2578 = vpop.f32.mrb[0].mxu0
        %v2579 = vadd.f32 %v2226, %v2578
        %v2580 = vpop.f32.mrb[0].mxu0
        %2581 = vmatprep.mubr.bf16.mxu0 %v727
        %2582 = vmatmul.mubr.bf16.gmra.mrb[0].mxu0 %v726
        %v2583 = vpop.f32.mrb[0].mxu0
        %v2584 = vadd.f32 %v2231, %v2583
        %v2585 = vpop.f32.mrb[0].mxu0
        %v2586 = vpop.f32.mrb[0].mxu0
        %v2587 = vadd.f32 %v2234, %v2586
        %v2588 = vpop.f32.mrb[0].mxu0
        %2589 = vmatprep.mubr.bf16.mxu0 %v737
        %2590 = vmatmul.mubr.bf16.gmra.mrb[0].mxu0 %v736
        %v2591 = vpop.f32.mrb[0].mxu0
        %v2592 = vadd.f32 %v2239, %v2591
        %v2593 = vpop.f32.mrb[0].mxu0
        %v2594 = vpop.f32.mrb[0].mxu0
        %v2595 = vadd.f32 %v2242, %v2594
        %v2596 = vpop.f32.mrb[0].mxu0
        %2597 = vmatprep.mubr.bf16.mxu0 %v747
        %2598 = vmatmul.mubr.bf16.gmra.mrb[0].mxu0 %v746
        %v2599 = vpop.f32.mrb[0].mxu0
        %v2600 = vadd.f32 %v2247, %v2599
        %v2601 = vpop.f32.mrb[0].mxu0
        %v2602 = vpop.f32.mrb[0].mxu0
        %v2603 = vadd.f32 %v2250, %v2602
        %v2604 = vpop.f32.mrb[0].mxu0
        %2605 = vmatprep.mubr.bf16.mxu0 %v757
        %2606 = vmatmul.mubr.bf16.gmra.mrb[0].mxu0 %v756
        %v2607 = vpop.f32.mrb[0].mxu0
        %v2608 = vadd.f32 %v2255, %v2607
        %v2609 = vpop.f32.mrb[0].mxu0
        %v2610 = vpop.f32.mrb[0].mxu0
        %v2611 = vadd.f32 %v2258, %v2610
        %v2612 = vpop.f32.mrb[0].mxu0
        %2613 = vmatprep.mubr.bf16.mxu0 %v767
        %2614 = vmatmul.mubr.bf16.gmra.mrb[0].mxu0 %v766
        %v2615 = vpop.f32.mrb[0].mxu0
        %v2616 = vadd.f32 %v2263, %v2615
        %v2617 = vpop.f32.mrb[0].mxu0
        %v2618 = vpop.f32.mrb[0].mxu0
        %v2619 = vadd.f32 %v2266, %v2618
        %v2620 = vpop.f32.mrb[0].mxu0
        %2621 = vmatprep.mubr.bf16.mxu0 %v777
        %2622 = vmatmul.mubr.bf16.gmra.mrb[0].mxu0 %v776
        %v2623 = vpop.f32.mrb[0].mxu0
        %v2624 = vadd.f32 %v2271, %v2623
        %v2625 = vpop.f32.mrb[0].mxu0
        %v2626 = vpop.f32.mrb[0].mxu0
        %v2627 = vadd.f32 %v2274, %v2626
        %v2628 = vpop.f32.mrb[0].mxu0
        %2629 = vmatprep.mubr.bf16.mxu0 %v787
        %2630 = vmatmul.mubr.bf16.gmra.mrb[0].mxu0 %v786
        %v2631 = vpop.f32.mrb[0].mxu0
        %v2632 = vadd.f32 %v2279, %v2631
        %v2633 = vpop.f32.mrb[0].mxu0
        %v2634 = vpop.f32.mrb[0].mxu0
        %v2635 = vadd.f32 %v2282, %v2634
        %v2636 = vpop.f32.mrb[0].mxu0
        %2637 = vmatprep.mubr.bf16.mxu0 %v797
        %2638 = vmatmul.mubr.bf16.gmra.mrb[0].mxu0 %v796
        %v2639 = vpop.f32.mrb[0].mxu0
        %v2640 = vadd.f32 %v2287, %v2639
        %v2641 = vpop.f32.mrb[0].mxu0
        %v2642 = vpop.f32.mrb[0].mxu0
        %v2643 = vadd.f32 %v2290, %v2642
        %v2644 = vpop.f32.mrb[0].mxu0
        %2645 = vmatprep.mubr.bf16.mxu0 %v807
        %2646 = vmatmul.mubr.bf16.gmra.mrb[0].mxu0 %v806
        %v2647 = vpop.f32.mrb[0].mxu0
        %v2648 = vadd.f32 %v2295, %v2647
        %v2649 = vpop.f32.mrb[0].mxu0
        %v2650 = vpop.f32.mrb[0].mxu0
        %v2651 = vadd.f32 %v2298, %v2650
        %v2652 = vpop.f32.mrb[0].mxu0
        %2653 = vmatprep.mubr.bf16.mxu0 %v817
        %2654 = vmatmul.mubr.bf16.gmra.mrb[0].mxu0 %v816
        %v2655 = vpop.f32.mrb[0].mxu0
        %v2656 = vadd.f32 %v2303, %v2655
        %v2657 = vpop.f32.mrb[0].mxu0
        %v2658 = vpop.f32.mrb[0].mxu0
        %v2659 = vadd.f32 %v2306, %v2658
        %v2660 = vpop.f32.mrb[0].mxu0
        %2661 = vmatprep.mubr.bf16.mxu0 %v827
        %2662 = vmatmul.mubr.bf16.gmra.mrb[0].mxu0 %v826
        %v2663 = vpop.f32.mrb[0].mxu0
        %v2664 = vadd.f32 %v2311, %v2663
        %v2665 = vpop.f32.mrb[0].mxu0
        %v2666 = vpop.f32.mrb[0].mxu0
        %v2667 = vadd.f32 %v2314, %v2666
        %v2668 = vpop.f32.mrb[0].mxu0
        %2669 = vmatprep.mubr.bf16.mxu0 %v837
        %2670 = vmatmul.mubr.bf16.gmra.mrb[0].mxu0 %v836
        %v2671 = vpop.f32.mrb[0].mxu0
        %v2672 = vadd.f32 %v2319, %v2671
        %v2673 = vpop.f32.mrb[0].mxu0
        %v2674 = vpop.f32.mrb[0].mxu0
        %v2675 = vadd.f32 %v2322, %v2674
        %v2676 = vpop.f32.mrb[0].mxu0
        %2677 = vmatprep.mubr.bf16.mxu0 %v847
        %2678 = vmatmul.mubr.bf16.gmra.mrb[0].mxu0 %v846
        %v2679 = vpop.f32.mrb[0].mxu0
        %v2680 = vadd.f32 %v2327, %v2679
        %v2681 = vpop.f32.mrb[0].mxu0
        %v2682 = vpop.f32.mrb[0].mxu0
        %v2683 = vadd.f32 %v2330, %v2682
        %v2684 = vpop.f32.mrb[0].mxu0
        %2685 = vmatprep.mubr.bf16.mxu0 %v857
        %2686 = vmatmul.mubr.bf16.gmra.mrb[0].mxu0 %v856
        %v2687 = vpop.f32.mrb[0].mxu0
        %v2688 = vadd.f32 %v2335, %v2687
        %v2689 = vpop.f32.mrb[0].mxu0
        %v2690 = vpop.f32.mrb[0].mxu0
        %v2691 = vadd.f32 %v2338, %v2690
        %v2692 = vpop.f32.mrb[0].mxu0
        %2693 = vmatprep.mubr.bf16.mxu0 %v867
        %2694 = vmatmul.mubr.bf16.gmra.mrb[0].mxu0 %v866
        %v2695 = vpop.f32.mrb[0].mxu0
        %v2696 = vadd.f32 %v2343, %v2695
        %v2697 = vpop.f32.mrb[0].mxu0
        %v2698 = vpop.f32.mrb[0].mxu0
        %v2699 = vadd.f32 %v2346, %v2698
        %v2700 = vpop.f32.mrb[0].mxu0
        %2701 = vmatprep.mubr.bf16.mxu0 %v877
        %2702 = vmatmul.mubr.bf16.gmra.mrb[0].mxu0 %v876
        %v2703 = vpop.f32.mrb[0].mxu0
        %v2704 = vadd.f32 %v2351, %v2703
        %v2705 = vpop.f32.mrb[0].mxu0
        %v2706 = vpop.f32.mrb[0].mxu0
        %v2707 = vadd.f32 %v2354, %v2706
        %v2708 = vpop.f32.mrb[0].mxu0
        %2709 = vmatprep.mubr.bf16.mxu0 %v887
        %2710 = vmatmul.mubr.bf16.gmra.mrb[0].mxu0 %v886
        %v2711 = vpop.f32.mrb[0].mxu0
        %v2712 = vadd.f32 %v2359, %v2711
        %v2713 = vpop.f32.mrb[0].mxu0
        %v2714 = vpop.f32.mrb[0].mxu0
        %v2715 = vadd.f32 %v2362, %v2714
        %v2716 = vpop.f32.mrb[0].mxu0
        %2717 = vmatprep.mubr.bf16.mxu0 %v897
        %2718 = vmatmul.mubr.bf16.gmra.mrb[0].mxu0 %v896
        %v2719 = vpop.f32.mrb[0].mxu0
        %v2720 = vadd.f32 %v2367, %v2719
        %v2721 = vpop.f32.mrb[0].mxu0
        %v2722 = vpop.f32.mrb[0].mxu0
        %v2723 = vadd.f32 %v2370, %v2722
        %v2724 = vpop.f32.mrb[0].mxu0
        %2725 = vmatprep.mubr.bf16.mxu0 %v907
        %2726 = vmatmul.mubr.bf16.gmra.mrb[0].mxu0 %v906
        %v2727 = vpop.f32.mrb[0].mxu0
        %v2728 = vadd.f32 %v2375, %v2727
        %v2729 = vpop.f32.mrb[0].mxu0
        %v2730 = vpop.f32.mrb[0].mxu0
        %v2731 = vadd.f32 %v2378, %v2730
        %v2732 = vpop.f32.mrb[0].mxu0
        %2733 = vmatprep.mubr.bf16.mxu0 %v917
        %2734 = vmatmul.mubr.bf16.gmra.mrb[0].mxu0 %v916
        %v2735 = vpop.f32.mrb[0].mxu0
        %v2736 = vadd.f32 %v2383, %v2735
        %v2737 = vpop.f32.mrb[0].mxu0
        %v2738 = vpop.f32.mrb[0].mxu0
        %v2739 = vadd.f32 %v2386, %v2738
        %v2740 = vpop.f32.mrb[0].mxu0
        %2741 = vmatprep.mubr.bf16.mxu0 %v927
        %2742 = vmatmul.mubr.bf16.gmra.mrb[0].mxu0 %v926
        %v2743 = vpop.f32.mrb[0].mxu0
        %v2744 = vadd.f32 %v2391, %v2743
        %v2745 = vpop.f32.mrb[0].mxu0
        %v2746 = vpop.f32.mrb[0].mxu0
        %v2747 = vadd.f32 %v2394, %v2746
        %v2748 = vpop.f32.mrb[0].mxu0
        %2749 = vmatprep.mubr.bf16.mxu0 %v937
        %2750 = vmatmul.mubr.bf16.gmra.mrb[0].mxu0 %v936
        %v2751 = vpop.f32.mrb[0].mxu0
        %v2752 = vadd.f32 %v2399, %v2751
        %v2753 = vpop.f32.mrb[0].mxu0
        %v2754 = vpop.f32.mrb[0].mxu0
        %v2755 = vadd.f32 %v2402, %v2754
        %v2756 = vpop.f32.mrb[0].mxu0
        %2757 = vmatprep.mubr.bf16.mxu0 %v947
        %2758 = vmatmul.mubr.bf16.gmra.mrb[0].mxu0 %v946
        %v2759 = vpop.f32.mrb[0].mxu0
        %v2760 = vadd.f32 %v2407, %v2759
        %v2761 = vpop.f32.mrb[0].mxu0
        %v2762 = vpop.f32.mrb[0].mxu0
        %v2763 = vadd.f32 %v2410, %v2762
        %v2764 = vpop.f32.mrb[0].mxu0
        %2765 = vmatprep.mubr.bf16.mxu0 %v957
        %2766 = vmatmul.mubr.bf16.gmra.mrb[0].mxu0 %v956
        %v2767 = vpop.f32.mrb[0].mxu0
        %v2768 = vadd.f32 %v2415, %v2767
        %v2769 = vpop.f32.mrb[0].mxu0
        %v2770 = vpop.f32.mrb[0].mxu0
        %v2771 = vadd.f32 %v2418, %v2770
        %v2772 = vpop.f32.mrb[0].mxu0
        %2773 = vmatprep.mubr.bf16.mxu0 %v967
        %2774 = vmatmul.mubr.bf16.gmra.mrb[0].mxu0 %v966
        %v2775 = vpop.f32.mrb[0].mxu0
        %v2776 = vadd.f32 %v2423, %v2775
        %v2777 = vpop.f32.mrb[0].mxu0
        %v2778 = vpop.f32.mrb[0].mxu0
        %v2779 = vadd.f32 %v2426, %v2778
        %v2780 = vpop.f32.mrb[0].mxu0
        %2781 = vmatprep.mubr.bf16.mxu0 %v977
        %2782 = vmatmul.mubr.bf16.gmra.mrb[0].mxu0 %v976
        %v2783 = vpop.f32.mrb[0].mxu0
        %v2784 = vadd.f32 %v2431, %v2783
        %v2785 = vpop.f32.mrb[0].mxu0
        %v2786 = vpop.f32.mrb[0].mxu0
        %v2787 = vadd.f32 %v2434, %v2786
        %v2788 = vpop.f32.mrb[0].mxu0
        %2789 = vmatprep.mubr.bf16.mxu0 %v987
        %2790 = vmatmul.mubr.bf16.gmra.mrb[0].mxu0 %v986
        %v2791 = vpop.f32.mrb[0].mxu0
        %v2792 = vadd.f32 %v2439, %v2791
        %v2793 = vpop.f32.mrb[0].mxu0
        %v2794 = vpop.f32.mrb[0].mxu0
        %v2795 = vadd.f32 %v2442, %v2794
        %v2796 = vpop.f32.mrb[0].mxu0
        %2797 = vmatprep.mubr.bf16.mxu0 %v997
        %2798 = vmatmul.mubr.bf16.gmra.mrb[0].mxu0 %v996
        %v2799 = vpop.f32.mrb[0].mxu0
        %v2800 = vadd.f32 %v2447, %v2799
        %v2801 = vpop.f32.mrb[0].mxu0
        %v2802 = vpop.f32.mrb[0].mxu0
        %v2803 = vadd.f32 %v2450, %v2802
        %v2804 = vpop.f32.mrb[0].mxu0
        %2805 = vmatprep.mubr.bf16.mxu0 %v1007
        %2806 = vmatmul.mubr.bf16.gmra.mrb[0].mxu0 %v1006
        %v2807 = vpop.f32.mrb[0].mxu0
        %v2808 = vadd.f32 %v2455, %v2807
        %v2809 = vpop.f32.mrb[0].mxu0
        %v2810 = vpop.f32.mrb[0].mxu0
        %v2811 = vadd.f32 %v2458, %v2810
        %v2812 = vpop.f32.mrb[0].mxu0
        %2813 = vmatprep.mubr.bf16.mxu0 %v1017
        %2814 = vmatmul.mubr.bf16.gmra.mrb[0].mxu0 %v1016
        %v2815 = vpop.f32.mrb[0].mxu0
        %v2816 = vadd.f32 %v2463, %v2815
        %v2817 = vpop.f32.mrb[0].mxu0
        %v2818 = vpop.f32.mrb[0].mxu0
        %v2819 = vadd.f32 %v2466, %v2818
        %v2820 = vpop.f32.mrb[0].mxu0
        %2821 = vmatprep.mubr.bf16.mxu0 %v1027
        %2822 = vmatmul.mubr.bf16.gmra.mrb[0].mxu0 %v1026
        %v2823 = vpop.f32.mrb[0].mxu0
        %v2824 = vadd.f32 %v2471, %v2823
        %v2825 = vpop.f32.mrb[0].mxu0
        %v2826 = vpop.f32.mrb[0].mxu0
        %v2827 = vadd.f32 %v2474, %v2826
        %v2828 = vpop.f32.mrb[0].mxu0
        %2829 = vmatprep.mubr.bf16.mxu0 %v1037
        %2830 = vmatmul.mubr.bf16.gmra.mrb[0].mxu0 %v1036
        %v2831 = vpop.f32.mrb[0].mxu0
        %v2832 = vadd.f32 %v2479, %v2831
        %v2833 = vpop.f32.mrb[0].mxu0
        %v2834 = vpop.f32.mrb[0].mxu0
        %v2835 = vadd.f32 %v2482, %v2834
        %v2836 = vpop.f32.mrb[0].mxu0
        %2837 = vmatprep.mubr.bf16.mxu0 %v1047
        %2838 = vmatmul.mubr.bf16.gmra.mrb[0].mxu0 %v1046
        %v2839 = vpop.f32.mrb[0].mxu0
        %v2840 = vadd.f32 %v2487, %v2839
        %v2841 = vpop.f32.mrb[0].mxu0
        %v2842 = vpop.f32.mrb[0].mxu0
        %v2843 = vadd.f32 %v2490, %v2842
        %v2844 = vpop.f32.mrb[0].mxu0
        %2845 = vmatprep.mubr.bf16.mxu0 %v1057
        %2846 = vmatmul.mubr.bf16.gmra.mrb[0].mxu0 %v1056
        %v2847 = vpop.f32.mrb[0].mxu0
        %v2848 = vadd.f32 %v2495, %v2847
        %v2849 = vpop.f32.mrb[0].mxu0
        %v2850 = vpop.f32.mrb[0].mxu0
        %v2851 = vadd.f32 %v2498, %v2850
        %v2852 = vpop.f32.mrb[0].mxu0
        %2853 = vmatprep.mubr.bf16.mxu0 %v1067
        %2854 = vmatmul.mubr.bf16.gmra.mrb[0].mxu0 %v1066
        %v2855 = vpop.f32.mrb[0].mxu0
        %v2856 = vadd.f32 %v2503, %v2855
        %v2857 = vpop.f32.mrb[0].mxu0
        %v2858 = vpop.f32.mrb[0].mxu0
        %v2859 = vadd.f32 %v2506, %v2858
        %v2860 = vpop.f32.mrb[0].mxu0
        %2861 = vmatprep.mubr.bf16.mxu0 %v1077
        %2862 = vmatmul.mubr.bf16.gmra.mrb[0].mxu0 %v1076
        %v2863 = vpop.f32.mrb[0].mxu0
        %v2864 = vadd.f32 %v2511, %v2863
        %v2865 = vpop.f32.mrb[0].mxu0
        %v2866 = vpop.f32.mrb[0].mxu0
        %v2867 = vadd.f32 %v2514, %v2866
        %v2868 = vpop.f32.mrb[0].mxu0
        %2869 = vmatprep.mubr.bf16.mxu0 %v1087
        %2870 = vmatmul.mubr.bf16.gmra.mrb[0].mxu0 %v1086
        %v2871 = vpop.f32.mrb[0].mxu0
        %v2872 = vadd.f32 %v2519, %v2871
        %v2873 = vpop.f32.mrb[0].mxu0
        %v2874 = vpop.f32.mrb[0].mxu0
        %v2875 = vadd.f32 %v2522, %v2874
        %v2876 = vpop.f32.mrb[0].mxu0
        %2877 = vmatprep.mubr.bf16.mxu0 %v1097
        %2878 = vmatmul.mubr.bf16.gmra.mrb[0].mxu0 %v1096
        %v2879 = vpop.f32.mrb[0].mxu0
        %v2880 = vadd.f32 %v2527, %v2879
        %v2881 = vpop.f32.mrb[0].mxu0
        %v2882 = vpop.f32.mrb[0].mxu0
        %v2883 = vadd.f32 %v2530, %v2882
        %v2884 = vpop.f32.mrb[0].mxu0
        %2885 = vdwg.mxu0
        %2886 = vmatprep.subr.bf16.mxu0 0
        %2887 = vmatpush1.bf16.msra.mxu0 %v1715
        %2888 = vmatprep.subr.bf16.mxu0 0
        %2889 = vmatpush1.bf16.msra.mxu0 %v1716
        %2890 = vmatprep.subr.bf16.mxu0 0
        %2891 = vmatpush1.bf16.msra.mxu0 %v1717
        %2892 = vmatprep.subr.bf16.mxu0 0
        %2893 = vmatpush1.bf16.msra.mxu0 %v1718
        %2894 = vmatprep.subr.bf16.mxu0 0
        %2895 = vmatpush1.bf16.msra.mxu0 %v1719
        %2896 = vmatprep.subr.bf16.mxu0 0
        %2897 = vmatpush1.bf16.msra.mxu0 %v1720
        %2898 = vmatprep.subr.bf16.mxu0 0
        %2899 = vmatpush1.bf16.msra.mxu0 %v1721
        %2900 = vmatprep.subr.bf16.mxu0 0
        %2901 = vmatpush1.bf16.msra.mxu0 %v1722
        %2902 = vmatprep.subr.bf16.mxu0 0
        %2903 = vmatpush1.bf16.msra.mxu0 %v1723
        %2904 = vmatprep.subr.bf16.mxu0 0
        %2905 = vmatpush1.bf16.msra.mxu0 %v1724
        %2906 = vmatprep.subr.bf16.mxu0 0
        %2907 = vmatpush1.bf16.msra.mxu0 %v1725
        %2908 = vmatprep.subr.bf16.mxu0 0
        %2909 = vmatpush1.bf16.msra.mxu0 %v1726
        %2910 = vmatprep.subr.bf16.mxu0 0
        %2911 = vmatpush1.bf16.msra.mxu0 %v1727
        %2912 = vmatprep.subr.bf16.mxu0 0
        %2913 = vmatpush1.bf16.msra.mxu0 %v1728
        %2914 = vmatprep.subr.bf16.mxu0 0
        %2915 = vmatpush1.bf16.msra.mxu0 %v1729
        %2916 = vmatprep.subr.bf16.mxu0 0
        %2917 = vmatpush1.bf16.msra.mxu0 %v1730
        %2918 = vmatprep.mubr.bf16.mxu0 %v709
        %2919 = vmatmul.mubr.bf16.gmra.mrb[0].mxu0 %v708
        %v2920 = vpop.f32.mrb[0].mxu0
        %v2921 = vadd.f32 %v2568, %v2920
        %v2922 = vpop.f32.mrb[0].mxu0
        %v2923 = vpop.f32.mrb[0].mxu0
        %v2924 = vadd.f32 %v2571, %v2923
        %v2925 = vpop.f32.mrb[0].mxu0
        %2926 = vmatprep.mubr.bf16.mxu0 %v719
        %2927 = vmatmul.mubr.bf16.gmra.mrb[0].mxu0 %v718
        %v2928 = vpop.f32.mrb[0].mxu0
        %v2929 = vadd.f32 %v2576, %v2928
        %v2930 = vpop.f32.mrb[0].mxu0
        %v2931 = vpop.f32.mrb[0].mxu0
        %v2932 = vadd.f32 %v2579, %v2931
        %v2933 = vpop.f32.mrb[0].mxu0
        %2934 = vmatprep.mubr.bf16.mxu0 %v729
        %2935 = vmatmul.mubr.bf16.gmra.mrb[0].mxu0 %v728
        %v2936 = vpop.f32.mrb[0].mxu0
        %v2937 = vadd.f32 %v2584, %v2936
        %v2938 = vpop.f32.mrb[0].mxu0
        %v2939 = vpop.f32.mrb[0].mxu0
        %v2940 = vadd.f32 %v2587, %v2939
        %v2941 = vpop.f32.mrb[0].mxu0
        %2942 = vmatprep.mubr.bf16.mxu0 %v739
        %2943 = vmatmul.mubr.bf16.gmra.mrb[0].mxu0 %v738
        %v2944 = vpop.f32.mrb[0].mxu0
        %v2945 = vadd.f32 %v2592, %v2944
        %v2946 = vpop.f32.mrb[0].mxu0
        %v2947 = vpop.f32.mrb[0].mxu0
        %v2948 = vadd.f32 %v2595, %v2947
        %v2949 = vpop.f32.mrb[0].mxu0
        %2950 = vmatprep.mubr.bf16.mxu0 %v749
        %2951 = vmatmul.mubr.bf16.gmra.mrb[0].mxu0 %v748
        %v2952 = vpop.f32.mrb[0].mxu0
        %v2953 = vadd.f32 %v2600, %v2952
        %v2954 = vpop.f32.mrb[0].mxu0
        %v2955 = vpop.f32.mrb[0].mxu0
        %v2956 = vadd.f32 %v2603, %v2955
        %v2957 = vpop.f32.mrb[0].mxu0
        %2958 = vmatprep.mubr.bf16.mxu0 %v759
        %2959 = vmatmul.mubr.bf16.gmra.mrb[0].mxu0 %v758
        %v2960 = vpop.f32.mrb[0].mxu0
        %v2961 = vadd.f32 %v2608, %v2960
        %v2962 = vpop.f32.mrb[0].mxu0
        %v2963 = vpop.f32.mrb[0].mxu0
        %v2964 = vadd.f32 %v2611, %v2963
        %v2965 = vpop.f32.mrb[0].mxu0
        %2966 = vmatprep.mubr.bf16.mxu0 %v769
        %2967 = vmatmul.mubr.bf16.gmra.mrb[0].mxu0 %v768
        %v2968 = vpop.f32.mrb[0].mxu0
        %v2969 = vadd.f32 %v2616, %v2968
        %v2970 = vpop.f32.mrb[0].mxu0
        %v2971 = vpop.f32.mrb[0].mxu0
        %v2972 = vadd.f32 %v2619, %v2971
        %v2973 = vpop.f32.mrb[0].mxu0
        %2974 = vmatprep.mubr.bf16.mxu0 %v779
        %2975 = vmatmul.mubr.bf16.gmra.mrb[0].mxu0 %v778
        %v2976 = vpop.f32.mrb[0].mxu0
        %v2977 = vadd.f32 %v2624, %v2976
        %v2978 = vpop.f32.mrb[0].mxu0
        %v2979 = vpop.f32.mrb[0].mxu0
        %v2980 = vadd.f32 %v2627, %v2979
        %v2981 = vpop.f32.mrb[0].mxu0
        %2982 = vmatprep.mubr.bf16.mxu0 %v789
        %2983 = vmatmul.mubr.bf16.gmra.mrb[0].mxu0 %v788
        %v2984 = vpop.f32.mrb[0].mxu0
        %v2985 = vadd.f32 %v2632, %v2984
        %v2986 = vpop.f32.mrb[0].mxu0
        %v2987 = vpop.f32.mrb[0].mxu0
        %v2988 = vadd.f32 %v2635, %v2987
        %v2989 = vpop.f32.mrb[0].mxu0
        %2990 = vmatprep.mubr.bf16.mxu0 %v799
        %2991 = vmatmul.mubr.bf16.gmra.mrb[0].mxu0 %v798
        %v2992 = vpop.f32.mrb[0].mxu0
        %v2993 = vadd.f32 %v2640, %v2992
        %v2994 = vpop.f32.mrb[0].mxu0
        %v2995 = vpop.f32.mrb[0].mxu0
        %v2996 = vadd.f32 %v2643, %v2995
        %v2997 = vpop.f32.mrb[0].mxu0
        %2998 = vmatprep.mubr.bf16.mxu0 %v809
        %2999 = vmatmul.mubr.bf16.gmra.mrb[0].mxu0 %v808
        %v3000 = vpop.f32.mrb[0].mxu0
        %v3001 = vadd.f32 %v2648, %v3000
        %v3002 = vpop.f32.mrb[0].mxu0
        %v3003 = vpop.f32.mrb[0].mxu0
        %v3004 = vadd.f32 %v2651, %v3003
        %v3005 = vpop.f32.mrb[0].mxu0
        %3006 = vmatprep.mubr.bf16.mxu0 %v819
        %3007 = vmatmul.mubr.bf16.gmra.mrb[0].mxu0 %v818
        %v3008 = vpop.f32.mrb[0].mxu0
        %v3009 = vadd.f32 %v2656, %v3008
        %v3010 = vpop.f32.mrb[0].mxu0
        %v3011 = vpop.f32.mrb[0].mxu0
        %v3012 = vadd.f32 %v2659, %v3011
        %v3013 = vpop.f32.mrb[0].mxu0
        %3014 = vmatprep.mubr.bf16.mxu0 %v829
        %3015 = vmatmul.mubr.bf16.gmra.mrb[0].mxu0 %v828
        %v3016 = vpop.f32.mrb[0].mxu0
        %v3017 = vadd.f32 %v2664, %v3016
        %v3018 = vpop.f32.mrb[0].mxu0
        %v3019 = vpop.f32.mrb[0].mxu0
        %v3020 = vadd.f32 %v2667, %v3019
        %v3021 = vpop.f32.mrb[0].mxu0
        %3022 = vmatprep.mubr.bf16.mxu0 %v839
        %3023 = vmatmul.mubr.bf16.gmra.mrb[0].mxu0 %v838
        %v3024 = vpop.f32.mrb[0].mxu0
        %v3025 = vadd.f32 %v2672, %v3024
        %v3026 = vpop.f32.mrb[0].mxu0
        %v3027 = vpop.f32.mrb[0].mxu0
        %v3028 = vadd.f32 %v2675, %v3027
        %v3029 = vpop.f32.mrb[0].mxu0
        %3030 = vmatprep.mubr.bf16.mxu0 %v849
        %3031 = vmatmul.mubr.bf16.gmra.mrb[0].mxu0 %v848
        %v3032 = vpop.f32.mrb[0].mxu0
        %v3033 = vadd.f32 %v2680, %v3032
        %v3034 = vpop.f32.mrb[0].mxu0
        %v3035 = vpop.f32.mrb[0].mxu0
        %v3036 = vadd.f32 %v2683, %v3035
        %v3037 = vpop.f32.mrb[0].mxu0
        %3038 = vmatprep.mubr.bf16.mxu0 %v859
        %3039 = vmatmul.mubr.bf16.gmra.mrb[0].mxu0 %v858
        %v3040 = vpop.f32.mrb[0].mxu0
        %v3041 = vadd.f32 %v2688, %v3040
        %v3042 = vpop.f32.mrb[0].mxu0
        %v3043 = vpop.f32.mrb[0].mxu0
        %v3044 = vadd.f32 %v2691, %v3043
        %v3045 = vpop.f32.mrb[0].mxu0
        %3046 = vmatprep.mubr.bf16.mxu0 %v869
        %3047 = vmatmul.mubr.bf16.gmra.mrb[0].mxu0 %v868
        %v3048 = vpop.f32.mrb[0].mxu0
        %v3049 = vadd.f32 %v2696, %v3048
        %v3050 = vpop.f32.mrb[0].mxu0
        %v3051 = vpop.f32.mrb[0].mxu0
        %v3052 = vadd.f32 %v2699, %v3051
        %v3053 = vpop.f32.mrb[0].mxu0
        %3054 = vmatprep.mubr.bf16.mxu0 %v879
        %3055 = vmatmul.mubr.bf16.gmra.mrb[0].mxu0 %v878
        %v3056 = vpop.f32.mrb[0].mxu0
        %v3057 = vadd.f32 %v2704, %v3056
        %v3058 = vpop.f32.mrb[0].mxu0
        %v3059 = vpop.f32.mrb[0].mxu0
        %v3060 = vadd.f32 %v2707, %v3059
        %v3061 = vpop.f32.mrb[0].mxu0
        %3062 = vmatprep.mubr.bf16.mxu0 %v889
        %3063 = vmatmul.mubr.bf16.gmra.mrb[0].mxu0 %v888
        %v3064 = vpop.f32.mrb[0].mxu0
        %v3065 = vadd.f32 %v2712, %v3064
        %v3066 = vpop.f32.mrb[0].mxu0
        %v3067 = vpop.f32.mrb[0].mxu0
        %v3068 = vadd.f32 %v2715, %v3067
        %v3069 = vpop.f32.mrb[0].mxu0
        %3070 = vmatprep.mubr.bf16.mxu0 %v899
        %3071 = vmatmul.mubr.bf16.gmra.mrb[0].mxu0 %v898
        %v3072 = vpop.f32.mrb[0].mxu0
        %v3073 = vadd.f32 %v2720, %v3072
        %v3074 = vpop.f32.mrb[0].mxu0
        %v3075 = vpop.f32.mrb[0].mxu0
        %v3076 = vadd.f32 %v2723, %v3075
        %v3077 = vpop.f32.mrb[0].mxu0
        %3078 = vmatprep.mubr.bf16.mxu0 %v909
        %3079 = vmatmul.mubr.bf16.gmra.mrb[0].mxu0 %v908
        %v3080 = vpop.f32.mrb[0].mxu0
        %v3081 = vadd.f32 %v2728, %v3080
        %v3082 = vpop.f32.mrb[0].mxu0
        %v3083 = vpop.f32.mrb[0].mxu0
        %v3084 = vadd.f32 %v2731, %v3083
        %v3085 = vpop.f32.mrb[0].mxu0
        %3086 = vmatprep.mubr.bf16.mxu0 %v919
        %3087 = vmatmul.mubr.bf16.gmra.mrb[0].mxu0 %v918
        %v3088 = vpop.f32.mrb[0].mxu0
        %v3089 = vadd.f32 %v2736, %v3088
        %v3090 = vpop.f32.mrb[0].mxu0
        %v3091 = vpop.f32.mrb[0].mxu0
        %v3092 = vadd.f32 %v2739, %v3091
        %v3093 = vpop.f32.mrb[0].mxu0
        %3094 = vmatprep.mubr.bf16.mxu0 %v929
        %3095 = vmatmul.mubr.bf16.gmra.mrb[0].mxu0 %v928
        %v3096 = vpop.f32.mrb[0].mxu0
        %v3097 = vadd.f32 %v2744, %v3096
        %v3098 = vpop.f32.mrb[0].mxu0
        %v3099 = vpop.f32.mrb[0].mxu0
        %v3100 = vadd.f32 %v2747, %v3099
        %v3101 = vpop.f32.mrb[0].mxu0
        %3102 = vmatprep.mubr.bf16.mxu0 %v939
        %3103 = vmatmul.mubr.bf16.gmra.mrb[0].mxu0 %v938
        %v3104 = vpop.f32.mrb[0].mxu0
        %v3105 = vadd.f32 %v2752, %v3104
        %v3106 = vpop.f32.mrb[0].mxu0
        %v3107 = vpop.f32.mrb[0].mxu0
        %v3108 = vadd.f32 %v2755, %v3107
        %v3109 = vpop.f32.mrb[0].mxu0
        %3110 = vmatprep.mubr.bf16.mxu0 %v949
        %3111 = vmatmul.mubr.bf16.gmra.mrb[0].mxu0 %v948
        %v3112 = vpop.f32.mrb[0].mxu0
        %v3113 = vadd.f32 %v2760, %v3112
        %v3114 = vpop.f32.mrb[0].mxu0
        %v3115 = vpop.f32.mrb[0].mxu0
        %v3116 = vadd.f32 %v2763, %v3115
        %v3117 = vpop.f32.mrb[0].mxu0
        %3118 = vmatprep.mubr.bf16.mxu0 %v959
        %3119 = vmatmul.mubr.bf16.gmra.mrb[0].mxu0 %v958
        %v3120 = vpop.f32.mrb[0].mxu0
        %v3121 = vadd.f32 %v2768, %v3120
        %v3122 = vpop.f32.mrb[0].mxu0
        %v3123 = vpop.f32.mrb[0].mxu0
        %v3124 = vadd.f32 %v2771, %v3123
        %v3125 = vpop.f32.mrb[0].mxu0
        %3126 = vmatprep.mubr.bf16.mxu0 %v969
        %3127 = vmatmul.mubr.bf16.gmra.mrb[0].mxu0 %v968
        %v3128 = vpop.f32.mrb[0].mxu0
        %v3129 = vadd.f32 %v2776, %v3128
        %v3130 = vpop.f32.mrb[0].mxu0
        %v3131 = vpop.f32.mrb[0].mxu0
        %v3132 = vadd.f32 %v2779, %v3131
        %v3133 = vpop.f32.mrb[0].mxu0
        %3134 = vmatprep.mubr.bf16.mxu0 %v979
        %3135 = vmatmul.mubr.bf16.gmra.mrb[0].mxu0 %v978
        %v3136 = vpop.f32.mrb[0].mxu0
        %v3137 = vadd.f32 %v2784, %v3136
        %v3138 = vpop.f32.mrb[0].mxu0
        %v3139 = vpop.f32.mrb[0].mxu0
        %v3140 = vadd.f32 %v2787, %v3139
        %v3141 = vpop.f32.mrb[0].mxu0
        %3142 = vmatprep.mubr.bf16.mxu0 %v989
        %3143 = vmatmul.mubr.bf16.gmra.mrb[0].mxu0 %v988
        %v3144 = vpop.f32.mrb[0].mxu0
        %v3145 = vadd.f32 %v2792, %v3144
        %v3146 = vpop.f32.mrb[0].mxu0
        %v3147 = vpop.f32.mrb[0].mxu0
        %v3148 = vadd.f32 %v2795, %v3147
        %v3149 = vpop.f32.mrb[0].mxu0
        %3150 = vmatprep.mubr.bf16.mxu0 %v999
        %3151 = vmatmul.mubr.bf16.gmra.mrb[0].mxu0 %v998
        %v3152 = vpop.f32.mrb[0].mxu0
        %v3153 = vadd.f32 %v2800, %v3152
        %v3154 = vpop.f32.mrb[0].mxu0
        %v3155 = vpop.f32.mrb[0].mxu0
        %v3156 = vadd.f32 %v2803, %v3155
        %v3157 = vpop.f32.mrb[0].mxu0
        %3158 = vmatprep.mubr.bf16.mxu0 %v1009
        %3159 = vmatmul.mubr.bf16.gmra.mrb[0].mxu0 %v1008
        %v3160 = vpop.f32.mrb[0].mxu0
        %v3161 = vadd.f32 %v2808, %v3160
        %v3162 = vpop.f32.mrb[0].mxu0
        %v3163 = vpop.f32.mrb[0].mxu0
        %v3164 = vadd.f32 %v2811, %v3163
        %v3165 = vpop.f32.mrb[0].mxu0
        %3166 = vmatprep.mubr.bf16.mxu0 %v1019
        %3167 = vmatmul.mubr.bf16.gmra.mrb[0].mxu0 %v1018
        %v3168 = vpop.f32.mrb[0].mxu0
        %v3169 = vadd.f32 %v2816, %v3168
        %v3170 = vpop.f32.mrb[0].mxu0
        %v3171 = vpop.f32.mrb[0].mxu0
        %v3172 = vadd.f32 %v2819, %v3171
        %v3173 = vpop.f32.mrb[0].mxu0
        %3174 = vmatprep.mubr.bf16.mxu0 %v1029
        %3175 = vmatmul.mubr.bf16.gmra.mrb[0].mxu0 %v1028
        %v3176 = vpop.f32.mrb[0].mxu0
        %v3177 = vadd.f32 %v2824, %v3176
        %v3178 = vpop.f32.mrb[0].mxu0
        %v3179 = vpop.f32.mrb[0].mxu0
        %v3180 = vadd.f32 %v2827, %v3179
        %v3181 = vpop.f32.mrb[0].mxu0
        %3182 = vmatprep.mubr.bf16.mxu0 %v1039
        %3183 = vmatmul.mubr.bf16.gmra.mrb[0].mxu0 %v1038
        %v3184 = vpop.f32.mrb[0].mxu0
        %v3185 = vadd.f32 %v2832, %v3184
        %v3186 = vpop.f32.mrb[0].mxu0
        %v3187 = vpop.f32.mrb[0].mxu0
        %v3188 = vadd.f32 %v2835, %v3187
        %v3189 = vpop.f32.mrb[0].mxu0
        %3190 = vmatprep.mubr.bf16.mxu0 %v1049
        %3191 = vmatmul.mubr.bf16.gmra.mrb[0].mxu0 %v1048
        %v3192 = vpop.f32.mrb[0].mxu0
        %v3193 = vadd.f32 %v2840, %v3192
        %v3194 = vpop.f32.mrb[0].mxu0
        %v3195 = vpop.f32.mrb[0].mxu0
        %v3196 = vadd.f32 %v2843, %v3195
        %v3197 = vpop.f32.mrb[0].mxu0
        %3198 = vmatprep.mubr.bf16.mxu0 %v1059
        %3199 = vmatmul.mubr.bf16.gmra.mrb[0].mxu0 %v1058
        %v3200 = vpop.f32.mrb[0].mxu0
        %v3201 = vadd.f32 %v2848, %v3200
        %v3202 = vpop.f32.mrb[0].mxu0
        %v3203 = vpop.f32.mrb[0].mxu0
        %v3204 = vadd.f32 %v2851, %v3203
        %v3205 = vpop.f32.mrb[0].mxu0
        %3206 = vmatprep.mubr.bf16.mxu0 %v1069
        %3207 = vmatmul.mubr.bf16.gmra.mrb[0].mxu0 %v1068
        %v3208 = vpop.f32.mrb[0].mxu0
        %v3209 = vadd.f32 %v2856, %v3208
        %v3210 = vpop.f32.mrb[0].mxu0
        %v3211 = vpop.f32.mrb[0].mxu0
        %v3212 = vadd.f32 %v2859, %v3211
        %v3213 = vpop.f32.mrb[0].mxu0
        %3214 = vmatprep.mubr.bf16.mxu0 %v1079
        %3215 = vmatmul.mubr.bf16.gmra.mrb[0].mxu0 %v1078
        %v3216 = vpop.f32.mrb[0].mxu0
        %v3217 = vadd.f32 %v2864, %v3216
        %v3218 = vpop.f32.mrb[0].mxu0
        %v3219 = vpop.f32.mrb[0].mxu0
        %v3220 = vadd.f32 %v2867, %v3219
        %v3221 = vpop.f32.mrb[0].mxu0
        %3222 = vmatprep.mubr.bf16.mxu0 %v1089
        %3223 = vmatmul.mubr.bf16.gmra.mrb[0].mxu0 %v1088
        %v3224 = vpop.f32.mrb[0].mxu0
        %v3225 = vadd.f32 %v2872, %v3224
        %v3226 = vpop.f32.mrb[0].mxu0
        %v3227 = vpop.f32.mrb[0].mxu0
        %v3228 = vadd.f32 %v2875, %v3227
        %v3229 = vpop.f32.mrb[0].mxu0
        %3230 = vmatprep.mubr.bf16.mxu0 %v1099
        %3231 = vmatmul.mubr.bf16.gmra.mrb[0].mxu0 %v1098
        %v3232 = vpop.f32.mrb[0].mxu0
        %v3233 = vadd.f32 %v2880, %v3232
        %v3234 = vpop.f32.mrb[0].mxu0
        %v3235 = vpop.f32.mrb[0].mxu0
        %v3236 = vadd.f32 %v2883, %v3235
        %v3237 = vpop.f32.mrb[0].mxu0
        %3238 = vdwg.mxu0
        %3239 = vmatprep.subr.bf16.mxu0 0
        %3240 = vmatpush1.bf16.msra.mxu0 %v1731
        %3241 = vmatprep.subr.bf16.mxu0 0
        %3242 = vmatpush1.bf16.msra.mxu0 %v1732
        %3243 = vmatprep.subr.bf16.mxu0 0
        %3244 = vmatpush1.bf16.msra.mxu0 %v1733
        %3245 = vmatprep.subr.bf16.mxu0 0
        %3246 = vmatpush1.bf16.msra.mxu0 %v1734
        %3247 = vmatprep.subr.bf16.mxu0 0
        %3248 = vmatpush1.bf16.msra.mxu0 %v1735
        %3249 = vmatprep.subr.bf16.mxu0 0
        %3250 = vmatpush1.bf16.msra.mxu0 %v1736
        %3251 = vmatprep.subr.bf16.mxu0 0
        %3252 = vmatpush1.bf16.msra.mxu0 %v1737
        %3253 = vmatprep.subr.bf16.mxu0 0
        %3254 = vmatpush1.bf16.msra.mxu0 %v1738
        %3255 = vmatprep.subr.bf16.mxu0 0
        %3256 = vmatpush1.bf16.msra.mxu0 %v1739
        %3257 = vmatprep.subr.bf16.mxu0 0
        %3258 = vmatpush1.bf16.msra.mxu0 %v1740
        %3259 = vmatprep.subr.bf16.mxu0 0
        %3260 = vmatpush1.bf16.msra.mxu0 %v1741
        %3261 = vmatprep.subr.bf16.mxu0 0
        %3262 = vmatpush1.bf16.msra.mxu0 %v1742
        %3263 = vmatprep.subr.bf16.mxu0 0
        %3264 = vmatpush1.bf16.msra.mxu0 %v1743
        %3265 = vmatprep.subr.bf16.mxu0 0
        %3266 = vmatpush1.bf16.msra.mxu0 %v1744
        %3267 = vmatprep.subr.bf16.mxu0 0
        %3268 = vmatpush1.bf16.msra.mxu0 %v1745
        %3269 = vmatprep.subr.bf16.mxu0 0
        %3270 = vmatpush1.bf16.msra.mxu0 %v1746
        %3271 = vmatprep.mubr.bf16.mxu0 %v711
        %3272 = vmatmul.mubr.bf16.gmra.mrb[0].mxu0 %v710
        %v3273 = vpop.f32.mrb[0].mxu0
        %v3274 = vadd.f32 %v2921, %v3273
        %v3275 = vpop.f32.mrb[0].mxu0
        %v3276 = vpop.f32.mrb[0].mxu0
        %v3277 = vadd.f32 %v2924, %v3276
        %v3278 = vpop.f32.mrb[0].mxu0
        %3279 = vmatprep.mubr.bf16.mxu0 %v721
        %3280 = vmatmul.mubr.bf16.gmra.mrb[0].mxu0 %v720
        %v3281 = vpop.f32.mrb[0].mxu0
        %v3282 = vadd.f32 %v2929, %v3281
        %v3283 = vpop.f32.mrb[0].mxu0
        %v3284 = vpop.f32.mrb[0].mxu0
        %v3285 = vadd.f32 %v2932, %v3284
        %v3286 = vpop.f32.mrb[0].mxu0
        %3287 = vmatprep.mubr.bf16.mxu0 %v731
        %3288 = vmatmul.mubr.bf16.gmra.mrb[0].mxu0 %v730
        %v3289 = vpop.f32.mrb[0].mxu0
        %v3290 = vadd.f32 %v2937, %v3289
        %v3291 = vpop.f32.mrb[0].mxu0
        %v3292 = vpop.f32.mrb[0].mxu0
        %v3293 = vadd.f32 %v2940, %v3292
        %v3294 = vpop.f32.mrb[0].mxu0
        %3295 = vmatprep.mubr.bf16.mxu0 %v741
        %3296 = vmatmul.mubr.bf16.gmra.mrb[0].mxu0 %v740
        %v3297 = vpop.f32.mrb[0].mxu0
        %v3298 = vadd.f32 %v2945, %v3297
        %v3299 = vpop.f32.mrb[0].mxu0
        %v3300 = vpop.f32.mrb[0].mxu0
        %v3301 = vadd.f32 %v2948, %v3300
        %v3302 = vpop.f32.mrb[0].mxu0
        %3303 = vmatprep.mubr.bf16.mxu0 %v751
        %3304 = vmatmul.mubr.bf16.gmra.mrb[0].mxu0 %v750
        %v3305 = vpop.f32.mrb[0].mxu0
        %v3306 = vadd.f32 %v2953, %v3305
        %v3307 = vpop.f32.mrb[0].mxu0
        %v3308 = vpop.f32.mrb[0].mxu0
        %v3309 = vadd.f32 %v2956, %v3308
        %v3310 = vpop.f32.mrb[0].mxu0
        %3311 = vmatprep.mubr.bf16.mxu0 %v761
        %3312 = vmatmul.mubr.bf16.gmra.mrb[0].mxu0 %v760
        %v3313 = vpop.f32.mrb[0].mxu0
        %v3314 = vadd.f32 %v2961, %v3313
        %v3315 = vpop.f32.mrb[0].mxu0
        %v3316 = vpop.f32.mrb[0].mxu0
        %v3317 = vadd.f32 %v2964, %v3316
        %v3318 = vpop.f32.mrb[0].mxu0
        %3319 = vmatprep.mubr.bf16.mxu0 %v771
        %3320 = vmatmul.mubr.bf16.gmra.mrb[0].mxu0 %v770
        %v3321 = vpop.f32.mrb[0].mxu0
        %v3322 = vadd.f32 %v2969, %v3321
        %v3323 = vpop.f32.mrb[0].mxu0
        %v3324 = vpop.f32.mrb[0].mxu0
        %v3325 = vadd.f32 %v2972, %v3324
        %v3326 = vpop.f32.mrb[0].mxu0
        %3327 = vmatprep.mubr.bf16.mxu0 %v781
        %3328 = vmatmul.mubr.bf16.gmra.mrb[0].mxu0 %v780
        %v3329 = vpop.f32.mrb[0].mxu0
        %v3330 = vadd.f32 %v2977, %v3329
        %v3331 = vpop.f32.mrb[0].mxu0
        %v3332 = vpop.f32.mrb[0].mxu0
        %v3333 = vadd.f32 %v2980, %v3332
        %v3334 = vpop.f32.mrb[0].mxu0
        %3335 = vmatprep.mubr.bf16.mxu0 %v791
        %3336 = vmatmul.mubr.bf16.gmra.mrb[0].mxu0 %v790
        %v3337 = vpop.f32.mrb[0].mxu0
        %v3338 = vadd.f32 %v2985, %v3337
        %v3339 = vpop.f32.mrb[0].mxu0
        %v3340 = vpop.f32.mrb[0].mxu0
        %v3341 = vadd.f32 %v2988, %v3340
        %v3342 = vpop.f32.mrb[0].mxu0
        %3343 = vmatprep.mubr.bf16.mxu0 %v801
        %3344 = vmatmul.mubr.bf16.gmra.mrb[0].mxu0 %v800
        %v3345 = vpop.f32.mrb[0].mxu0
        %v3346 = vadd.f32 %v2993, %v3345
        %v3347 = vpop.f32.mrb[0].mxu0
        %v3348 = vpop.f32.mrb[0].mxu0
        %v3349 = vadd.f32 %v2996, %v3348
        %v3350 = vpop.f32.mrb[0].mxu0
        %3351 = vmatprep.mubr.bf16.mxu0 %v811
        %3352 = vmatmul.mubr.bf16.gmra.mrb[0].mxu0 %v810
        %v3353 = vpop.f32.mrb[0].mxu0
        %v3354 = vadd.f32 %v3001, %v3353
        %v3355 = vpop.f32.mrb[0].mxu0
        %v3356 = vpop.f32.mrb[0].mxu0
        %v3357 = vadd.f32 %v3004, %v3356
        %v3358 = vpop.f32.mrb[0].mxu0
        %3359 = vmatprep.mubr.bf16.mxu0 %v821
        %3360 = vmatmul.mubr.bf16.gmra.mrb[0].mxu0 %v820
        %v3361 = vpop.f32.mrb[0].mxu0
        %v3362 = vadd.f32 %v3009, %v3361
        %v3363 = vpop.f32.mrb[0].mxu0
        %v3364 = vpop.f32.mrb[0].mxu0
        %v3365 = vadd.f32 %v3012, %v3364
        %v3366 = vpop.f32.mrb[0].mxu0
        %3367 = vmatprep.mubr.bf16.mxu0 %v831
        %3368 = vmatmul.mubr.bf16.gmra.mrb[0].mxu0 %v830
        %v3369 = vpop.f32.mrb[0].mxu0
        %v3370 = vadd.f32 %v3017, %v3369
        %v3371 = vpop.f32.mrb[0].mxu0
        %v3372 = vpop.f32.mrb[0].mxu0
        %v3373 = vadd.f32 %v3020, %v3372
        %v3374 = vpop.f32.mrb[0].mxu0
        %3375 = vmatprep.mubr.bf16.mxu0 %v841
        %3376 = vmatmul.mubr.bf16.gmra.mrb[0].mxu0 %v840
        %v3377 = vpop.f32.mrb[0].mxu0
        %v3378 = vadd.f32 %v3025, %v3377
        %v3379 = vpop.f32.mrb[0].mxu0
        %v3380 = vpop.f32.mrb[0].mxu0
        %v3381 = vadd.f32 %v3028, %v3380
        %v3382 = vpop.f32.mrb[0].mxu0
        %3383 = vmatprep.mubr.bf16.mxu0 %v851
        %3384 = vmatmul.mubr.bf16.gmra.mrb[0].mxu0 %v850
        %v3385 = vpop.f32.mrb[0].mxu0
        %v3386 = vadd.f32 %v3033, %v3385
        %v3387 = vpop.f32.mrb[0].mxu0
        %v3388 = vpop.f32.mrb[0].mxu0
        %v3389 = vadd.f32 %v3036, %v3388
        %v3390 = vpop.f32.mrb[0].mxu0
        %3391 = vmatprep.mubr.bf16.mxu0 %v861
        %3392 = vmatmul.mubr.bf16.gmra.mrb[0].mxu0 %v860
        %v3393 = vpop.f32.mrb[0].mxu0
        %v3394 = vadd.f32 %v3041, %v3393
        %v3395 = vpop.f32.mrb[0].mxu0
        %v3396 = vpop.f32.mrb[0].mxu0
        %v3397 = vadd.f32 %v3044, %v3396
        %v3398 = vpop.f32.mrb[0].mxu0
        %3399 = vmatprep.mubr.bf16.mxu0 %v871
        %3400 = vmatmul.mubr.bf16.gmra.mrb[0].mxu0 %v870
        %v3401 = vpop.f32.mrb[0].mxu0
        %v3402 = vadd.f32 %v3049, %v3401
        %v3403 = vpop.f32.mrb[0].mxu0
        %v3404 = vpop.f32.mrb[0].mxu0
        %v3405 = vadd.f32 %v3052, %v3404
        %v3406 = vpop.f32.mrb[0].mxu0
        %3407 = vmatprep.mubr.bf16.mxu0 %v881
        %3408 = vmatmul.mubr.bf16.gmra.mrb[0].mxu0 %v880
        %v3409 = vpop.f32.mrb[0].mxu0
        %v3410 = vadd.f32 %v3057, %v3409
        %v3411 = vpop.f32.mrb[0].mxu0
        %v3412 = vpop.f32.mrb[0].mxu0
        %v3413 = vadd.f32 %v3060, %v3412
        %v3414 = vpop.f32.mrb[0].mxu0
        %3415 = vmatprep.mubr.bf16.mxu0 %v891
        %3416 = vmatmul.mubr.bf16.gmra.mrb[0].mxu0 %v890
        %v3417 = vpop.f32.mrb[0].mxu0
        %v3418 = vadd.f32 %v3065, %v3417
        %v3419 = vpop.f32.mrb[0].mxu0
        %v3420 = vpop.f32.mrb[0].mxu0
        %v3421 = vadd.f32 %v3068, %v3420
        %v3422 = vpop.f32.mrb[0].mxu0
        %3423 = vmatprep.mubr.bf16.mxu0 %v901
        %3424 = vmatmul.mubr.bf16.gmra.mrb[0].mxu0 %v900
        %v3425 = vpop.f32.mrb[0].mxu0
        %v3426 = vadd.f32 %v3073, %v3425
        %v3427 = vpop.f32.mrb[0].mxu0
        %v3428 = vpop.f32.mrb[0].mxu0
        %v3429 = vadd.f32 %v3076, %v3428
        %v3430 = vpop.f32.mrb[0].mxu0
        %3431 = vmatprep.mubr.bf16.mxu0 %v911
        %3432 = vmatmul.mubr.bf16.gmra.mrb[0].mxu0 %v910
        %v3433 = vpop.f32.mrb[0].mxu0
        %v3434 = vadd.f32 %v3081, %v3433
        %v3435 = vpop.f32.mrb[0].mxu0
        %v3436 = vpop.f32.mrb[0].mxu0
        %v3437 = vadd.f32 %v3084, %v3436
        %v3438 = vpop.f32.mrb[0].mxu0
        %3439 = vmatprep.mubr.bf16.mxu0 %v921
        %3440 = vmatmul.mubr.bf16.gmra.mrb[0].mxu0 %v920
        %v3441 = vpop.f32.mrb[0].mxu0
        %v3442 = vadd.f32 %v3089, %v3441
        %v3443 = vpop.f32.mrb[0].mxu0
        %v3444 = vpop.f32.mrb[0].mxu0
        %v3445 = vadd.f32 %v3092, %v3444
        %v3446 = vpop.f32.mrb[0].mxu0
        %3447 = vmatprep.mubr.bf16.mxu0 %v931
        %3448 = vmatmul.mubr.bf16.gmra.mrb[0].mxu0 %v930
        %v3449 = vpop.f32.mrb[0].mxu0
        %v3450 = vadd.f32 %v3097, %v3449
        %v3451 = vpop.f32.mrb[0].mxu0
        %v3452 = vpop.f32.mrb[0].mxu0
        %v3453 = vadd.f32 %v3100, %v3452
        %v3454 = vpop.f32.mrb[0].mxu0
        %3455 = vmatprep.mubr.bf16.mxu0 %v941
        %3456 = vmatmul.mubr.bf16.gmra.mrb[0].mxu0 %v940
        %v3457 = vpop.f32.mrb[0].mxu0
        %v3458 = vadd.f32 %v3105, %v3457
        %v3459 = vpop.f32.mrb[0].mxu0
        %v3460 = vpop.f32.mrb[0].mxu0
        %v3461 = vadd.f32 %v3108, %v3460
        %v3462 = vpop.f32.mrb[0].mxu0
        %3463 = vmatprep.mubr.bf16.mxu0 %v951
        %3464 = vmatmul.mubr.bf16.gmra.mrb[0].mxu0 %v950
        %v3465 = vpop.f32.mrb[0].mxu0
        %v3466 = vadd.f32 %v3113, %v3465
        %v3467 = vpop.f32.mrb[0].mxu0
        %v3468 = vpop.f32.mrb[0].mxu0
        %v3469 = vadd.f32 %v3116, %v3468
        %v3470 = vpop.f32.mrb[0].mxu0
        %3471 = vmatprep.mubr.bf16.mxu0 %v961
        %3472 = vmatmul.mubr.bf16.gmra.mrb[0].mxu0 %v960
        %v3473 = vpop.f32.mrb[0].mxu0
        %v3474 = vadd.f32 %v3121, %v3473
        %v3475 = vpop.f32.mrb[0].mxu0
        %v3476 = vpop.f32.mrb[0].mxu0
        %v3477 = vadd.f32 %v3124, %v3476
        %v3478 = vpop.f32.mrb[0].mxu0
        %3479 = vmatprep.mubr.bf16.mxu0 %v971
        %3480 = vmatmul.mubr.bf16.gmra.mrb[0].mxu0 %v970
        %v3481 = vpop.f32.mrb[0].mxu0
        %v3482 = vadd.f32 %v3129, %v3481
        %v3483 = vpop.f32.mrb[0].mxu0
        %v3484 = vpop.f32.mrb[0].mxu0
        %v3485 = vadd.f32 %v3132, %v3484
        %v3486 = vpop.f32.mrb[0].mxu0
        %3487 = vmatprep.mubr.bf16.mxu0 %v981
        %3488 = vmatmul.mubr.bf16.gmra.mrb[0].mxu0 %v980
        %v3489 = vpop.f32.mrb[0].mxu0
        %v3490 = vadd.f32 %v3137, %v3489
        %v3491 = vpop.f32.mrb[0].mxu0
        %v3492 = vpop.f32.mrb[0].mxu0
        %v3493 = vadd.f32 %v3140, %v3492
        %v3494 = vpop.f32.mrb[0].mxu0
        %3495 = vmatprep.mubr.bf16.mxu0 %v991
        %3496 = vmatmul.mubr.bf16.gmra.mrb[0].mxu0 %v990
        %v3497 = vpop.f32.mrb[0].mxu0
        %v3498 = vadd.f32 %v3145, %v3497
        %v3499 = vpop.f32.mrb[0].mxu0
        %v3500 = vpop.f32.mrb[0].mxu0
        %v3501 = vadd.f32 %v3148, %v3500
        %v3502 = vpop.f32.mrb[0].mxu0
        %3503 = vmatprep.mubr.bf16.mxu0 %v1001
        %3504 = vmatmul.mubr.bf16.gmra.mrb[0].mxu0 %v1000
        %v3505 = vpop.f32.mrb[0].mxu0
        %v3506 = vadd.f32 %v3153, %v3505
        %v3507 = vpop.f32.mrb[0].mxu0
        %v3508 = vpop.f32.mrb[0].mxu0
        %v3509 = vadd.f32 %v3156, %v3508
        %v3510 = vpop.f32.mrb[0].mxu0
        %3511 = vmatprep.mubr.bf16.mxu0 %v1011
        %3512 = vmatmul.mubr.bf16.gmra.mrb[0].mxu0 %v1010
        %v3513 = vpop.f32.mrb[0].mxu0
        %v3514 = vadd.f32 %v3161, %v3513
        %v3515 = vpop.f32.mrb[0].mxu0
        %v3516 = vpop.f32.mrb[0].mxu0
        %v3517 = vadd.f32 %v3164, %v3516
        %v3518 = vpop.f32.mrb[0].mxu0
        %3519 = vmatprep.mubr.bf16.mxu0 %v1021
        %3520 = vmatmul.mubr.bf16.gmra.mrb[0].mxu0 %v1020
        %v3521 = vpop.f32.mrb[0].mxu0
        %v3522 = vadd.f32 %v3169, %v3521
        %v3523 = vpop.f32.mrb[0].mxu0
        %v3524 = vpop.f32.mrb[0].mxu0
        %v3525 = vadd.f32 %v3172, %v3524
        %v3526 = vpop.f32.mrb[0].mxu0
        %3527 = vmatprep.mubr.bf16.mxu0 %v1031
        %3528 = vmatmul.mubr.bf16.gmra.mrb[0].mxu0 %v1030
        %v3529 = vpop.f32.mrb[0].mxu0
        %v3530 = vadd.f32 %v3177, %v3529
        %v3531 = vpop.f32.mrb[0].mxu0
        %v3532 = vpop.f32.mrb[0].mxu0
        %v3533 = vadd.f32 %v3180, %v3532
        %v3534 = vpop.f32.mrb[0].mxu0
        %3535 = vmatprep.mubr.bf16.mxu0 %v1041
        %3536 = vmatmul.mubr.bf16.gmra.mrb[0].mxu0 %v1040
        %v3537 = vpop.f32.mrb[0].mxu0
        %v3538 = vadd.f32 %v3185, %v3537
        %v3539 = vpop.f32.mrb[0].mxu0
        %v3540 = vpop.f32.mrb[0].mxu0
        %v3541 = vadd.f32 %v3188, %v3540
        %v3542 = vpop.f32.mrb[0].mxu0
        %3543 = vmatprep.mubr.bf16.mxu0 %v1051
        %3544 = vmatmul.mubr.bf16.gmra.mrb[0].mxu0 %v1050
        %v3545 = vpop.f32.mrb[0].mxu0
        %v3546 = vadd.f32 %v3193, %v3545
        %v3547 = vpop.f32.mrb[0].mxu0
        %v3548 = vpop.f32.mrb[0].mxu0
        %v3549 = vadd.f32 %v3196, %v3548
        %v3550 = vpop.f32.mrb[0].mxu0
        %3551 = vmatprep.mubr.bf16.mxu0 %v1061
        %3552 = vmatmul.mubr.bf16.gmra.mrb[0].mxu0 %v1060
        %v3553 = vpop.f32.mrb[0].mxu0
        %v3554 = vadd.f32 %v3201, %v3553
        %v3555 = vpop.f32.mrb[0].mxu0
        %v3556 = vpop.f32.mrb[0].mxu0
        %v3557 = vadd.f32 %v3204, %v3556
        %v3558 = vpop.f32.mrb[0].mxu0
        %3559 = vmatprep.mubr.bf16.mxu0 %v1071
        %3560 = vmatmul.mubr.bf16.gmra.mrb[0].mxu0 %v1070
        %v3561 = vpop.f32.mrb[0].mxu0
        %v3562 = vadd.f32 %v3209, %v3561
        %v3563 = vpop.f32.mrb[0].mxu0
        %v3564 = vpop.f32.mrb[0].mxu0
        %v3565 = vadd.f32 %v3212, %v3564
        %v3566 = vpop.f32.mrb[0].mxu0
        %3567 = vmatprep.mubr.bf16.mxu0 %v1081
        %3568 = vmatmul.mubr.bf16.gmra.mrb[0].mxu0 %v1080
        %v3569 = vpop.f32.mrb[0].mxu0
        %v3570 = vadd.f32 %v3217, %v3569
        %v3571 = vpop.f32.mrb[0].mxu0
        %v3572 = vpop.f32.mrb[0].mxu0
        %v3573 = vadd.f32 %v3220, %v3572
        %v3574 = vpop.f32.mrb[0].mxu0
        %3575 = vmatprep.mubr.bf16.mxu0 %v1091
        %3576 = vmatmul.mubr.bf16.gmra.mrb[0].mxu0 %v1090
        %v3577 = vpop.f32.mrb[0].mxu0
        %v3578 = vadd.f32 %v3225, %v3577
        %v3579 = vpop.f32.mrb[0].mxu0
        %v3580 = vpop.f32.mrb[0].mxu0
        %v3581 = vadd.f32 %v3228, %v3580
        %v3582 = vpop.f32.mrb[0].mxu0
        %3583 = vmatprep.mubr.bf16.mxu0 %v1101
        %3584 = vmatmul.mubr.bf16.gmra.mrb[0].mxu0 %v1100
        %v3585 = vpop.f32.mrb[0].mxu0
        %v3586 = vadd.f32 %v3233, %v3585
        %v3587 = vpop.f32.mrb[0].mxu0
        %v3588 = vpop.f32.mrb[0].mxu0
        %v3589 = vadd.f32 %v3236, %v3588
        %v3590 = vpop.f32.mrb[0].mxu0
        %3591 = vdwg.mxu0
        %v3592 = vadd.f32 %v1267, %v3274
        %v3593 = vadd.f32 %v1268, %v3277
        %v3594 = vadd.f32 %v1269, %v3282
        %v3595 = vadd.f32 %v1270, %v3285
        %v3596 = vadd.f32 %v1271, %v3290
        %v3597 = vadd.f32 %v1272, %v3293
        %v3598 = vadd.f32 %v1273, %v3298
        %v3599 = vadd.f32 %v1274, %v3301
        %v3600 = vadd.f32 %v1275, %v3306
        %v3601 = vadd.f32 %v1276, %v3309
        %v3602 = vadd.f32 %v1277, %v3314
        %v3603 = vadd.f32 %v1278, %v3317
        %v3604 = vadd.f32 %v1279, %v3322
        %v3605 = vadd.f32 %v1280, %v3325
        %v3606 = vadd.f32 %v1281, %v3330
        %v3607 = vadd.f32 %v1282, %v3333
        %v3608 = vadd.f32 %v1283, %v3338
        %v3609 = vadd.f32 %v1284, %v3341
        %v3610 = vadd.f32 %v1285, %v3346
        %v3611 = vadd.f32 %v1286, %v3349
        %v3612 = vadd.f32 %v1287, %v3354
        %v3613 = vadd.f32 %v1288, %v3357
        %v3614 = vadd.f32 %v1289, %v3362
        %v3615 = vadd.f32 %v1290, %v3365
        %v3616 = vadd.f32 %v1291, %v3370
        %v3617 = vadd.f32 %v1292, %v3373
        %v3618 = vadd.f32 %v1293, %v3378
        %v3619 = vadd.f32 %v1294, %v3381
        %v3620 = vadd.f32 %v1295, %v3386
        %v3621 = vadd.f32 %v1296, %v3389
        %v3622 = vadd.f32 %v1297, %v3394
        %v3623 = vadd.f32 %v1298, %v3397
        %v3624 = vadd.f32 %v1299, %v3402
        %v3625 = vadd.f32 %v1300, %v3405
        %v3626 = vadd.f32 %v1301, %v3410
        %v3627 = vadd.f32 %v1302, %v3413
        %v3628 = vadd.f32 %v1303, %v3418
        %v3629 = vadd.f32 %v1304, %v3421
        %v3630 = vadd.f32 %v1305, %v3426
        %v3631 = vadd.f32 %v1306, %v3429
        %v3632 = vadd.f32 %v1307, %v3434
        %v3633 = vadd.f32 %v1308, %v3437
        %v3634 = vadd.f32 %v1309, %v3442
        %v3635 = vadd.f32 %v1310, %v3445
        %v3636 = vadd.f32 %v1311, %v3450
        %v3637 = vadd.f32 %v1312, %v3453
        %v3638 = vadd.f32 %v1313, %v3458
        %v3639 = vadd.f32 %v1314, %v3461
        %v3640 = vadd.f32 %v1315, %v3466
        %v3641 = vadd.f32 %v1316, %v3469
        %v3642 = vadd.f32 %v1317, %v3474
        %v3643 = vadd.f32 %v1318, %v3477
        %v3644 = vadd.f32 %v1319, %v3482
        %v3645 = vadd.f32 %v1320, %v3485
        %v3646 = vadd.f32 %v1321, %v3490
        %v3647 = vadd.f32 %v1322, %v3493
        %v3648 = vadd.f32 %v1323, %v3498
        %v3649 = vadd.f32 %v1324, %v3501
        %v3650 = vadd.f32 %v1325, %v3506
        %v3651 = vadd.f32 %v1326, %v3509
        %v3652 = vadd.f32 %v1327, %v3514
        %v3653 = vadd.f32 %v1328, %v3517
        %v3654 = vadd.f32 %v1329, %v3522
        %v3655 = vadd.f32 %v1330, %v3525
        %v3656 = vadd.f32 %v1331, %v3530
        %v3657 = vadd.f32 %v1332, %v3533
        %v3658 = vadd.f32 %v1333, %v3538
        %v3659 = vadd.f32 %v1334, %v3541
        %v3660 = vadd.f32 %v1335, %v3546
        %v3661 = vadd.f32 %v1336, %v3549
        %v3662 = vadd.f32 %v1337, %v3554
        %v3663 = vadd.f32 %v1338, %v3557
        %v3664 = vadd.f32 %v1339, %v3562
        %v3665 = vadd.f32 %v1340, %v3565
        %v3666 = vadd.f32 %v1341, %v3570
        %v3667 = vadd.f32 %v1342, %v3573
        %v3668 = vadd.f32 %v1343, %v3578
        %v3669 = vadd.f32 %v1344, %v3581
        %v3670 = vadd.f32 %v1345, %v3586
        %v3671 = vadd.f32 %v1346, %v3589
        %3672 = vst [vmem:[#allocation2] sm:$0xff] %v3592
        %3673 = vst [vmem:[#allocation2 + $0x8] sm:$0xff] %v3593
        %3674 = vst [vmem:[#allocation2 + $0x10] sm:$0xff] %v3594
        %3675 = vst [vmem:[#allocation2 + $0x18] sm:$0xff] %v3595
        %3676 = vst [vmem:[#allocation2 + $0x20] sm:$0xff] %v3596
        %3677 = vst [vmem:[#allocation2 + $0x28] sm:$0xff] %v3597
        %3678 = vst [vmem:[#allocation2 + $0x30] sm:$0xff] %v3598
        %3679 = vst [vmem:[#allocation2 + $0x38] sm:$0xff] %v3599
        %3680 = vst [vmem:[#allocation2 + $0x40] sm:$0xff] %v3600
        %3681 = vst [vmem:[#allocation2 + $0x48] sm:$0xff] %v3601
        %3682 = vst [vmem:[#allocation2 + $0x50] sm:$0xff] %v3602
        %3683 = vst [vmem:[#allocation2 + $0x58] sm:$0xff] %v3603
        %3684 = vst [vmem:[#allocation2 + $0x60] sm:$0xff] %v3604
        %3685 = vst [vmem:[#allocation2 + $0x68] sm:$0xff] %v3605
        %3686 = vst [vmem:[#allocation2 + $0x70] sm:$0xff] %v3606
        %3687 = vst [vmem:[#allocation2 + $0x78] sm:$0xff] %v3607
        %3688 = vst [vmem:[#allocation2 + $0x80] sm:$0xff] %v3608
        %3689 = vst [vmem:[#allocation2 + $0x88] sm:$0xff] %v3609
        %3690 = vst [vmem:[#allocation2 + $0x90] sm:$0xff] %v3610
        %3691 = vst [vmem:[#allocation2 + $0x98] sm:$0xff] %v3611
        %3692 = vst [vmem:[#allocation2 + $0xa0] sm:$0xff] %v3612
        %3693 = vst [vmem:[#allocation2 + $0xa8] sm:$0xff] %v3613
        %3694 = vst [vmem:[#allocation2 + $0xb0] sm:$0xff] %v3614
        %3695 = vst [vmem:[#allocation2 + $0xb8] sm:$0xff] %v3615
        %3696 = vst [vmem:[#allocation2 + $0xc0] sm:$0xff] %v3616
        %3697 = vst [vmem:[#allocation2 + $0xc8] sm:$0xff] %v3617
        %3698 = vst [vmem:[#allocation2 + $0xd0] sm:$0xff] %v3618
        %3699 = vst [vmem:[#allocation2 + $0xd8] sm:$0xff] %v3619
        %3700 = vst [vmem:[#allocation2 + $0xe0] sm:$0xff] %v3620
        %3701 = vst [vmem:[#allocation2 + $0xe8] sm:$0xff] %v3621
        %3702 = vst [vmem:[#allocation2 + $0xf0] sm:$0xff] %v3622
        %3703 = vst [vmem:[#allocation2 + $0xf8] sm:$0xff] %v3623
        %3704 = vst [vmem:[#allocation2 + $0x100] sm:$0xff] %v3624
        %3705 = vst [vmem:[#allocation2 + $0x108] sm:$0xff] %v3625
        %3706 = vst [vmem:[#allocation2 + $0x110] sm:$0xff] %v3626
        %3707 = vst [vmem:[#allocation2 + $0x118] sm:$0xff] %v3627
        %3708 = vst [vmem:[#allocation2 + $0x120] sm:$0xff] %v3628
        %3709 = vst [vmem:[#allocation2 + $0x128] sm:$0xff] %v3629
        %3710 = vst [vmem:[#allocation2 + $0x130] sm:$0xff] %v3630
        %3711 = vst [vmem:[#allocation2 + $0x138] sm:$0xff] %v3631
        %3712 = vst [vmem:[#allocation2 + $0x140] sm:$0xff] %v3632
        %3713 = vst [vmem:[#allocation2 + $0x148] sm:$0xff] %v3633
        %3714 = vst [vmem:[#allocation2 + $0x150] sm:$0xff] %v3634
        %3715 = vst [vmem:[#allocation2 + $0x158] sm:$0xff] %v3635
        %3716 = vst [vmem:[#allocation2 + $0x160] sm:$0xff] %v3636
        %3717 = vst [vmem:[#allocation2 + $0x168] sm:$0xff] %v3637
        %3718 = vst [vmem:[#allocation2 + $0x170] sm:$0xff] %v3638
        %3719 = vst [vmem:[#allocation2 + $0x178] sm:$0xff] %v3639
        %3720 = vst [vmem:[#allocation2 + $0x180] sm:$0xff] %v3640
        %3721 = vst [vmem:[#allocation2 + $0x188] sm:$0xff] %v3641
        %3722 = vst [vmem:[#allocation2 + $0x190] sm:$0xff] %v3642
        %3723 = vst [vmem:[#allocation2 + $0x198] sm:$0xff] %v3643
        %3724 = vst [vmem:[#allocation2 + $0x1a0] sm:$0xff] %v3644
        %3725 = vst [vmem:[#allocation2 + $0x1a8] sm:$0xff] %v3645
        %3726 = vst [vmem:[#allocation2 + $0x1b0] sm:$0xff] %v3646
        %3727 = vst [vmem:[#allocation2 + $0x1b8] sm:$0xff] %v3647
        %3728 = vst [vmem:[#allocation2 + $0x1c0] sm:$0xff] %v3648
        %3729 = vst [vmem:[#allocation2 + $0x1c8] sm:$0xff] %v3649
        %3730 = vst [vmem:[#allocation2 + $0x1d0] sm:$0xff] %v3650
        %3731 = vst [vmem:[#allocation2 + $0x1d8] sm:$0xff] %v3651
        %3732 = vst [vmem:[#allocation2 + $0x1e0] sm:$0xff] %v3652
        %3733 = vst [vmem:[#allocation2 + $0x1e8] sm:$0xff] %v3653
        %3734 = vst [vmem:[#allocation2 + $0x1f0] sm:$0xff] %v3654
        %3735 = vst [vmem:[#allocation2 + $0x1f8] sm:$0xff] %v3655
        %3736 = vst [vmem:[#allocation2 + $0x200] sm:$0xff] %v3656
        %3737 = vst [vmem:[#allocation2 + $0x208] sm:$0xff] %v3657
        %3738 = vst [vmem:[#allocation2 + $0x210] sm:$0xff] %v3658
        %3739 = vst [vmem:[#allocation2 + $0x218] sm:$0xff] %v3659
        %3740 = vst [vmem:[#allocation2 + $0x220] sm:$0xff] %v3660
        %3741 = vst [vmem:[#allocation2 + $0x228] sm:$0xff] %v3661
        %3742 = vst [vmem:[#allocation2 + $0x230] sm:$0xff] %v3662
        %3743 = vst [vmem:[#allocation2 + $0x238] sm:$0xff] %v3663
        %3744 = vst [vmem:[#allocation2 + $0x240] sm:$0xff] %v3664
        %3745 = vst [vmem:[#allocation2 + $0x248] sm:$0xff] %v3665
        %3746 = vst [vmem:[#allocation2 + $0x250] sm:$0xff] %v3666
        %3747 = vst [vmem:[#allocation2 + $0x258] sm:$0xff] %v3667
        %3748 = vst [vmem:[#allocation2 + $0x260] sm:$0xff] %v3668
        %3749 = vst [vmem:[#allocation2 + $0x268] sm:$0xff] %v3669
        %3750 = vst [vmem:[#allocation2 + $0x270] sm:$0xff] %v3670
        %3751 = vst [vmem:[#allocation2 + $0x278] sm:$0xff] %v3671
        // Predicated region
        $region65: #{tpu_custom_call.1} parent=39 // pred_check
          %p3752 = pneg %p418
        $region66: #{tpu_custom_call.1} parent=39 // pred_check_branch
          %3754 = sbr.rel (%p3752) target = $region68
        $region67: #{tpu_custom_call.1} parent=39 // pred_region
          %v3755 = vld [vmem:[#allocation2] sm:$0xff]
          %v3756 = vld [vmem:[#allocation2 + $0x8] sm:$0xff]
          %v3757 = vld [vmem:[#allocation2 + $0x10] sm:$0xff]
          %v3758 = vld [vmem:[#allocation2 + $0x18] sm:$0xff]
          %v3759 = vld [vmem:[#allocation2 + $0x20] sm:$0xff]
          %v3760 = vld [vmem:[#allocation2 + $0x28] sm:$0xff]
          %v3761 = vld [vmem:[#allocation2 + $0x30] sm:$0xff]
          %v3762 = vld [vmem:[#allocation2 + $0x38] sm:$0xff]
          %v3763 = vld [vmem:[#allocation2 + $0x40] sm:$0xff]
          %v3764 = vld [vmem:[#allocation2 + $0x48] sm:$0xff]
          %v3765 = vld [vmem:[#allocation2 + $0x50] sm:$0xff]
          %v3766 = vld [vmem:[#allocation2 + $0x58] sm:$0xff]
          %v3767 = vld [vmem:[#allocation2 + $0x60] sm:$0xff]
          %v3768 = vld [vmem:[#allocation2 + $0x68] sm:$0xff]
          %v3769 = vld [vmem:[#allocation2 + $0x70] sm:$0xff]
          %v3770 = vld [vmem:[#allocation2 + $0x78] sm:$0xff]
          %v3771 = vld [vmem:[#allocation2 + $0x80] sm:$0xff]
          %v3772 = vld [vmem:[#allocation2 + $0x88] sm:$0xff]
          %v3773 = vld [vmem:[#allocation2 + $0x90] sm:$0xff]
          %v3774 = vld [vmem:[#allocation2 + $0x98] sm:$0xff]
          %v3775 = vld [vmem:[#allocation2 + $0xa0] sm:$0xff]
          %v3776 = vld [vmem:[#allocation2 + $0xa8] sm:$0xff]
          %v3777 = vld [vmem:[#allocation2 + $0xb0] sm:$0xff]
          %v3778 = vld [vmem:[#allocation2 + $0xb8] sm:$0xff]
          %v3779 = vld [vmem:[#allocation2 + $0xc0] sm:$0xff]
          %v3780 = vld [vmem:[#allocation2 + $0xc8] sm:$0xff]
          %v3781 = vld [vmem:[#allocation2 + $0xd0] sm:$0xff]
          %v3782 = vld [vmem:[#allocation2 + $0xd8] sm:$0xff]
          %v3783 = vld [vmem:[#allocation2 + $0xe0] sm:$0xff]
          %v3784 = vld [vmem:[#allocation2 + $0xe8] sm:$0xff]
          %v3785 = vld [vmem:[#allocation2 + $0xf0] sm:$0xff]
          %v3786 = vld [vmem:[#allocation2 + $0xf8] sm:$0xff]
          %v3787 = vld [vmem:[#allocation2 + $0x100] sm:$0xff]
          %v3788 = vld [vmem:[#allocation2 + $0x108] sm:$0xff]
          %v3789 = vld [vmem:[#allocation2 + $0x110] sm:$0xff]
          %v3790 = vld [vmem:[#allocation2 + $0x118] sm:$0xff]
          %v3791 = vld [vmem:[#allocation2 + $0x120] sm:$0xff]
          %v3792 = vld [vmem:[#allocation2 + $0x128] sm:$0xff]
          %v3793 = vld [vmem:[#allocation2 + $0x130] sm:$0xff]
          %v3794 = vld [vmem:[#allocation2 + $0x138] sm:$0xff]
          %v3795 = vld [vmem:[#allocation2 + $0x140] sm:$0xff]
          %v3796 = vld [vmem:[#allocation2 + $0x148] sm:$0xff]
          %v3797 = vld [vmem:[#allocation2 + $0x150] sm:$0xff]
          %v3798 = vld [vmem:[#allocation2 + $0x158] sm:$0xff]
          %v3799 = vld [vmem:[#allocation2 + $0x160] sm:$0xff]
          %v3800 = vld [vmem:[#allocation2 + $0x168] sm:$0xff]
          %v3801 = vld [vmem:[#allocation2 + $0x170] sm:$0xff]
          %v3802 = vld [vmem:[#allocation2 + $0x178] sm:$0xff]
          %v3803 = vld [vmem:[#allocation2 + $0x180] sm:$0xff]
          %v3804 = vld [vmem:[#allocation2 + $0x188] sm:$0xff]
          %v3805 = vld [vmem:[#allocation2 + $0x190] sm:$0xff]
          %v3806 = vld [vmem:[#allocation2 + $0x198] sm:$0xff]
          %v3807 = vld [vmem:[#allocation2 + $0x1a0] sm:$0xff]
          %v3808 = vld [vmem:[#allocation2 + $0x1a8] sm:$0xff]
          %v3809 = vld [vmem:[#allocation2 + $0x1b0] sm:$0xff]
          %v3810 = vld [vmem:[#allocation2 + $0x1b8] sm:$0xff]
          %v3811 = vld [vmem:[#allocation2 + $0x1c0] sm:$0xff]
          %v3812 = vld [vmem:[#allocation2 + $0x1c8] sm:$0xff]
          %v3813 = vld [vmem:[#allocation2 + $0x1d0] sm:$0xff]
          %v3814 = vld [vmem:[#allocation2 + $0x1d8] sm:$0xff]
          %v3815 = vld [vmem:[#allocation2 + $0x1e0] sm:$0xff]
          %v3816 = vld [vmem:[#allocation2 + $0x1e8] sm:$0xff]
          %v3817 = vld [vmem:[#allocation2 + $0x1f0] sm:$0xff]
          %v3818 = vld [vmem:[#allocation2 + $0x1f8] sm:$0xff]
          %v3819 = vld [vmem:[#allocation2 + $0x200] sm:$0xff]
          %v3820 = vld [vmem:[#allocation2 + $0x208] sm:$0xff]
          %v3821 = vld [vmem:[#allocation2 + $0x210] sm:$0xff]
          %v3822 = vld [vmem:[#allocation2 + $0x218] sm:$0xff]
          %v3823 = vld [vmem:[#allocation2 + $0x220] sm:$0xff]
          %v3824 = vld [vmem:[#allocation2 + $0x228] sm:$0xff]
          %v3825 = vld [vmem:[#allocation2 + $0x230] sm:$0xff]
          %v3826 = vld [vmem:[#allocation2 + $0x238] sm:$0xff]
          %v3827 = vld [vmem:[#allocation2 + $0x240] sm:$0xff]
          %v3828 = vld [vmem:[#allocation2 + $0x248] sm:$0xff]
          %v3829 = vld [vmem:[#allocation2 + $0x250] sm:$0xff]
          %v3830 = vld [vmem:[#allocation2 + $0x258] sm:$0xff]
          %v3831 = vld [vmem:[#allocation2 + $0x260] sm:$0xff]
          %v3832 = vld [vmem:[#allocation2 + $0x268] sm:$0xff]
          %v3833 = vld [vmem:[#allocation2 + $0x270] sm:$0xff]
          %v3834 = vld [vmem:[#allocation2 + $0x278] sm:$0xff]
          %v3835 = vld [vmem:[#allocation9] sm:$0xff]
          %v3836 = vld [vmem:[#allocation9 + $0x8] sm:$0xff]
          %v3837 = vld [vmem:[#allocation9 + $0x10] sm:$0xff]
          %v3838 = vld [vmem:[#allocation9 + $0x18] sm:$0xff]
          %v3839 = vld [vmem:[#allocation9 + $0x20] sm:$0xff]
          %v3840 = vld [vmem:[#allocation9 + $0x28] sm:$0xff]
          %v3841 = vld [vmem:[#allocation9 + $0x30] sm:$0xff]
          %v3842 = vld [vmem:[#allocation9 + $0x38] sm:$0xff]
          %v3843 = vld [vmem:[#allocation9 + $0x40] sm:$0xff]
          %v3844 = vld [vmem:[#allocation9 + $0x48] sm:$0xff]
          %v3845 = vld [vmem:[#allocation9 + $0x50] sm:$0xff]
          %v3846 = vld [vmem:[#allocation9 + $0x58] sm:$0xff]
          %v3847 = vld [vmem:[#allocation9 + $0x60] sm:$0xff]
          %v3848 = vld [vmem:[#allocation9 + $0x68] sm:$0xff]
          %v3849 = vld [vmem:[#allocation9 + $0x70] sm:$0xff]
          %v3850 = vld [vmem:[#allocation9 + $0x78] sm:$0xff]
          %v3851 = vld [vmem:[%s359] sm:$0xf]
          %v3852 = vld [vmem:[%s359 + $0x4] sm:$0xf]
          %v3853 = vld [vmem:[%s359 + $0x8] sm:$0xf]
          %v3854 = vld [vmem:[%s359 + $0xc] sm:$0xf]
          %v3855 = vld [vmem:[%s359 + $0x10] sm:$0xf]
          %v3856 = vld [vmem:[%s359 + $0x14] sm:$0xf]
          %v3857 = vld [vmem:[%s359 + $0x18] sm:$0xf]
          %v3858 = vld [vmem:[%s359 + $0x1c] sm:$0xf]
          %v3859 = vld [vmem:[%s359 + $0x20] sm:$0xf]
          %v3860 = vld [vmem:[%s359 + $0x24] sm:$0xf]
          %v3861 = vld [vmem:[%s359 + $0x28] sm:$0xf]
          %v3862 = vld [vmem:[%s359 + $0x2c] sm:$0xf]
          %v3863 = vld [vmem:[%s359 + $0x30] sm:$0xf]
          %v3864 = vld [vmem:[%s359 + $0x34] sm:$0xf]
          %v3865 = vld [vmem:[%s359 + $0x38] sm:$0xf]
          %v3866 = vld [vmem:[%s359 + $0x3c] sm:$0xf]
          %v3867 = vld [vmem:[%s359 + $0x40] sm:$0xf]
          %v3868 = vld [vmem:[%s359 + $0x44] sm:$0xf]
          %v3869 = vld [vmem:[%s359 + $0x48] sm:$0xf]
          %v3870 = vld [vmem:[%s359 + $0x4c] sm:$0xf]
          %v3871 = vld [vmem:[%s359 + $0x50] sm:$0xf]
          %v3872 = vld [vmem:[%s359 + $0x54] sm:$0xf]
          %v3873 = vld [vmem:[%s359 + $0x58] sm:$0xf]
          %v3874 = vld [vmem:[%s359 + $0x5c] sm:$0xf]
          %v3875 = vld [vmem:[%s359 + $0x60] sm:$0xf]
          %v3876 = vld [vmem:[%s359 + $0x64] sm:$0xf]
          %v3877 = vld [vmem:[%s359 + $0x68] sm:$0xf]
          %v3878 = vld [vmem:[%s359 + $0x6c] sm:$0xf]
          %v3879 = vld [vmem:[%s359 + $0x70] sm:$0xf]
          %v3880 = vld [vmem:[%s359 + $0x74] sm:$0xf]
          %v3881 = vld [vmem:[%s359 + $0x78] sm:$0xf]
          %v3882 = vld [vmem:[%s359 + $0x7c] sm:$0xf]
          %v3883 = vld [vmem:[%s359 + $0x80] sm:$0xf]
          %v3884 = vld [vmem:[%s359 + $0x84] sm:$0xf]
          %v3885 = vld [vmem:[%s359 + $0x88] sm:$0xf]
          %v3886 = vld [vmem:[%s359 + $0x8c] sm:$0xf]
          %v3887 = vld [vmem:[%s359 + $0x90] sm:$0xf]
          %v3888 = vld [vmem:[%s359 + $0x94] sm:$0xf]
          %v3889 = vld [vmem:[%s359 + $0x98] sm:$0xf]
          %v3890 = vld [vmem:[%s359 + $0x9c] sm:$0xf]
          %v3891 = vld [vmem:[%s359 + $0xa0] sm:$0xf]
          %v3892 = vld [vmem:[%s359 + $0xa4] sm:$0xf]
          %v3893 = vld [vmem:[%s359 + $0xa8] sm:$0xf]
          %v3894 = vld [vmem:[%s359 + $0xac] sm:$0xf]
          %v3895 = vld [vmem:[%s359 + $0xb0] sm:$0xf]
          %v3896 = vld [vmem:[%s359 + $0xb4] sm:$0xf]
          %v3897 = vld [vmem:[%s359 + $0xb8] sm:$0xf]
          %v3898 = vld [vmem:[%s359 + $0xbc] sm:$0xf]
          %v3899 = vld [vmem:[%s359 + $0xc0] sm:$0xf]
          %v3900 = vld [vmem:[%s359 + $0xc4] sm:$0xf]
          %v3901 = vld [vmem:[%s359 + $0xc8] sm:$0xf]
          %v3902 = vld [vmem:[%s359 + $0xcc] sm:$0xf]
          %v3903 = vld [vmem:[%s359 + $0xd0] sm:$0xf]
          %v3904 = vld [vmem:[%s359 + $0xd4] sm:$0xf]
          %v3905 = vld [vmem:[%s359 + $0xd8] sm:$0xf]
          %v3906 = vld [vmem:[%s359 + $0xdc] sm:$0xf]
          %v3907 = vld [vmem:[%s359 + $0xe0] sm:$0xf]
          %v3908 = vld [vmem:[%s359 + $0xe4] sm:$0xf]
          %v3909 = vld [vmem:[%s359 + $0xe8] sm:$0xf]
          %v3910 = vld [vmem:[%s359 + $0xec] sm:$0xf]
          %v3911 = vld [vmem:[%s359 + $0xf0] sm:$0xf]
          %v3912 = vld [vmem:[%s359 + $0xf4] sm:$0xf]
          %v3913 = vld [vmem:[%s359 + $0xf8] sm:$0xf]
          %v3914 = vld [vmem:[%s359 + $0xfc] sm:$0xf]
          %v3915 = vld [vmem:[%s359 + $0x100] sm:$0xf]
          %v3916 = vld [vmem:[%s359 + $0x104] sm:$0xf]
          %v3917 = vld [vmem:[%s359 + $0x108] sm:$0xf]
          %v3918 = vld [vmem:[%s359 + $0x10c] sm:$0xf]
          %v3919 = vld [vmem:[%s359 + $0x110] sm:$0xf]
          %v3920 = vld [vmem:[%s359 + $0x114] sm:$0xf]
          %v3921 = vld [vmem:[%s359 + $0x118] sm:$0xf]
          %v3922 = vld [vmem:[%s359 + $0x11c] sm:$0xf]
          %v3923 = vld [vmem:[%s359 + $0x120] sm:$0xf]
          %v3924 = vld [vmem:[%s359 + $0x124] sm:$0xf]
          %v3925 = vld [vmem:[%s359 + $0x128] sm:$0xf]
          %v3926 = vld [vmem:[%s359 + $0x12c] sm:$0xf]
          %v3927 = vld [vmem:[%s359 + $0x130] sm:$0xf]
          %v3928 = vld [vmem:[%s359 + $0x134] sm:$0xf]
          %v3929 = vld [vmem:[%s359 + $0x138] sm:$0xf]
          %v3930 = vld [vmem:[%s359 + $0x13c] sm:$0xf]
          %v3931 = vunpack.c.l.bf16 %v3851
          %v3932 = vunpack.c.l.bf16 %v3852
          %v3933 = vunpack.c.l.bf16 %v3853
          %v3934 = vunpack.c.l.bf16 %v3854
          %v3935 = vunpack.c.l.bf16 %v3855
          %v3936 = vunpack.c.l.bf16 %v3856
          %v3937 = vunpack.c.l.bf16 %v3857
          %v3938 = vunpack.c.l.bf16 %v3858
          %v3939 = vunpack.c.l.bf16 %v3859
          %v3940 = vunpack.c.l.bf16 %v3860
          %v3941 = vunpack.c.l.bf16 %v3861
          %v3942 = vunpack.c.l.bf16 %v3862
          %v3943 = vunpack.c.l.bf16 %v3863
          %v3944 = vunpack.c.l.bf16 %v3864
          %v3945 = vunpack.c.l.bf16 %v3865
          %v3946 = vunpack.c.l.bf16 %v3866
          %v3947 = vunpack.c.l.bf16 %v3867
          %v3948 = vunpack.c.l.bf16 %v3868
          %v3949 = vunpack.c.l.bf16 %v3869
          %v3950 = vunpack.c.l.bf16 %v3870
          %v3951 = vunpack.c.l.bf16 %v3871
          %v3952 = vunpack.c.l.bf16 %v3872
          %v3953 = vunpack.c.l.bf16 %v3873
          %v3954 = vunpack.c.l.bf16 %v3874
          %v3955 = vunpack.c.l.bf16 %v3875
          %v3956 = vunpack.c.l.bf16 %v3876
          %v3957 = vunpack.c.l.bf16 %v3877
          %v3958 = vunpack.c.l.bf16 %v3878
          %v3959 = vunpack.c.l.bf16 %v3879
          %v3960 = vunpack.c.l.bf16 %v3880
          %v3961 = vunpack.c.l.bf16 %v3881
          %v3962 = vunpack.c.l.bf16 %v3882
          %v3963 = vunpack.c.l.bf16 %v3883
          %v3964 = vunpack.c.l.bf16 %v3884
          %v3965 = vunpack.c.l.bf16 %v3885
          %v3966 = vunpack.c.l.bf16 %v3886
          %v3967 = vunpack.c.l.bf16 %v3887
          %v3968 = vunpack.c.l.bf16 %v3888
          %v3969 = vunpack.c.l.bf16 %v3889
          %v3970 = vunpack.c.l.bf16 %v3890
          %v3971 = vunpack.c.l.bf16 %v3891
          %v3972 = vunpack.c.l.bf16 %v3892
          %v3973 = vunpack.c.l.bf16 %v3893
          %v3974 = vunpack.c.l.bf16 %v3894
          %v3975 = vunpack.c.l.bf16 %v3895
          %v3976 = vunpack.c.l.bf16 %v3896
          %v3977 = vunpack.c.l.bf16 %v3897
          %v3978 = vunpack.c.l.bf16 %v3898
          %v3979 = vunpack.c.l.bf16 %v3899
          %v3980 = vunpack.c.l.bf16 %v3900
          %v3981 = vunpack.c.l.bf16 %v3901
          %v3982 = vunpack.c.l.bf16 %v3902
          %v3983 = vunpack.c.l.bf16 %v3903
          %v3984 = vunpack.c.l.bf16 %v3904
          %v3985 = vunpack.c.l.bf16 %v3905
          %v3986 = vunpack.c.l.bf16 %v3906
          %v3987 = vunpack.c.l.bf16 %v3907
          %v3988 = vunpack.c.l.bf16 %v3908
          %v3989 = vunpack.c.l.bf16 %v3909
          %v3990 = vunpack.c.l.bf16 %v3910
          %v3991 = vunpack.c.l.bf16 %v3911
          %v3992 = vunpack.c.l.bf16 %v3912
          %v3993 = vunpack.c.l.bf16 %v3913
          %v3994 = vunpack.c.l.bf16 %v3914
          %v3995 = vunpack.c.l.bf16 %v3915
          %v3996 = vunpack.c.l.bf16 %v3916
          %v3997 = vunpack.c.l.bf16 %v3917
          %v3998 = vunpack.c.l.bf16 %v3918
          %v3999 = vunpack.c.l.bf16 %v3919
          %v4000 = vunpack.c.l.bf16 %v3920
          %v4001 = vunpack.c.l.bf16 %v3921
          %v4002 = vunpack.c.l.bf16 %v3922
          %v4003 = vunpack.c.l.bf16 %v3923
          %v4004 = vunpack.c.l.bf16 %v3924
          %v4005 = vunpack.c.l.bf16 %v3925
          %v4006 = vunpack.c.l.bf16 %v3926
          %v4007 = vunpack.c.l.bf16 %v3927
          %v4008 = vunpack.c.l.bf16 %v3928
          %v4009 = vunpack.c.l.bf16 %v3929
          %v4010 = vunpack.c.l.bf16 %v3930
          %v4011 = vld [vmem:[#allocation10] sm:$0xff]
          %v4012 = vld [vmem:[#allocation10 + $0x8] sm:$0xff]
          %v4013 = vld [vmem:[#allocation10 + $0x10] sm:$0xff]
          %v4014 = vld [vmem:[#allocation10 + $0x18] sm:$0xff]
          %v4015 = vld [vmem:[#allocation10 + $0x20] sm:$0xff]
          %v4016 = vld [vmem:[#allocation10 + $0x28] sm:$0xff]
          %v4017 = vld [vmem:[#allocation10 + $0x30] sm:$0xff]
          %v4018 = vld [vmem:[#allocation10 + $0x38] sm:$0xff]
          %v4019 = vld [vmem:[#allocation10 + $0x40] sm:$0xff]
          %v4020 = vld [vmem:[#allocation10 + $0x48] sm:$0xff]
          %v4021 = vld [vmem:[#allocation10 + $0x50] sm:$0xff]
          %v4022 = vld [vmem:[#allocation10 + $0x58] sm:$0xff]
          %v4023 = vld [vmem:[#allocation10 + $0x60] sm:$0xff]
          %v4024 = vld [vmem:[#allocation10 + $0x68] sm:$0xff]
          %v4025 = vld [vmem:[#allocation10 + $0x70] sm:$0xff]
          %v4026 = vld [vmem:[#allocation10 + $0x78] sm:$0xff]
          %4027 = vmatprep.subr.mxu0 0.0
          %4028 = vmatpush1.msra.mxu0 %v4011
          %4029 = vmatprep.subr.mxu0 0.0
          %4030 = vmatpush1.msra.mxu0 %v4012
          %4031 = vmatprep.subr.mxu0 0.0
          %4032 = vmatpush1.msra.mxu0 %v4013
          %4033 = vmatprep.subr.mxu0 0.0
          %4034 = vmatpush1.msra.mxu0 %v4014
          %4035 = vmatprep.subr.mxu0 0.0
          %4036 = vmatpush1.msra.mxu0 %v4015
          %4037 = vmatprep.subr.mxu0 0.0
          %4038 = vmatpush1.msra.mxu0 %v4016
          %4039 = vmatprep.subr.mxu0 0.0
          %4040 = vmatpush1.msra.mxu0 %v4017
          %4041 = vmatprep.subr.mxu0 0.0
          %4042 = vmatpush1.msra.mxu0 %v4018
          %4043 = vmatprep.subr.mxu0 0.0
          %4044 = vmatpush1.msra.mxu0 %v4019
          %4045 = vmatprep.subr.mxu0 0.0
          %4046 = vmatpush1.msra.mxu0 %v4020
          %4047 = vmatprep.subr.mxu0 0.0
          %4048 = vmatpush1.msra.mxu0 %v4021
          %4049 = vmatprep.subr.mxu0 0.0
          %4050 = vmatpush1.msra.mxu0 %v4022
          %4051 = vmatprep.subr.mxu0 0.0
          %4052 = vmatpush1.msra.mxu0 %v4023
          %4053 = vmatprep.subr.mxu0 0.0
          %4054 = vmatpush1.msra.mxu0 %v4024
          %4055 = vmatprep.subr.mxu0 0.0
          %4056 = vmatpush1.msra.mxu0 %v4025
          %4057 = vmatprep.subr.mxu0 0.0
          %4058 = vmatpush1.msra.mxu0 %v4026
          %4059 = vmatprep.subr.mxu0 0.0
          %4060 = vmatpush1.msra.mxu0 0.0
          %4061 = vmatprep.subr.mxu0 0.0
          %4062 = vmatpush1.msra.mxu0 0.0
          %4063 = vmatprep.subr.mxu0 0.0
          %4064 = vmatpush1.msra.mxu0 0.0
          %4065 = vmatprep.subr.mxu0 0.0
          %4066 = vmatpush1.msra.mxu0 0.0
          %4067 = vmatprep.subr.mxu0 0.0
          %4068 = vmatpush1.msra.mxu0 0.0
          %4069 = vmatprep.subr.mxu0 0.0
          %4070 = vmatpush1.msra.mxu0 0.0
          %4071 = vmatprep.subr.mxu0 0.0
          %4072 = vmatpush1.msra.mxu0 0.0
          %4073 = vmatprep.subr.mxu0 0.0
          %4074 = vmatpush1.msra.mxu0 0.0
          %4075 = vmatprep.subr.mxu0 0.0
          %4076 = vmatpush1.msra.mxu0 0.0
          %4077 = vmatprep.subr.mxu0 0.0
          %4078 = vmatpush1.msra.mxu0 0.0
          %4079 = vmatprep.subr.mxu0 0.0
          %4080 = vmatpush1.msra.mxu0 0.0
          %4081 = vmatprep.subr.mxu0 0.0
          %4082 = vmatpush1.msra.mxu0 0.0
          %4083 = vmatprep.subr.mxu0 0.0
          %4084 = vmatpush1.msra.mxu0 0.0
          %4085 = vmatprep.subr.mxu0 0.0
          %4086 = vmatpush1.msra.mxu0 0.0
          %4087 = vmatprep.subr.mxu0 0.0
          %4088 = vmatpush1.msra.mxu0 0.0
          %4089 = vmatprep.subr.mxu0 0.0
          %4090 = vmatpush1.msra.mxu0 0.0
          %4091 = vmatprep.mubr.f32.mxu0 0.0
          %4092 = vmatmul.mubr.f32.gmra.mrb[0].mxu0 %v3931
          %v4093 = vpop.f32.mrb[0].mxu0
          %v4094 = vadd.f32 0.0, %v4093
          %v4095 = vpop.f32.mrb[0].mxu0
          %4096 = vmatprep.mubr.f32.mxu0 0.0
          %4097 = vmatmul.mubr.f32.gmra.mrb[0].mxu0 %v3932
          %v4098 = vpop.f32.mrb[0].mxu0
          %v4099 = vadd.f32 0.0, %v4098
          %v4100 = vpop.f32.mrb[0].mxu0
          %4101 = vmatprep.mubr.f32.mxu0 0.0
          %4102 = vmatmul.mubr.f32.gmra.mrb[0].mxu0 %v3933
          %v4103 = vpop.f32.mrb[0].mxu0
          %v4104 = vadd.f32 0.0, %v4103
          %v4105 = vpop.f32.mrb[0].mxu0
          %4106 = vmatprep.mubr.f32.mxu0 0.0
          %4107 = vmatmul.mubr.f32.gmra.mrb[0].mxu0 %v3934
          %v4108 = vpop.f32.mrb[0].mxu0
          %v4109 = vadd.f32 0.0, %v4108
          %v4110 = vpop.f32.mrb[0].mxu0
          %4111 = vmatprep.mubr.f32.mxu0 0.0
          %4112 = vmatmul.mubr.f32.gmra.mrb[0].mxu0 %v3935
          %v4113 = vpop.f32.mrb[0].mxu0
          %v4114 = vadd.f32 0.0, %v4113
          %v4115 = vpop.f32.mrb[0].mxu0
          %4116 = vmatprep.mubr.f32.mxu0 0.0
          %4117 = vmatmul.mubr.f32.gmra.mrb[0].mxu0 %v3936
          %v4118 = vpop.f32.mrb[0].mxu0
          %v4119 = vadd.f32 0.0, %v4118
          %v4120 = vpop.f32.mrb[0].mxu0
          %4121 = vmatprep.mubr.f32.mxu0 0.0
          %4122 = vmatmul.mubr.f32.gmra.mrb[0].mxu0 %v3937
          %v4123 = vpop.f32.mrb[0].mxu0
          %v4124 = vadd.f32 0.0, %v4123
          %v4125 = vpop.f32.mrb[0].mxu0
          %4126 = vmatprep.mubr.f32.mxu0 0.0
          %4127 = vmatmul.mubr.f32.gmra.mrb[0].mxu0 %v3938
          %v4128 = vpop.f32.mrb[0].mxu0
          %v4129 = vadd.f32 0.0, %v4128
          %v4130 = vpop.f32.mrb[0].mxu0
          %4131 = vmatprep.mubr.f32.mxu0 0.0
          %4132 = vmatmul.mubr.f32.gmra.mrb[0].mxu0 %v3939
          %v4133 = vpop.f32.mrb[0].mxu0
          %v4134 = vadd.f32 0.0, %v4133
          %v4135 = vpop.f32.mrb[0].mxu0
          %4136 = vmatprep.mubr.f32.mxu0 0.0
          %4137 = vmatmul.mubr.f32.gmra.mrb[0].mxu0 %v3940
          %v4138 = vpop.f32.mrb[0].mxu0
          %v4139 = vadd.f32 0.0, %v4138
          %v4140 = vpop.f32.mrb[0].mxu0
          %4141 = vmatprep.mubr.f32.mxu0 0.0
          %4142 = vmatmul.mubr.f32.gmra.mrb[0].mxu0 %v3941
          %v4143 = vpop.f32.mrb[0].mxu0
          %v4144 = vadd.f32 0.0, %v4143
          %v4145 = vpop.f32.mrb[0].mxu0
          %4146 = vmatprep.mubr.f32.mxu0 0.0
          %4147 = vmatmul.mubr.f32.gmra.mrb[0].mxu0 %v3942
          %v4148 = vpop.f32.mrb[0].mxu0
          %v4149 = vadd.f32 0.0, %v4148
          %v4150 = vpop.f32.mrb[0].mxu0
          %4151 = vmatprep.mubr.f32.mxu0 0.0
          %4152 = vmatmul.mubr.f32.gmra.mrb[0].mxu0 %v3943
          %v4153 = vpop.f32.mrb[0].mxu0
          %v4154 = vadd.f32 0.0, %v4153
          %v4155 = vpop.f32.mrb[0].mxu0
          %4156 = vmatprep.mubr.f32.mxu0 0.0
          %4157 = vmatmul.mubr.f32.gmra.mrb[0].mxu0 %v3944
          %v4158 = vpop.f32.mrb[0].mxu0
          %v4159 = vadd.f32 0.0, %v4158
          %v4160 = vpop.f32.mrb[0].mxu0
          %4161 = vmatprep.mubr.f32.mxu0 0.0
          %4162 = vmatmul.mubr.f32.gmra.mrb[0].mxu0 %v3945
          %v4163 = vpop.f32.mrb[0].mxu0
          %v4164 = vadd.f32 0.0, %v4163
          %v4165 = vpop.f32.mrb[0].mxu0
          %4166 = vmatprep.mubr.f32.mxu0 0.0
          %4167 = vmatmul.mubr.f32.gmra.mrb[0].mxu0 %v3946
          %v4168 = vpop.f32.mrb[0].mxu0
          %v4169 = vadd.f32 0.0, %v4168
          %v4170 = vpop.f32.mrb[0].mxu0
          %4171 = vmatprep.mubr.f32.mxu0 0.0
          %4172 = vmatmul.mubr.f32.gmra.mrb[0].mxu0 %v3947
          %v4173 = vpop.f32.mrb[0].mxu0
          %v4174 = vadd.f32 0.0, %v4173
          %v4175 = vpop.f32.mrb[0].mxu0
          %4176 = vmatprep.mubr.f32.mxu0 0.0
          %4177 = vmatmul.mubr.f32.gmra.mrb[0].mxu0 %v3948
          %v4178 = vpop.f32.mrb[0].mxu0
          %v4179 = vadd.f32 0.0, %v4178
          %v4180 = vpop.f32.mrb[0].mxu0
          %4181 = vmatprep.mubr.f32.mxu0 0.0
          %4182 = vmatmul.mubr.f32.gmra.mrb[0].mxu0 %v3949
          %v4183 = vpop.f32.mrb[0].mxu0
          %v4184 = vadd.f32 0.0, %v4183
          %v4185 = vpop.f32.mrb[0].mxu0
          %4186 = vmatprep.mubr.f32.mxu0 0.0
          %4187 = vmatmul.mubr.f32.gmra.mrb[0].mxu0 %v3950
          %v4188 = vpop.f32.mrb[0].mxu0
          %v4189 = vadd.f32 0.0, %v4188
          %v4190 = vpop.f32.mrb[0].mxu0
          %4191 = vmatprep.mubr.f32.mxu0 0.0
          %4192 = vmatmul.mubr.f32.gmra.mrb[0].mxu0 %v3951
          %v4193 = vpop.f32.mrb[0].mxu0
          %v4194 = vadd.f32 0.0, %v4193
          %v4195 = vpop.f32.mrb[0].mxu0
          %4196 = vmatprep.mubr.f32.mxu0 0.0
          %4197 = vmatmul.mubr.f32.gmra.mrb[0].mxu0 %v3952
          %v4198 = vpop.f32.mrb[0].mxu0
          %v4199 = vadd.f32 0.0, %v4198
          %v4200 = vpop.f32.mrb[0].mxu0
          %4201 = vmatprep.mubr.f32.mxu0 0.0
          %4202 = vmatmul.mubr.f32.gmra.mrb[0].mxu0 %v3953
          %v4203 = vpop.f32.mrb[0].mxu0
          %v4204 = vadd.f32 0.0, %v4203
          %v4205 = vpop.f32.mrb[0].mxu0
          %4206 = vmatprep.mubr.f32.mxu0 0.0
          %4207 = vmatmul.mubr.f32.gmra.mrb[0].mxu0 %v3954
          %v4208 = vpop.f32.mrb[0].mxu0
          %v4209 = vadd.f32 0.0, %v4208
          %v4210 = vpop.f32.mrb[0].mxu0
          %4211 = vmatprep.mubr.f32.mxu0 0.0
          %4212 = vmatmul.mubr.f32.gmra.mrb[0].mxu0 %v3955
          %v4213 = vpop.f32.mrb[0].mxu0
          %v4214 = vadd.f32 0.0, %v4213
          %v4215 = vpop.f32.mrb[0].mxu0
          %4216 = vmatprep.mubr.f32.mxu0 0.0
          %4217 = vmatmul.mubr.f32.gmra.mrb[0].mxu0 %v3956
          %v4218 = vpop.f32.mrb[0].mxu0
          %v4219 = vadd.f32 0.0, %v4218
          %v4220 = vpop.f32.mrb[0].mxu0
          %4221 = vmatprep.mubr.f32.mxu0 0.0
          %4222 = vmatmul.mubr.f32.gmra.mrb[0].mxu0 %v3957
          %v4223 = vpop.f32.mrb[0].mxu0
          %v4224 = vadd.f32 0.0, %v4223
          %v4225 = vpop.f32.mrb[0].mxu0
          %4226 = vmatprep.mubr.f32.mxu0 0.0
          %4227 = vmatmul.mubr.f32.gmra.mrb[0].mxu0 %v3958
          %v4228 = vpop.f32.mrb[0].mxu0
          %v4229 = vadd.f32 0.0, %v4228
          %v4230 = vpop.f32.mrb[0].mxu0
          %4231 = vmatprep.mubr.f32.mxu0 0.0
          %4232 = vmatmul.mubr.f32.gmra.mrb[0].mxu0 %v3959
          %v4233 = vpop.f32.mrb[0].mxu0
          %v4234 = vadd.f32 0.0, %v4233
          %v4235 = vpop.f32.mrb[0].mxu0
          %4236 = vmatprep.mubr.f32.mxu0 0.0
          %4237 = vmatmul.mubr.f32.gmra.mrb[0].mxu0 %v3960
          %v4238 = vpop.f32.mrb[0].mxu0
          %v4239 = vadd.f32 0.0, %v4238
          %v4240 = vpop.f32.mrb[0].mxu0
          %4241 = vmatprep.mubr.f32.mxu0 0.0
          %4242 = vmatmul.mubr.f32.gmra.mrb[0].mxu0 %v3961
          %v4243 = vpop.f32.mrb[0].mxu0
          %v4244 = vadd.f32 0.0, %v4243
          %v4245 = vpop.f32.mrb[0].mxu0
          %4246 = vmatprep.mubr.f32.mxu0 0.0
          %4247 = vmatmul.mubr.f32.gmra.mrb[0].mxu0 %v3962
          %v4248 = vpop.f32.mrb[0].mxu0
          %v4249 = vadd.f32 0.0, %v4248
          %v4250 = vpop.f32.mrb[0].mxu0
          %4251 = vmatprep.mubr.f32.mxu0 0.0
          %4252 = vmatmul.mubr.f32.gmra.mrb[0].mxu0 %v3963
          %v4253 = vpop.f32.mrb[0].mxu0
          %v4254 = vadd.f32 0.0, %v4253
          %v4255 = vpop.f32.mrb[0].mxu0
          %4256 = vmatprep.mubr.f32.mxu0 0.0
          %4257 = vmatmul.mubr.f32.gmra.mrb[0].mxu0 %v3964
          %v4258 = vpop.f32.mrb[0].mxu0
          %v4259 = vadd.f32 0.0, %v4258
          %v4260 = vpop.f32.mrb[0].mxu0
          %4261 = vmatprep.mubr.f32.mxu0 0.0
          %4262 = vmatmul.mubr.f32.gmra.mrb[0].mxu0 %v3965
          %v4263 = vpop.f32.mrb[0].mxu0
          %v4264 = vadd.f32 0.0, %v4263
          %v4265 = vpop.f32.mrb[0].mxu0
          %4266 = vmatprep.mubr.f32.mxu0 0.0
          %4267 = vmatmul.mubr.f32.gmra.mrb[0].mxu0 %v3966
          %v4268 = vpop.f32.mrb[0].mxu0
          %v4269 = vadd.f32 0.0, %v4268
          %v4270 = vpop.f32.mrb[0].mxu0
          %4271 = vmatprep.mubr.f32.mxu0 0.0
          %4272 = vmatmul.mubr.f32.gmra.mrb[0].mxu0 %v3967
          %v4273 = vpop.f32.mrb[0].mxu0
          %v4274 = vadd.f32 0.0, %v4273
          %v4275 = vpop.f32.mrb[0].mxu0
          %4276 = vmatprep.mubr.f32.mxu0 0.0
          %4277 = vmatmul.mubr.f32.gmra.mrb[0].mxu0 %v3968
          %v4278 = vpop.f32.mrb[0].mxu0
          %v4279 = vadd.f32 0.0, %v4278
          %v4280 = vpop.f32.mrb[0].mxu0
          %4281 = vmatprep.mubr.f32.mxu0 0.0
          %4282 = vmatmul.mubr.f32.gmra.mrb[0].mxu0 %v3969
          %v4283 = vpop.f32.mrb[0].mxu0
          %v4284 = vadd.f32 0.0, %v4283
          %v4285 = vpop.f32.mrb[0].mxu0
          %4286 = vmatprep.mubr.f32.mxu0 0.0
          %4287 = vmatmul.mubr.f32.gmra.mrb[0].mxu0 %v3970
          %v4288 = vpop.f32.mrb[0].mxu0
          %v4289 = vadd.f32 0.0, %v4288
          %v4290 = vpop.f32.mrb[0].mxu0
          %4291 = vmatprep.mubr.f32.mxu0 0.0
          %4292 = vmatmul.mubr.f32.gmra.mrb[0].mxu0 %v3971
          %v4293 = vpop.f32.mrb[0].mxu0
          %v4294 = vadd.f32 0.0, %v4293
          %v4295 = vpop.f32.mrb[0].mxu0
          %4296 = vmatprep.mubr.f32.mxu0 0.0
          %4297 = vmatmul.mubr.f32.gmra.mrb[0].mxu0 %v3972
          %v4298 = vpop.f32.mrb[0].mxu0
          %v4299 = vadd.f32 0.0, %v4298
          %v4300 = vpop.f32.mrb[0].mxu0
          %4301 = vmatprep.mubr.f32.mxu0 0.0
          %4302 = vmatmul.mubr.f32.gmra.mrb[0].mxu0 %v3973
          %v4303 = vpop.f32.mrb[0].mxu0
          %v4304 = vadd.f32 0.0, %v4303
          %v4305 = vpop.f32.mrb[0].mxu0
          %4306 = vmatprep.mubr.f32.mxu0 0.0
          %4307 = vmatmul.mubr.f32.gmra.mrb[0].mxu0 %v3974
          %v4308 = vpop.f32.mrb[0].mxu0
          %v4309 = vadd.f32 0.0, %v4308
          %v4310 = vpop.f32.mrb[0].mxu0
          %4311 = vmatprep.mubr.f32.mxu0 0.0
          %4312 = vmatmul.mubr.f32.gmra.mrb[0].mxu0 %v3975
          %v4313 = vpop.f32.mrb[0].mxu0
          %v4314 = vadd.f32 0.0, %v4313
          %v4315 = vpop.f32.mrb[0].mxu0
          %4316 = vmatprep.mubr.f32.mxu0 0.0
          %4317 = vmatmul.mubr.f32.gmra.mrb[0].mxu0 %v3976
          %v4318 = vpop.f32.mrb[0].mxu0
          %v4319 = vadd.f32 0.0, %v4318
          %v4320 = vpop.f32.mrb[0].mxu0
          %4321 = vmatprep.mubr.f32.mxu0 0.0
          %4322 = vmatmul.mubr.f32.gmra.mrb[0].mxu0 %v3977
          %v4323 = vpop.f32.mrb[0].mxu0
          %v4324 = vadd.f32 0.0, %v4323
          %v4325 = vpop.f32.mrb[0].mxu0
          %4326 = vmatprep.mubr.f32.mxu0 0.0
          %4327 = vmatmul.mubr.f32.gmra.mrb[0].mxu0 %v3978
          %v4328 = vpop.f32.mrb[0].mxu0
          %v4329 = vadd.f32 0.0, %v4328
          %v4330 = vpop.f32.mrb[0].mxu0
          %4331 = vmatprep.mubr.f32.mxu0 0.0
          %4332 = vmatmul.mubr.f32.gmra.mrb[0].mxu0 %v3979
          %v4333 = vpop.f32.mrb[0].mxu0
          %v4334 = vadd.f32 0.0, %v4333
          %v4335 = vpop.f32.mrb[0].mxu0
          %4336 = vmatprep.mubr.f32.mxu0 0.0
          %4337 = vmatmul.mubr.f32.gmra.mrb[0].mxu0 %v3980
          %v4338 = vpop.f32.mrb[0].mxu0
          %v4339 = vadd.f32 0.0, %v4338
          %v4340 = vpop.f32.mrb[0].mxu0
          %4341 = vmatprep.mubr.f32.mxu0 0.0
          %4342 = vmatmul.mubr.f32.gmra.mrb[0].mxu0 %v3981
          %v4343 = vpop.f32.mrb[0].mxu0
          %v4344 = vadd.f32 0.0, %v4343
          %v4345 = vpop.f32.mrb[0].mxu0
          %4346 = vmatprep.mubr.f32.mxu0 0.0
          %4347 = vmatmul.mubr.f32.gmra.mrb[0].mxu0 %v3982
          %v4348 = vpop.f32.mrb[0].mxu0
          %v4349 = vadd.f32 0.0, %v4348
          %v4350 = vpop.f32.mrb[0].mxu0
          %4351 = vmatprep.mubr.f32.mxu0 0.0
          %4352 = vmatmul.mubr.f32.gmra.mrb[0].mxu0 %v3983
          %v4353 = vpop.f32.mrb[0].mxu0
          %v4354 = vadd.f32 0.0, %v4353
          %v4355 = vpop.f32.mrb[0].mxu0
          %4356 = vmatprep.mubr.f32.mxu0 0.0
          %4357 = vmatmul.mubr.f32.gmra.mrb[0].mxu0 %v3984
          %v4358 = vpop.f32.mrb[0].mxu0
          %v4359 = vadd.f32 0.0, %v4358
          %v4360 = vpop.f32.mrb[0].mxu0
          %4361 = vmatprep.mubr.f32.mxu0 0.0
          %4362 = vmatmul.mubr.f32.gmra.mrb[0].mxu0 %v3985
          %v4363 = vpop.f32.mrb[0].mxu0
          %v4364 = vadd.f32 0.0, %v4363
          %v4365 = vpop.f32.mrb[0].mxu0
          %4366 = vmatprep.mubr.f32.mxu0 0.0
          %4367 = vmatmul.mubr.f32.gmra.mrb[0].mxu0 %v3986
          %v4368 = vpop.f32.mrb[0].mxu0
          %v4369 = vadd.f32 0.0, %v4368
          %v4370 = vpop.f32.mrb[0].mxu0
          %4371 = vmatprep.mubr.f32.mxu0 0.0
          %4372 = vmatmul.mubr.f32.gmra.mrb[0].mxu0 %v3987
          %v4373 = vpop.f32.mrb[0].mxu0
          %v4374 = vadd.f32 0.0, %v4373
          %v4375 = vpop.f32.mrb[0].mxu0
          %4376 = vmatprep.mubr.f32.mxu0 0.0
          %4377 = vmatmul.mubr.f32.gmra.mrb[0].mxu0 %v3988
          %v4378 = vpop.f32.mrb[0].mxu0
          %v4379 = vadd.f32 0.0, %v4378
          %v4380 = vpop.f32.mrb[0].mxu0
          %4381 = vmatprep.mubr.f32.mxu0 0.0
          %4382 = vmatmul.mubr.f32.gmra.mrb[0].mxu0 %v3989
          %v4383 = vpop.f32.mrb[0].mxu0
          %v4384 = vadd.f32 0.0, %v4383
          %v4385 = vpop.f32.mrb[0].mxu0
          %4386 = vmatprep.mubr.f32.mxu0 0.0
          %4387 = vmatmul.mubr.f32.gmra.mrb[0].mxu0 %v3990
          %v4388 = vpop.f32.mrb[0].mxu0
          %v4389 = vadd.f32 0.0, %v4388
          %v4390 = vpop.f32.mrb[0].mxu0
          %4391 = vmatprep.mubr.f32.mxu0 0.0
          %4392 = vmatmul.mubr.f32.gmra.mrb[0].mxu0 %v3991
          %v4393 = vpop.f32.mrb[0].mxu0
          %v4394 = vadd.f32 0.0, %v4393
          %v4395 = vpop.f32.mrb[0].mxu0
          %4396 = vmatprep.mubr.f32.mxu0 0.0
          %4397 = vmatmul.mubr.f32.gmra.mrb[0].mxu0 %v3992
          %v4398 = vpop.f32.mrb[0].mxu0
          %v4399 = vadd.f32 0.0, %v4398
          %v4400 = vpop.f32.mrb[0].mxu0
          %4401 = vmatprep.mubr.f32.mxu0 0.0
          %4402 = vmatmul.mubr.f32.gmra.mrb[0].mxu0 %v3993
          %v4403 = vpop.f32.mrb[0].mxu0
          %v4404 = vadd.f32 0.0, %v4403
          %v4405 = vpop.f32.mrb[0].mxu0
          %4406 = vmatprep.mubr.f32.mxu0 0.0
          %4407 = vmatmul.mubr.f32.gmra.mrb[0].mxu0 %v3994
          %v4408 = vpop.f32.mrb[0].mxu0
          %v4409 = vadd.f32 0.0, %v4408
          %v4410 = vpop.f32.mrb[0].mxu0
          %4411 = vmatprep.mubr.f32.mxu0 0.0
          %4412 = vmatmul.mubr.f32.gmra.mrb[0].mxu0 %v3995
          %v4413 = vpop.f32.mrb[0].mxu0
          %v4414 = vadd.f32 0.0, %v4413
          %v4415 = vpop.f32.mrb[0].mxu0
          %4416 = vmatprep.mubr.f32.mxu0 0.0
          %4417 = vmatmul.mubr.f32.gmra.mrb[0].mxu0 %v3996
          %v4418 = vpop.f32.mrb[0].mxu0
          %v4419 = vadd.f32 0.0, %v4418
          %v4420 = vpop.f32.mrb[0].mxu0
          %4421 = vmatprep.mubr.f32.mxu0 0.0
          %4422 = vmatmul.mubr.f32.gmra.mrb[0].mxu0 %v3997
          %v4423 = vpop.f32.mrb[0].mxu0
          %v4424 = vadd.f32 0.0, %v4423
          %v4425 = vpop.f32.mrb[0].mxu0
          %4426 = vmatprep.mubr.f32.mxu0 0.0
          %4427 = vmatmul.mubr.f32.gmra.mrb[0].mxu0 %v3998
          %v4428 = vpop.f32.mrb[0].mxu0
          %v4429 = vadd.f32 0.0, %v4428
          %v4430 = vpop.f32.mrb[0].mxu0
          %4431 = vmatprep.mubr.f32.mxu0 0.0
          %4432 = vmatmul.mubr.f32.gmra.mrb[0].mxu0 %v3999
          %v4433 = vpop.f32.mrb[0].mxu0
          %v4434 = vadd.f32 0.0, %v4433
          %v4435 = vpop.f32.mrb[0].mxu0
          %4436 = vmatprep.mubr.f32.mxu0 0.0
          %4437 = vmatmul.mubr.f32.gmra.mrb[0].mxu0 %v4000
          %v4438 = vpop.f32.mrb[0].mxu0
          %v4439 = vadd.f32 0.0, %v4438
          %v4440 = vpop.f32.mrb[0].mxu0
          %4441 = vmatprep.mubr.f32.mxu0 0.0
          %4442 = vmatmul.mubr.f32.gmra.mrb[0].mxu0 %v4001
          %v4443 = vpop.f32.mrb[0].mxu0
          %v4444 = vadd.f32 0.0, %v4443
          %v4445 = vpop.f32.mrb[0].mxu0
          %4446 = vmatprep.mubr.f32.mxu0 0.0
          %4447 = vmatmul.mubr.f32.gmra.mrb[0].mxu0 %v4002
          %v4448 = vpop.f32.mrb[0].mxu0
          %v4449 = vadd.f32 0.0, %v4448
          %v4450 = vpop.f32.mrb[0].mxu0
          %4451 = vmatprep.mubr.f32.mxu0 0.0
          %4452 = vmatmul.mubr.f32.gmra.mrb[0].mxu0 %v4003
          %v4453 = vpop.f32.mrb[0].mxu0
          %v4454 = vadd.f32 0.0, %v4453
          %v4455 = vpop.f32.mrb[0].mxu0
          %4456 = vmatprep.mubr.f32.mxu0 0.0
          %4457 = vmatmul.mubr.f32.gmra.mrb[0].mxu0 %v4004
          %v4458 = vpop.f32.mrb[0].mxu0
          %v4459 = vadd.f32 0.0, %v4458
          %v4460 = vpop.f32.mrb[0].mxu0
          %4461 = vmatprep.mubr.f32.mxu0 0.0
          %4462 = vmatmul.mubr.f32.gmra.mrb[0].mxu0 %v4005
          %v4463 = vpop.f32.mrb[0].mxu0
          %v4464 = vadd.f32 0.0, %v4463
          %v4465 = vpop.f32.mrb[0].mxu0
          %4466 = vmatprep.mubr.f32.mxu0 0.0
          %4467 = vmatmul.mubr.f32.gmra.mrb[0].mxu0 %v4006
          %v4468 = vpop.f32.mrb[0].mxu0
          %v4469 = vadd.f32 0.0, %v4468
          %v4470 = vpop.f32.mrb[0].mxu0
          %4471 = vmatprep.mubr.f32.mxu0 0.0
          %4472 = vmatmul.mubr.f32.gmra.mrb[0].mxu0 %v4007
          %v4473 = vpop.f32.mrb[0].mxu0
          %v4474 = vadd.f32 0.0, %v4473
          %v4475 = vpop.f32.mrb[0].mxu0
          %4476 = vmatprep.mubr.f32.mxu0 0.0
          %4477 = vmatmul.mubr.f32.gmra.mrb[0].mxu0 %v4008
          %v4478 = vpop.f32.mrb[0].mxu0
          %v4479 = vadd.f32 0.0, %v4478
          %v4480 = vpop.f32.mrb[0].mxu0
          %4481 = vmatprep.mubr.f32.mxu0 0.0
          %4482 = vmatmul.mubr.f32.gmra.mrb[0].mxu0 %v4009
          %v4483 = vpop.f32.mrb[0].mxu0
          %v4484 = vadd.f32 0.0, %v4483
          %v4485 = vpop.f32.mrb[0].mxu0
          %4486 = vmatprep.mubr.f32.mxu0 0.0
          %4487 = vmatmul.mubr.f32.gmra.mrb[0].mxu0 %v4010
          %v4488 = vpop.f32.mrb[0].mxu0
          %v4489 = vadd.f32 0.0, %v4488
          %v4490 = vpop.f32.mrb[0].mxu0
          %4491 = vdwg.mxu0
          %4492 = vmatprep.subr.mxu0 0.0
          %4493 = vmatpush1.msra.mxu0 %v3835
          %4494 = vmatprep.subr.mxu0 0.0
          %4495 = vmatpush1.msra.mxu0 %v3836
          %4496 = vmatprep.subr.mxu0 0.0
          %4497 = vmatpush1.msra.mxu0 %v3837
          %4498 = vmatprep.subr.mxu0 0.0
          %4499 = vmatpush1.msra.mxu0 %v3838
          %4500 = vmatprep.subr.mxu0 0.0
          %4501 = vmatpush1.msra.mxu0 %v3839
          %4502 = vmatprep.subr.mxu0 0.0
          %4503 = vmatpush1.msra.mxu0 %v3840
          %4504 = vmatprep.subr.mxu0 0.0
          %4505 = vmatpush1.msra.mxu0 %v3841
          %4506 = vmatprep.subr.mxu0 0.0
          %4507 = vmatpush1.msra.mxu0 %v3842
          %4508 = vmatprep.subr.mxu0 0.0
          %4509 = vmatpush1.msra.mxu0 %v3843
          %4510 = vmatprep.subr.mxu0 0.0
          %4511 = vmatpush1.msra.mxu0 %v3844
          %4512 = vmatprep.subr.mxu0 0.0
          %4513 = vmatpush1.msra.mxu0 %v3845
          %4514 = vmatprep.subr.mxu0 0.0
          %4515 = vmatpush1.msra.mxu0 %v3846
          %4516 = vmatprep.subr.mxu0 0.0
          %4517 = vmatpush1.msra.mxu0 %v3847
          %4518 = vmatprep.subr.mxu0 0.0
          %4519 = vmatpush1.msra.mxu0 %v3848
          %4520 = vmatprep.subr.mxu0 0.0
          %4521 = vmatpush1.msra.mxu0 %v3849
          %4522 = vmatprep.subr.mxu0 0.0
          %4523 = vmatpush1.msra.mxu0 %v3850
          %4524 = vmatprep.subr.mxu0 0.0
          %4525 = vmatpush1.msra.mxu0 0.0
          %4526 = vmatprep.subr.mxu0 0.0
          %4527 = vmatpush1.msra.mxu0 0.0
          %4528 = vmatprep.subr.mxu0 0.0
          %4529 = vmatpush1.msra.mxu0 0.0
          %4530 = vmatprep.subr.mxu0 0.0
          %4531 = vmatpush1.msra.mxu0 0.0
          %4532 = vmatprep.subr.mxu0 0.0
          %4533 = vmatpush1.msra.mxu0 0.0
          %4534 = vmatprep.subr.mxu0 0.0
          %4535 = vmatpush1.msra.mxu0 0.0
          %4536 = vmatprep.subr.mxu0 0.0
          %4537 = vmatpush1.msra.mxu0 0.0
          %4538 = vmatprep.subr.mxu0 0.0
          %4539 = vmatpush1.msra.mxu0 0.0
          %4540 = vmatprep.subr.mxu0 0.0
          %4541 = vmatpush1.msra.mxu0 0.0
          %4542 = vmatprep.subr.mxu0 0.0
          %4543 = vmatpush1.msra.mxu0 0.0
          %4544 = vmatprep.subr.mxu0 0.0
          %4545 = vmatpush1.msra.mxu0 0.0
          %4546 = vmatprep.subr.mxu0 0.0
          %4547 = vmatpush1.msra.mxu0 0.0
          %4548 = vmatprep.subr.mxu0 0.0
          %4549 = vmatpush1.msra.mxu0 0.0
          %4550 = vmatprep.subr.mxu0 0.0
          %4551 = vmatpush1.msra.mxu0 0.0
          %4552 = vmatprep.subr.mxu0 0.0
          %4553 = vmatpush1.msra.mxu0 0.0
          %4554 = vmatprep.subr.mxu0 0.0
          %4555 = vmatpush1.msra.mxu0 0.0
          %4556 = vmatprep.mubr.f32.mxu0 0.0
          %4557 = vmatmul.mubr.f32.gmra.mrb[0].mxu0 %v3755
          %v4558 = vpop.f32.mrb[0].mxu0
          %v4559 = vadd.f32 %v4094, %v4558
          %v4560 = vpop.f32.mrb[0].mxu0
          %4561 = vmatprep.mubr.f32.mxu0 0.0
          %4562 = vmatmul.mubr.f32.gmra.mrb[0].mxu0 %v3756
          %v4563 = vpop.f32.mrb[0].mxu0
          %v4564 = vadd.f32 %v4099, %v4563
          %v4565 = vpop.f32.mrb[0].mxu0
          %4566 = vmatprep.mubr.f32.mxu0 0.0
          %4567 = vmatmul.mubr.f32.gmra.mrb[0].mxu0 %v3757
          %v4568 = vpop.f32.mrb[0].mxu0
          %v4569 = vadd.f32 %v4104, %v4568
          %v4570 = vpop.f32.mrb[0].mxu0
          %4571 = vmatprep.mubr.f32.mxu0 0.0
          %4572 = vmatmul.mubr.f32.gmra.mrb[0].mxu0 %v3758
          %v4573 = vpop.f32.mrb[0].mxu0
          %v4574 = vadd.f32 %v4109, %v4573
          %v4575 = vpop.f32.mrb[0].mxu0
          %4576 = vmatprep.mubr.f32.mxu0 0.0
          %4577 = vmatmul.mubr.f32.gmra.mrb[0].mxu0 %v3759
          %v4578 = vpop.f32.mrb[0].mxu0
          %v4579 = vadd.f32 %v4114, %v4578
          %v4580 = vpop.f32.mrb[0].mxu0
          %4581 = vmatprep.mubr.f32.mxu0 0.0
          %4582 = vmatmul.mubr.f32.gmra.mrb[0].mxu0 %v3760
          %v4583 = vpop.f32.mrb[0].mxu0
          %v4584 = vadd.f32 %v4119, %v4583
          %v4585 = vpop.f32.mrb[0].mxu0
          %4586 = vmatprep.mubr.f32.mxu0 0.0
          %4587 = vmatmul.mubr.f32.gmra.mrb[0].mxu0 %v3761
          %v4588 = vpop.f32.mrb[0].mxu0
          %v4589 = vadd.f32 %v4124, %v4588
          %v4590 = vpop.f32.mrb[0].mxu0
          %4591 = vmatprep.mubr.f32.mxu0 0.0
          %4592 = vmatmul.mubr.f32.gmra.mrb[0].mxu0 %v3762
          %v4593 = vpop.f32.mrb[0].mxu0
          %v4594 = vadd.f32 %v4129, %v4593
          %v4595 = vpop.f32.mrb[0].mxu0
          %4596 = vmatprep.mubr.f32.mxu0 0.0
          %4597 = vmatmul.mubr.f32.gmra.mrb[0].mxu0 %v3763
          %v4598 = vpop.f32.mrb[0].mxu0
          %v4599 = vadd.f32 %v4134, %v4598
          %v4600 = vpop.f32.mrb[0].mxu0
          %4601 = vmatprep.mubr.f32.mxu0 0.0
          %4602 = vmatmul.mubr.f32.gmra.mrb[0].mxu0 %v3764
          %v4603 = vpop.f32.mrb[0].mxu0
          %v4604 = vadd.f32 %v4139, %v4603
          %v4605 = vpop.f32.mrb[0].mxu0
          %4606 = vmatprep.mubr.f32.mxu0 0.0
          %4607 = vmatmul.mubr.f32.gmra.mrb[0].mxu0 %v3765
          %v4608 = vpop.f32.mrb[0].mxu0
          %v4609 = vadd.f32 %v4144, %v4608
          %v4610 = vpop.f32.mrb[0].mxu0
          %4611 = vmatprep.mubr.f32.mxu0 0.0
          %4612 = vmatmul.mubr.f32.gmra.mrb[0].mxu0 %v3766
          %v4613 = vpop.f32.mrb[0].mxu0
          %v4614 = vadd.f32 %v4149, %v4613
          %v4615 = vpop.f32.mrb[0].mxu0
          %4616 = vmatprep.mubr.f32.mxu0 0.0
          %4617 = vmatmul.mubr.f32.gmra.mrb[0].mxu0 %v3767
          %v4618 = vpop.f32.mrb[0].mxu0
          %v4619 = vadd.f32 %v4154, %v4618
          %v4620 = vpop.f32.mrb[0].mxu0
          %4621 = vmatprep.mubr.f32.mxu0 0.0
          %4622 = vmatmul.mubr.f32.gmra.mrb[0].mxu0 %v3768
          %v4623 = vpop.f32.mrb[0].mxu0
          %v4624 = vadd.f32 %v4159, %v4623
          %v4625 = vpop.f32.mrb[0].mxu0
          %4626 = vmatprep.mubr.f32.mxu0 0.0
          %4627 = vmatmul.mubr.f32.gmra.mrb[0].mxu0 %v3769
          %v4628 = vpop.f32.mrb[0].mxu0
          %v4629 = vadd.f32 %v4164, %v4628
          %v4630 = vpop.f32.mrb[0].mxu0
          %4631 = vmatprep.mubr.f32.mxu0 0.0
          %4632 = vmatmul.mubr.f32.gmra.mrb[0].mxu0 %v3770
          %v4633 = vpop.f32.mrb[0].mxu0
          %v4634 = vadd.f32 %v4169, %v4633
          %v4635 = vpop.f32.mrb[0].mxu0
          %4636 = vmatprep.mubr.f32.mxu0 0.0
          %4637 = vmatmul.mubr.f32.gmra.mrb[0].mxu0 %v3771
          %v4638 = vpop.f32.mrb[0].mxu0
          %v4639 = vadd.f32 %v4174, %v4638
          %v4640 = vpop.f32.mrb[0].mxu0
          %4641 = vmatprep.mubr.f32.mxu0 0.0
          %4642 = vmatmul.mubr.f32.gmra.mrb[0].mxu0 %v3772
          %v4643 = vpop.f32.mrb[0].mxu0
          %v4644 = vadd.f32 %v4179, %v4643
          %v4645 = vpop.f32.mrb[0].mxu0
          %4646 = vmatprep.mubr.f32.mxu0 0.0
          %4647 = vmatmul.mubr.f32.gmra.mrb[0].mxu0 %v3773
          %v4648 = vpop.f32.mrb[0].mxu0
          %v4649 = vadd.f32 %v4184, %v4648
          %v4650 = vpop.f32.mrb[0].mxu0
          %4651 = vmatprep.mubr.f32.mxu0 0.0
          %4652 = vmatmul.mubr.f32.gmra.mrb[0].mxu0 %v3774
          %v4653 = vpop.f32.mrb[0].mxu0
          %v4654 = vadd.f32 %v4189, %v4653
          %v4655 = vpop.f32.mrb[0].mxu0
          %4656 = vmatprep.mubr.f32.mxu0 0.0
          %4657 = vmatmul.mubr.f32.gmra.mrb[0].mxu0 %v3775
          %v4658 = vpop.f32.mrb[0].mxu0
          %v4659 = vadd.f32 %v4194, %v4658
          %v4660 = vpop.f32.mrb[0].mxu0
          %4661 = vmatprep.mubr.f32.mxu0 0.0
          %4662 = vmatmul.mubr.f32.gmra.mrb[0].mxu0 %v3776
          %v4663 = vpop.f32.mrb[0].mxu0
          %v4664 = vadd.f32 %v4199, %v4663
          %v4665 = vpop.f32.mrb[0].mxu0
          %4666 = vmatprep.mubr.f32.mxu0 0.0
          %4667 = vmatmul.mubr.f32.gmra.mrb[0].mxu0 %v3777
          %v4668 = vpop.f32.mrb[0].mxu0
          %v4669 = vadd.f32 %v4204, %v4668
          %v4670 = vpop.f32.mrb[0].mxu0
          %4671 = vmatprep.mubr.f32.mxu0 0.0
          %4672 = vmatmul.mubr.f32.gmra.mrb[0].mxu0 %v3778
          %v4673 = vpop.f32.mrb[0].mxu0
          %v4674 = vadd.f32 %v4209, %v4673
          %v4675 = vpop.f32.mrb[0].mxu0
          %4676 = vmatprep.mubr.f32.mxu0 0.0
          %4677 = vmatmul.mubr.f32.gmra.mrb[0].mxu0 %v3779
          %v4678 = vpop.f32.mrb[0].mxu0
          %v4679 = vadd.f32 %v4214, %v4678
          %v4680 = vpop.f32.mrb[0].mxu0
          %4681 = vmatprep.mubr.f32.mxu0 0.0
          %4682 = vmatmul.mubr.f32.gmra.mrb[0].mxu0 %v3780
          %v4683 = vpop.f32.mrb[0].mxu0
          %v4684 = vadd.f32 %v4219, %v4683
          %v4685 = vpop.f32.mrb[0].mxu0
          %4686 = vmatprep.mubr.f32.mxu0 0.0
          %4687 = vmatmul.mubr.f32.gmra.mrb[0].mxu0 %v3781
          %v4688 = vpop.f32.mrb[0].mxu0
          %v4689 = vadd.f32 %v4224, %v4688
          %v4690 = vpop.f32.mrb[0].mxu0
          %4691 = vmatprep.mubr.f32.mxu0 0.0
          %4692 = vmatmul.mubr.f32.gmra.mrb[0].mxu0 %v3782
          %v4693 = vpop.f32.mrb[0].mxu0
          %v4694 = vadd.f32 %v4229, %v4693
          %v4695 = vpop.f32.mrb[0].mxu0
          %4696 = vmatprep.mubr.f32.mxu0 0.0
          %4697 = vmatmul.mubr.f32.gmra.mrb[0].mxu0 %v3783
          %v4698 = vpop.f32.mrb[0].mxu0
          %v4699 = vadd.f32 %v4234, %v4698
          %v4700 = vpop.f32.mrb[0].mxu0
          %4701 = vmatprep.mubr.f32.mxu0 0.0
          %4702 = vmatmul.mubr.f32.gmra.mrb[0].mxu0 %v3784
          %v4703 = vpop.f32.mrb[0].mxu0
          %v4704 = vadd.f32 %v4239, %v4703
          %v4705 = vpop.f32.mrb[0].mxu0
          %4706 = vmatprep.mubr.f32.mxu0 0.0
          %4707 = vmatmul.mubr.f32.gmra.mrb[0].mxu0 %v3785
          %v4708 = vpop.f32.mrb[0].mxu0
          %v4709 = vadd.f32 %v4244, %v4708
          %v4710 = vpop.f32.mrb[0].mxu0
          %4711 = vmatprep.mubr.f32.mxu0 0.0
          %4712 = vmatmul.mubr.f32.gmra.mrb[0].mxu0 %v3786
          %v4713 = vpop.f32.mrb[0].mxu0
          %v4714 = vadd.f32 %v4249, %v4713
          %v4715 = vpop.f32.mrb[0].mxu0
          %4716 = vmatprep.mubr.f32.mxu0 0.0
          %4717 = vmatmul.mubr.f32.gmra.mrb[0].mxu0 %v3787
          %v4718 = vpop.f32.mrb[0].mxu0
          %v4719 = vadd.f32 %v4254, %v4718
          %v4720 = vpop.f32.mrb[0].mxu0
          %4721 = vmatprep.mubr.f32.mxu0 0.0
          %4722 = vmatmul.mubr.f32.gmra.mrb[0].mxu0 %v3788
          %v4723 = vpop.f32.mrb[0].mxu0
          %v4724 = vadd.f32 %v4259, %v4723
          %v4725 = vpop.f32.mrb[0].mxu0
          %4726 = vmatprep.mubr.f32.mxu0 0.0
          %4727 = vmatmul.mubr.f32.gmra.mrb[0].mxu0 %v3789
          %v4728 = vpop.f32.mrb[0].mxu0
          %v4729 = vadd.f32 %v4264, %v4728
          %v4730 = vpop.f32.mrb[0].mxu0
          %4731 = vmatprep.mubr.f32.mxu0 0.0
          %4732 = vmatmul.mubr.f32.gmra.mrb[0].mxu0 %v3790
          %v4733 = vpop.f32.mrb[0].mxu0
          %v4734 = vadd.f32 %v4269, %v4733
          %v4735 = vpop.f32.mrb[0].mxu0
          %4736 = vmatprep.mubr.f32.mxu0 0.0
          %4737 = vmatmul.mubr.f32.gmra.mrb[0].mxu0 %v3791
          %v4738 = vpop.f32.mrb[0].mxu0
          %v4739 = vadd.f32 %v4274, %v4738
          %v4740 = vpop.f32.mrb[0].mxu0
          %4741 = vmatprep.mubr.f32.mxu0 0.0
          %4742 = vmatmul.mubr.f32.gmra.mrb[0].mxu0 %v3792
          %v4743 = vpop.f32.mrb[0].mxu0
          %v4744 = vadd.f32 %v4279, %v4743
          %v4745 = vpop.f32.mrb[0].mxu0
          %4746 = vmatprep.mubr.f32.mxu0 0.0
          %4747 = vmatmul.mubr.f32.gmra.mrb[0].mxu0 %v3793
          %v4748 = vpop.f32.mrb[0].mxu0
          %v4749 = vadd.f32 %v4284, %v4748
          %v4750 = vpop.f32.mrb[0].mxu0
          %4751 = vmatprep.mubr.f32.mxu0 0.0
          %4752 = vmatmul.mubr.f32.gmra.mrb[0].mxu0 %v3794
          %v4753 = vpop.f32.mrb[0].mxu0
          %v4754 = vadd.f32 %v4289, %v4753
          %v4755 = vpop.f32.mrb[0].mxu0
          %4756 = vmatprep.mubr.f32.mxu0 0.0
          %4757 = vmatmul.mubr.f32.gmra.mrb[0].mxu0 %v3795
          %v4758 = vpop.f32.mrb[0].mxu0
          %v4759 = vadd.f32 %v4294, %v4758
          %v4760 = vpop.f32.mrb[0].mxu0
          %4761 = vmatprep.mubr.f32.mxu0 0.0
          %4762 = vmatmul.mubr.f32.gmra.mrb[0].mxu0 %v3796
          %v4763 = vpop.f32.mrb[0].mxu0
          %v4764 = vadd.f32 %v4299, %v4763
          %v4765 = vpop.f32.mrb[0].mxu0
          %4766 = vmatprep.mubr.f32.mxu0 0.0
          %4767 = vmatmul.mubr.f32.gmra.mrb[0].mxu0 %v3797
          %v4768 = vpop.f32.mrb[0].mxu0
          %v4769 = vadd.f32 %v4304, %v4768
          %v4770 = vpop.f32.mrb[0].mxu0
          %4771 = vmatprep.mubr.f32.mxu0 0.0
          %4772 = vmatmul.mubr.f32.gmra.mrb[0].mxu0 %v3798
          %v4773 = vpop.f32.mrb[0].mxu0
          %v4774 = vadd.f32 %v4309, %v4773
          %v4775 = vpop.f32.mrb[0].mxu0
          %4776 = vmatprep.mubr.f32.mxu0 0.0
          %4777 = vmatmul.mubr.f32.gmra.mrb[0].mxu0 %v3799
          %v4778 = vpop.f32.mrb[0].mxu0
          %v4779 = vadd.f32 %v4314, %v4778
          %v4780 = vpop.f32.mrb[0].mxu0
          %4781 = vmatprep.mubr.f32.mxu0 0.0
          %4782 = vmatmul.mubr.f32.gmra.mrb[0].mxu0 %v3800
          %v4783 = vpop.f32.mrb[0].mxu0
          %v4784 = vadd.f32 %v4319, %v4783
          %v4785 = vpop.f32.mrb[0].mxu0
          %4786 = vmatprep.mubr.f32.mxu0 0.0
          %4787 = vmatmul.mubr.f32.gmra.mrb[0].mxu0 %v3801
          %v4788 = vpop.f32.mrb[0].mxu0
          %v4789 = vadd.f32 %v4324, %v4788
          %v4790 = vpop.f32.mrb[0].mxu0
          %4791 = vmatprep.mubr.f32.mxu0 0.0
          %4792 = vmatmul.mubr.f32.gmra.mrb[0].mxu0 %v3802
          %v4793 = vpop.f32.mrb[0].mxu0
          %v4794 = vadd.f32 %v4329, %v4793
          %v4795 = vpop.f32.mrb[0].mxu0
          %4796 = vmatprep.mubr.f32.mxu0 0.0
          %4797 = vmatmul.mubr.f32.gmra.mrb[0].mxu0 %v3803
          %v4798 = vpop.f32.mrb[0].mxu0
          %v4799 = vadd.f32 %v4334, %v4798
          %v4800 = vpop.f32.mrb[0].mxu0
          %4801 = vmatprep.mubr.f32.mxu0 0.0
          %4802 = vmatmul.mubr.f32.gmra.mrb[0].mxu0 %v3804
          %v4803 = vpop.f32.mrb[0].mxu0
          %v4804 = vadd.f32 %v4339, %v4803
          %v4805 = vpop.f32.mrb[0].mxu0
          %4806 = vmatprep.mubr.f32.mxu0 0.0
          %4807 = vmatmul.mubr.f32.gmra.mrb[0].mxu0 %v3805
          %v4808 = vpop.f32.mrb[0].mxu0
          %v4809 = vadd.f32 %v4344, %v4808
          %v4810 = vpop.f32.mrb[0].mxu0
          %4811 = vmatprep.mubr.f32.mxu0 0.0
          %4812 = vmatmul.mubr.f32.gmra.mrb[0].mxu0 %v3806
          %v4813 = vpop.f32.mrb[0].mxu0
          %v4814 = vadd.f32 %v4349, %v4813
          %v4815 = vpop.f32.mrb[0].mxu0
          %4816 = vmatprep.mubr.f32.mxu0 0.0
          %4817 = vmatmul.mubr.f32.gmra.mrb[0].mxu0 %v3807
          %v4818 = vpop.f32.mrb[0].mxu0
          %v4819 = vadd.f32 %v4354, %v4818
          %v4820 = vpop.f32.mrb[0].mxu0
          %4821 = vmatprep.mubr.f32.mxu0 0.0
          %4822 = vmatmul.mubr.f32.gmra.mrb[0].mxu0 %v3808
          %v4823 = vpop.f32.mrb[0].mxu0
          %v4824 = vadd.f32 %v4359, %v4823
          %v4825 = vpop.f32.mrb[0].mxu0
          %4826 = vmatprep.mubr.f32.mxu0 0.0
          %4827 = vmatmul.mubr.f32.gmra.mrb[0].mxu0 %v3809
          %v4828 = vpop.f32.mrb[0].mxu0
          %v4829 = vadd.f32 %v4364, %v4828
          %v4830 = vpop.f32.mrb[0].mxu0
          %4831 = vmatprep.mubr.f32.mxu0 0.0
          %4832 = vmatmul.mubr.f32.gmra.mrb[0].mxu0 %v3810
          %v4833 = vpop.f32.mrb[0].mxu0
          %v4834 = vadd.f32 %v4369, %v4833
          %v4835 = vpop.f32.mrb[0].mxu0
          %4836 = vmatprep.mubr.f32.mxu0 0.0
          %4837 = vmatmul.mubr.f32.gmra.mrb[0].mxu0 %v3811
          %v4838 = vpop.f32.mrb[0].mxu0
          %v4839 = vadd.f32 %v4374, %v4838
          %v4840 = vpop.f32.mrb[0].mxu0
          %4841 = vmatprep.mubr.f32.mxu0 0.0
          %4842 = vmatmul.mubr.f32.gmra.mrb[0].mxu0 %v3812
          %v4843 = vpop.f32.mrb[0].mxu0
          %v4844 = vadd.f32 %v4379, %v4843
          %v4845 = vpop.f32.mrb[0].mxu0
          %4846 = vmatprep.mubr.f32.mxu0 0.0
          %4847 = vmatmul.mubr.f32.gmra.mrb[0].mxu0 %v3813
          %v4848 = vpop.f32.mrb[0].mxu0
          %v4849 = vadd.f32 %v4384, %v4848
          %v4850 = vpop.f32.mrb[0].mxu0
          %4851 = vmatprep.mubr.f32.mxu0 0.0
          %4852 = vmatmul.mubr.f32.gmra.mrb[0].mxu0 %v3814
          %v4853 = vpop.f32.mrb[0].mxu0
          %v4854 = vadd.f32 %v4389, %v4853
          %v4855 = vpop.f32.mrb[0].mxu0
          %4856 = vmatprep.mubr.f32.mxu0 0.0
          %4857 = vmatmul.mubr.f32.gmra.mrb[0].mxu0 %v3815
          %v4858 = vpop.f32.mrb[0].mxu0
          %v4859 = vadd.f32 %v4394, %v4858
          %v4860 = vpop.f32.mrb[0].mxu0
          %4861 = vmatprep.mubr.f32.mxu0 0.0
          %4862 = vmatmul.mubr.f32.gmra.mrb[0].mxu0 %v3816
          %v4863 = vpop.f32.mrb[0].mxu0
          %v4864 = vadd.f32 %v4399, %v4863
          %v4865 = vpop.f32.mrb[0].mxu0
          %4866 = vmatprep.mubr.f32.mxu0 0.0
          %4867 = vmatmul.mubr.f32.gmra.mrb[0].mxu0 %v3817
          %v4868 = vpop.f32.mrb[0].mxu0
          %v4869 = vadd.f32 %v4404, %v4868
          %v4870 = vpop.f32.mrb[0].mxu0
          %4871 = vmatprep.mubr.f32.mxu0 0.0
          %4872 = vmatmul.mubr.f32.gmra.mrb[0].mxu0 %v3818
          %v4873 = vpop.f32.mrb[0].mxu0
          %v4874 = vadd.f32 %v4409, %v4873
          %v4875 = vpop.f32.mrb[0].mxu0
          %4876 = vmatprep.mubr.f32.mxu0 0.0
          %4877 = vmatmul.mubr.f32.gmra.mrb[0].mxu0 %v3819
          %v4878 = vpop.f32.mrb[0].mxu0
          %v4879 = vadd.f32 %v4414, %v4878
          %v4880 = vpop.f32.mrb[0].mxu0
          %4881 = vmatprep.mubr.f32.mxu0 0.0
          %4882 = vmatmul.mubr.f32.gmra.mrb[0].mxu0 %v3820
          %v4883 = vpop.f32.mrb[0].mxu0
          %v4884 = vadd.f32 %v4419, %v4883
          %v4885 = vpop.f32.mrb[0].mxu0
          %4886 = vmatprep.mubr.f32.mxu0 0.0
          %4887 = vmatmul.mubr.f32.gmra.mrb[0].mxu0 %v3821
          %v4888 = vpop.f32.mrb[0].mxu0
          %v4889 = vadd.f32 %v4424, %v4888
          %v4890 = vpop.f32.mrb[0].mxu0
          %4891 = vmatprep.mubr.f32.mxu0 0.0
          %4892 = vmatmul.mubr.f32.gmra.mrb[0].mxu0 %v3822
          %v4893 = vpop.f32.mrb[0].mxu0
          %v4894 = vadd.f32 %v4429, %v4893
          %v4895 = vpop.f32.mrb[0].mxu0
          %4896 = vmatprep.mubr.f32.mxu0 0.0
          %4897 = vmatmul.mubr.f32.gmra.mrb[0].mxu0 %v3823
          %v4898 = vpop.f32.mrb[0].mxu0
          %v4899 = vadd.f32 %v4434, %v4898
          %v4900 = vpop.f32.mrb[0].mxu0
          %4901 = vmatprep.mubr.f32.mxu0 0.0
          %4902 = vmatmul.mubr.f32.gmra.mrb[0].mxu0 %v3824
          %v4903 = vpop.f32.mrb[0].mxu0
          %v4904 = vadd.f32 %v4439, %v4903
          %v4905 = vpop.f32.mrb[0].mxu0
          %4906 = vmatprep.mubr.f32.mxu0 0.0
          %4907 = vmatmul.mubr.f32.gmra.mrb[0].mxu0 %v3825
          %v4908 = vpop.f32.mrb[0].mxu0
          %v4909 = vadd.f32 %v4444, %v4908
          %v4910 = vpop.f32.mrb[0].mxu0
          %4911 = vmatprep.mubr.f32.mxu0 0.0
          %4912 = vmatmul.mubr.f32.gmra.mrb[0].mxu0 %v3826
          %v4913 = vpop.f32.mrb[0].mxu0
          %v4914 = vadd.f32 %v4449, %v4913
          %v4915 = vpop.f32.mrb[0].mxu0
          %4916 = vmatprep.mubr.f32.mxu0 0.0
          %4917 = vmatmul.mubr.f32.gmra.mrb[0].mxu0 %v3827
          %v4918 = vpop.f32.mrb[0].mxu0
          %v4919 = vadd.f32 %v4454, %v4918
          %v4920 = vpop.f32.mrb[0].mxu0
          %4921 = vmatprep.mubr.f32.mxu0 0.0
          %4922 = vmatmul.mubr.f32.gmra.mrb[0].mxu0 %v3828
          %v4923 = vpop.f32.mrb[0].mxu0
          %v4924 = vadd.f32 %v4459, %v4923
          %v4925 = vpop.f32.mrb[0].mxu0
          %4926 = vmatprep.mubr.f32.mxu0 0.0
          %4927 = vmatmul.mubr.f32.gmra.mrb[0].mxu0 %v3829
          %v4928 = vpop.f32.mrb[0].mxu0
          %v4929 = vadd.f32 %v4464, %v4928
          %v4930 = vpop.f32.mrb[0].mxu0
          %4931 = vmatprep.mubr.f32.mxu0 0.0
          %4932 = vmatmul.mubr.f32.gmra.mrb[0].mxu0 %v3830
          %v4933 = vpop.f32.mrb[0].mxu0
          %v4934 = vadd.f32 %v4469, %v4933
          %v4935 = vpop.f32.mrb[0].mxu0
          %4936 = vmatprep.mubr.f32.mxu0 0.0
          %4937 = vmatmul.mubr.f32.gmra.mrb[0].mxu0 %v3831
          %v4938 = vpop.f32.mrb[0].mxu0
          %v4939 = vadd.f32 %v4474, %v4938
          %v4940 = vpop.f32.mrb[0].mxu0
          %4941 = vmatprep.mubr.f32.mxu0 0.0
          %4942 = vmatmul.mubr.f32.gmra.mrb[0].mxu0 %v3832
          %v4943 = vpop.f32.mrb[0].mxu0
          %v4944 = vadd.f32 %v4479, %v4943
          %v4945 = vpop.f32.mrb[0].mxu0
          %4946 = vmatprep.mubr.f32.mxu0 0.0
          %4947 = vmatmul.mubr.f32.gmra.mrb[0].mxu0 %v3833
          %v4948 = vpop.f32.mrb[0].mxu0
          %v4949 = vadd.f32 %v4484, %v4948
          %v4950 = vpop.f32.mrb[0].mxu0
          %4951 = vmatprep.mubr.f32.mxu0 0.0
          %4952 = vmatmul.mubr.f32.gmra.mrb[0].mxu0 %v3834
          %v4953 = vpop.f32.mrb[0].mxu0
          %v4954 = vadd.f32 %v4489, %v4953
          %v4955 = vpop.f32.mrb[0].mxu0
          %4956 = vdwg.mxu0
          %4957 = vst [vmem:[%s398] sm:$0xff] %v4559
          %4958 = vst [vmem:[%s398 + $0x8] sm:$0xff] %v4564
          %4959 = vst [vmem:[%s398 + $0x10] sm:$0xff] %v4569
          %4960 = vst [vmem:[%s398 + $0x18] sm:$0xff] %v4574
          %4961 = vst [vmem:[%s398 + $0x20] sm:$0xff] %v4579
          %4962 = vst [vmem:[%s398 + $0x28] sm:$0xff] %v4584
          %4963 = vst [vmem:[%s398 + $0x30] sm:$0xff] %v4589
          %4964 = vst [vmem:[%s398 + $0x38] sm:$0xff] %v4594
          %4965 = vst [vmem:[%s398 + $0x40] sm:$0xff] %v4599
          %4966 = vst [vmem:[%s398 + $0x48] sm:$0xff] %v4604
          %4967 = vst [vmem:[%s398 + $0x50] sm:$0xff] %v4609
          %4968 = vst [vmem:[%s398 + $0x58] sm:$0xff] %v4614
          %4969 = vst [vmem:[%s398 + $0x60] sm:$0xff] %v4619
          %4970 = vst [vmem:[%s398 + $0x68] sm:$0xff] %v4624
          %4971 = vst [vmem:[%s398 + $0x70] sm:$0xff] %v4629
          %4972 = vst [vmem:[%s398 + $0x78] sm:$0xff] %v4634
          %4973 = vst [vmem:[%s398 + $0x80] sm:$0xff] %v4639
          %4974 = vst [vmem:[%s398 + $0x88] sm:$0xff] %v4644
          %4975 = vst [vmem:[%s398 + $0x90] sm:$0xff] %v4649
          %4976 = vst [vmem:[%s398 + $0x98] sm:$0xff] %v4654
          %4977 = vst [vmem:[%s398 + $0xa0] sm:$0xff] %v4659
          %4978 = vst [vmem:[%s398 + $0xa8] sm:$0xff] %v4664
          %4979 = vst [vmem:[%s398 + $0xb0] sm:$0xff] %v4669
          %4980 = vst [vmem:[%s398 + $0xb8] sm:$0xff] %v4674
          %4981 = vst [vmem:[%s398 + $0xc0] sm:$0xff] %v4679
          %4982 = vst [vmem:[%s398 + $0xc8] sm:$0xff] %v4684
          %4983 = vst [vmem:[%s398 + $0xd0] sm:$0xff] %v4689
          %4984 = vst [vmem:[%s398 + $0xd8] sm:$0xff] %v4694
          %4985 = vst [vmem:[%s398 + $0xe0] sm:$0xff] %v4699
          %4986 = vst [vmem:[%s398 + $0xe8] sm:$0xff] %v4704
          %4987 = vst [vmem:[%s398 + $0xf0] sm:$0xff] %v4709
          %4988 = vst [vmem:[%s398 + $0xf8] sm:$0xff] %v4714
          %4989 = vst [vmem:[%s398 + $0x100] sm:$0xff] %v4719
          %4990 = vst [vmem:[%s398 + $0x108] sm:$0xff] %v4724
          %4991 = vst [vmem:[%s398 + $0x110] sm:$0xff] %v4729
          %4992 = vst [vmem:[%s398 + $0x118] sm:$0xff] %v4734
          %4993 = vst [vmem:[%s398 + $0x120] sm:$0xff] %v4739
          %4994 = vst [vmem:[%s398 + $0x128] sm:$0xff] %v4744
          %4995 = vst [vmem:[%s398 + $0x130] sm:$0xff] %v4749
          %4996 = vst [vmem:[%s398 + $0x138] sm:$0xff] %v4754
          %4997 = vst [vmem:[%s398 + $0x140] sm:$0xff] %v4759
          %4998 = vst [vmem:[%s398 + $0x148] sm:$0xff] %v4764
          %4999 = vst [vmem:[%s398 + $0x150] sm:$0xff] %v4769
          %5000 = vst [vmem:[%s398 + $0x158] sm:$0xff] %v4774
          %5001 = vst [vmem:[%s398 + $0x160] sm:$0xff] %v4779
          %5002 = vst [vmem:[%s398 + $0x168] sm:$0xff] %v4784
          %5003 = vst [vmem:[%s398 + $0x170] sm:$0xff] %v4789
          %5004 = vst [vmem:[%s398 + $0x178] sm:$0xff] %v4794
          %5005 = vst [vmem:[%s398 + $0x180] sm:$0xff] %v4799
          %5006 = vst [vmem:[%s398 + $0x188] sm:$0xff] %v4804
          %5007 = vst [vmem:[%s398 + $0x190] sm:$0xff] %v4809
          %5008 = vst [vmem:[%s398 + $0x198] sm:$0xff] %v4814
          %5009 = vst [vmem:[%s398 + $0x1a0] sm:$0xff] %v4819
          %5010 = vst [vmem:[%s398 + $0x1a8] sm:$0xff] %v4824
          %5011 = vst [vmem:[%s398 + $0x1b0] sm:$0xff] %v4829
          %5012 = vst [vmem:[%s398 + $0x1b8] sm:$0xff] %v4834
          %5013 = vst [vmem:[%s398 + $0x1c0] sm:$0xff] %v4839
          %5014 = vst [vmem:[%s398 + $0x1c8] sm:$0xff] %v4844
          %5015 = vst [vmem:[%s398 + $0x1d0] sm:$0xff] %v4849
          %5016 = vst [vmem:[%s398 + $0x1d8] sm:$0xff] %v4854
          %5017 = vst [vmem:[%s398 + $0x1e0] sm:$0xff] %v4859
          %5018 = vst [vmem:[%s398 + $0x1e8] sm:$0xff] %v4864
          %5019 = vst [vmem:[%s398 + $0x1f0] sm:$0xff] %v4869
          %5020 = vst [vmem:[%s398 + $0x1f8] sm:$0xff] %v4874
          %5021 = vst [vmem:[%s398 + $0x200] sm:$0xff] %v4879
          %5022 = vst [vmem:[%s398 + $0x208] sm:$0xff] %v4884
          %5023 = vst [vmem:[%s398 + $0x210] sm:$0xff] %v4889
          %5024 = vst [vmem:[%s398 + $0x218] sm:$0xff] %v4894
          %5025 = vst [vmem:[%s398 + $0x220] sm:$0xff] %v4899
          %5026 = vst [vmem:[%s398 + $0x228] sm:$0xff] %v4904
          %5027 = vst [vmem:[%s398 + $0x230] sm:$0xff] %v4909
          %5028 = vst [vmem:[%s398 + $0x238] sm:$0xff] %v4914
          %5029 = vst [vmem:[%s398 + $0x240] sm:$0xff] %v4919
          %5030 = vst [vmem:[%s398 + $0x248] sm:$0xff] %v4924
          %5031 = vst [vmem:[%s398 + $0x250] sm:$0xff] %v4929
          %5032 = vst [vmem:[%s398 + $0x258] sm:$0xff] %v4934
          %5033 = vst [vmem:[%s398 + $0x260] sm:$0xff] %v4939
          %5034 = vst [vmem:[%s398 + $0x268] sm:$0xff] %v4944
          %5035 = vst [vmem:[%s398 + $0x270] sm:$0xff] %v4949
          %5036 = vst [vmem:[%s398 + $0x278] sm:$0xff] %v4954
          %v5037 = vadd.f32 %v4559, %v4564
          %v5038 = vadd.f32 %v5037, %v4569
          %v5039 = vadd.f32 %v5038, %v4574
          %v5040 = vadd.f32 %v5039, %v4579
          %v5041 = vadd.f32 %v5040, %v4584
          %v5042 = vadd.f32 %v5041, %v4589
          %v5043 = vadd.f32 %v5042, %v4594
          %v5044 = vadd.f32 %v5043, %v4599
          %v5045 = vadd.f32 %v5044, %v4604
          %v5046 = vadd.f32 %v5045, %v4609
          %v5047 = vadd.f32 %v5046, %v4614
          %v5048 = vadd.f32 %v5047, %v4619
          %v5049 = vadd.f32 %v5048, %v4624
          %v5050 = vadd.f32 %v5049, %v4629
          %v5051 = vadd.f32 %v5050, %v4634
          %v5052 = vadd.f32 %v5051, %v4639
          %v5053 = vadd.f32 %v5052, %v4644
          %v5054 = vadd.f32 %v5053, %v4649
          %v5055 = vadd.f32 %v5054, %v4654
          %v5056 = vadd.f32 %v5055, %v4659
          %v5057 = vadd.f32 %v5056, %v4664
          %v5058 = vadd.f32 %v5057, %v4669
          %v5059 = vadd.f32 %v5058, %v4674
          %v5060 = vadd.f32 %v5059, %v4679
          %v5061 = vadd.f32 %v5060, %v4684
          %v5062 = vadd.f32 %v5061, %v4689
          %v5063 = vadd.f32 %v5062, %v4694
          %v5064 = vadd.f32 %v5063, %v4699
          %v5065 = vadd.f32 %v5064, %v4704
          %v5066 = vadd.f32 %v5065, %v4709
          %v5067 = vadd.f32 %v5066, %v4714
          %v5068 = vadd.f32 %v5067, %v4719
          %v5069 = vadd.f32 %v5068, %v4724
          %v5070 = vadd.f32 %v5069, %v4729
          %v5071 = vadd.f32 %v5070, %v4734
          %v5072 = vadd.f32 %v5071, %v4739
          %v5073 = vadd.f32 %v5072, %v4744
          %v5074 = vadd.f32 %v5073, %v4749
          %v5075 = vadd.f32 %v5074, %v4754
          %v5076 = vadd.f32 %v5075, %v4759
          %v5077 = vadd.f32 %v5076, %v4764
          %v5078 = vadd.f32 %v5077, %v4769
          %v5079 = vadd.f32 %v5078, %v4774
          %v5080 = vadd.f32 %v5079, %v4779
          %v5081 = vadd.f32 %v5080, %v4784
          %v5082 = vadd.f32 %v5081, %v4789
          %v5083 = vadd.f32 %v5082, %v4794
          %v5084 = vadd.f32 %v5083, %v4799
          %v5085 = vadd.f32 %v5084, %v4804
          %v5086 = vadd.f32 %v5085, %v4809
          %v5087 = vadd.f32 %v5086, %v4814
          %v5088 = vadd.f32 %v5087, %v4819
          %v5089 = vadd.f32 %v5088, %v4824
          %v5090 = vadd.f32 %v5089, %v4829
          %v5091 = vadd.f32 %v5090, %v4834
          %v5092 = vadd.f32 %v5091, %v4839
          %v5093 = vadd.f32 %v5092, %v4844
          %v5094 = vadd.f32 %v5093, %v4849
          %v5095 = vadd.f32 %v5094, %v4854
          %v5096 = vadd.f32 %v5095, %v4859
          %v5097 = vadd.f32 %v5096, %v4864
          %v5098 = vadd.f32 %v5097, %v4869
          %v5099 = vadd.f32 %v5098, %v4874
          %v5100 = vadd.f32 %v5099, %v4879
          %v5101 = vadd.f32 %v5100, %v4884
          %v5102 = vadd.f32 %v5101, %v4889
          %v5103 = vadd.f32 %v5102, %v4894
          %v5104 = vadd.f32 %v5103, %v4899
          %v5105 = vadd.f32 %v5104, %v4904
          %v5106 = vadd.f32 %v5105, %v4909
          %v5107 = vadd.f32 %v5106, %v4914
          %v5108 = vadd.f32 %v5107, %v4919
          %v5109 = vadd.f32 %v5108, %v4924
          %v5110 = vadd.f32 %v5109, %v4929
          %v5111 = vadd.f32 %v5110, %v4934
          %v5112 = vadd.f32 %v5111, %v4939
          %v5113 = vadd.f32 %v5112, %v4944
          %v5114 = vadd.f32 %v5113, %v4949
          %v5115 = vadd.f32 %v5114, %v4954
          %v5116 = vrot.slane %v5115, 4
          %v5117 = vadd.f32 %v5115, %v5116
          %v5118 = vrot.slane %v5117, 2
          %v5119 = vadd.f32 %v5117, %v5118
          %v5120 = vrot.slane %v5119, 1
          %v5121 = vadd.f32 %v5119, %v5120
          %v5122 = vmul.f32 %v4559, %v4559
          %v5123 = vmul.f32 %v4564, %v4564
          %v5124 = vmul.f32 %v4569, %v4569
          %v5125 = vmul.f32 %v4574, %v4574
          %v5126 = vmul.f32 %v4579, %v4579
          %v5127 = vmul.f32 %v4584, %v4584
          %v5128 = vmul.f32 %v4589, %v4589
          %v5129 = vmul.f32 %v4594, %v4594
          %v5130 = vmul.f32 %v4599, %v4599
          %v5131 = vmul.f32 %v4604, %v4604
          %v5132 = vmul.f32 %v4609, %v4609
          %v5133 = vmul.f32 %v4614, %v4614
          %v5134 = vmul.f32 %v4619, %v4619
          %v5135 = vmul.f32 %v4624, %v4624
          %v5136 = vmul.f32 %v4629, %v4629
          %v5137 = vmul.f32 %v4634, %v4634
          %v5138 = vmul.f32 %v4639, %v4639
          %v5139 = vmul.f32 %v4644, %v4644
          %v5140 = vmul.f32 %v4649, %v4649
          %v5141 = vmul.f32 %v4654, %v4654
          %v5142 = vmul.f32 %v4659, %v4659
          %v5143 = vmul.f32 %v4664, %v4664
          %v5144 = vmul.f32 %v4669, %v4669
          %v5145 = vmul.f32 %v4674, %v4674
          %v5146 = vmul.f32 %v4679, %v4679
          %v5147 = vmul.f32 %v4684, %v4684
          %v5148 = vmul.f32 %v4689, %v4689
          %v5149 = vmul.f32 %v4694, %v4694
          %v5150 = vmul.f32 %v4699, %v4699
          %v5151 = vmul.f32 %v4704, %v4704
          %v5152 = vmul.f32 %v4709, %v4709
          %v5153 = vmul.f32 %v4714, %v4714
          %v5154 = vmul.f32 %v4719, %v4719
          %v5155 = vmul.f32 %v4724, %v4724
          %v5156 = vmul.f32 %v4729, %v4729
          %v5157 = vmul.f32 %v4734, %v4734
          %v5158 = vmul.f32 %v4739, %v4739
          %v5159 = vmul.f32 %v4744, %v4744
          %v5160 = vmul.f32 %v4749, %v4749
          %v5161 = vmul.f32 %v4754, %v4754
          %v5162 = vmul.f32 %v4759, %v4759
          %v5163 = vmul.f32 %v4764, %v4764
          %v5164 = vmul.f32 %v4769, %v4769
          %v5165 = vmul.f32 %v4774, %v4774
          %v5166 = vmul.f32 %v4779, %v4779
          %v5167 = vmul.f32 %v4784, %v4784
          %v5168 = vmul.f32 %v4789, %v4789
          %v5169 = vmul.f32 %v4794, %v4794
          %v5170 = vmul.f32 %v4799, %v4799
          %v5171 = vmul.f32 %v4804, %v4804
          %v5172 = vmul.f32 %v4809, %v4809
          %v5173 = vmul.f32 %v4814, %v4814
          %v5174 = vmul.f32 %v4819, %v4819
          %v5175 = vmul.f32 %v4824, %v4824
          %v5176 = vmul.f32 %v4829, %v4829
          %v5177 = vmul.f32 %v4834, %v4834
          %v5178 = vmul.f32 %v4839, %v4839
          %v5179 = vmul.f32 %v4844, %v4844
          %v5180 = vmul.f32 %v4849, %v4849
          %v5181 = vmul.f32 %v4854, %v4854
          %v5182 = vmul.f32 %v4859, %v4859
          %v5183 = vmul.f32 %v4864, %v4864
          %v5184 = vmul.f32 %v4869, %v4869
          %v5185 = vmul.f32 %v4874, %v4874
          %v5186 = vmul.f32 %v4879, %v4879
          %v5187 = vmul.f32 %v4884, %v4884
          %v5188 = vmul.f32 %v4889, %v4889
          %v5189 = vmul.f32 %v4894, %v4894
          %v5190 = vmul.f32 %v4899, %v4899
          %v5191 = vmul.f32 %v4904, %v4904
          %v5192 = vmul.f32 %v4909, %v4909
          %v5193 = vmul.f32 %v4914, %v4914
          %v5194 = vmul.f32 %v4919, %v4919
          %v5195 = vmul.f32 %v4924, %v4924
          %v5196 = vmul.f32 %v4929, %v4929
          %v5197 = vmul.f32 %v4934, %v4934
          %v5198 = vmul.f32 %v4939, %v4939
          %v5199 = vmul.f32 %v4944, %v4944
          %v5200 = vmul.f32 %v4949, %v4949
          %v5201 = vmul.f32 %v4954, %v4954
          %v5202 = vadd.f32 %v5122, %v5123
          %v5203 = vadd.f32 %v5202, %v5124
          %v5204 = vadd.f32 %v5203, %v5125
          %v5205 = vadd.f32 %v5204, %v5126
          %v5206 = vadd.f32 %v5205, %v5127
          %v5207 = vadd.f32 %v5206, %v5128
          %v5208 = vadd.f32 %v5207, %v5129
          %v5209 = vadd.f32 %v5208, %v5130
          %v5210 = vadd.f32 %v5209, %v5131
          %v5211 = vadd.f32 %v5210, %v5132
          %v5212 = vadd.f32 %v5211, %v5133
          %v5213 = vadd.f32 %v5212, %v5134
          %v5214 = vadd.f32 %v5213, %v5135
          %v5215 = vadd.f32 %v5214, %v5136
          %v5216 = vadd.f32 %v5215, %v5137
          %v5217 = vadd.f32 %v5216, %v5138
          %v5218 = vadd.f32 %v5217, %v5139
          %v5219 = vadd.f32 %v5218, %v5140
          %v5220 = vadd.f32 %v5219, %v5141
          %v5221 = vadd.f32 %v5220, %v5142
          %v5222 = vadd.f32 %v5221, %v5143
          %v5223 = vadd.f32 %v5222, %v5144
          %v5224 = vadd.f32 %v5223, %v5145
          %v5225 = vadd.f32 %v5224, %v5146
          %v5226 = vadd.f32 %v5225, %v5147
          %v5227 = vadd.f32 %v5226, %v5148
          %v5228 = vadd.f32 %v5227, %v5149
          %v5229 = vadd.f32 %v5228, %v5150
          %v5230 = vadd.f32 %v5229, %v5151
          %v5231 = vadd.f32 %v5230, %v5152
          %v5232 = vadd.f32 %v5231, %v5153
          %v5233 = vadd.f32 %v5232, %v5154
          %v5234 = vadd.f32 %v5233, %v5155
          %v5235 = vadd.f32 %v5234, %v5156
          %v5236 = vadd.f32 %v5235, %v5157
          %v5237 = vadd.f32 %v5236, %v5158
          %v5238 = vadd.f32 %v5237, %v5159
          %v5239 = vadd.f32 %v5238, %v5160
          %v5240 = vadd.f32 %v5239, %v5161
          %v5241 = vadd.f32 %v5240, %v5162
          %v5242 = vadd.f32 %v5241, %v5163
          %v5243 = vadd.f32 %v5242, %v5164
          %v5244 = vadd.f32 %v5243, %v5165
          %v5245 = vadd.f32 %v5244, %v5166
          %v5246 = vadd.f32 %v5245, %v5167
          %v5247 = vadd.f32 %v5246, %v5168
          %v5248 = vadd.f32 %v5247, %v5169
          %v5249 = vadd.f32 %v5248, %v5170
          %v5250 = vadd.f32 %v5249, %v5171
          %v5251 = vadd.f32 %v5250, %v5172
          %v5252 = vadd.f32 %v5251, %v5173
          %v5253 = vadd.f32 %v5252, %v5174
          %v5254 = vadd.f32 %v5253, %v5175
          %v5255 = vadd.f32 %v5254, %v5176
          %v5256 = vadd.f32 %v5255, %v5177
          %v5257 = vadd.f32 %v5256, %v5178
          %v5258 = vadd.f32 %v5257, %v5179
          %v5259 = vadd.f32 %v5258, %v5180
          %v5260 = vadd.f32 %v5259, %v5181
          %v5261 = vadd.f32 %v5260, %v5182
          %v5262 = vadd.f32 %v5261, %v5183
          %v5263 = vadd.f32 %v5262, %v5184
          %v5264 = vadd.f32 %v5263, %v5185
          %v5265 = vadd.f32 %v5264, %v5186
          %v5266 = vadd.f32 %v5265, %v5187
          %v5267 = vadd.f32 %v5266, %v5188
          %v5268 = vadd.f32 %v5267, %v5189
          %v5269 = vadd.f32 %v5268, %v5190
          %v5270 = vadd.f32 %v5269, %v5191
          %v5271 = vadd.f32 %v5270, %v5192
          %v5272 = vadd.f32 %v5271, %v5193
          %v5273 = vadd.f32 %v5272, %v5194
          %v5274 = vadd.f32 %v5273, %v5195
          %v5275 = vadd.f32 %v5274, %v5196
          %v5276 = vadd.f32 %v5275, %v5197
          %v5277 = vadd.f32 %v5276, %v5198
          %v5278 = vadd.f32 %v5277, %v5199
          %v5279 = vadd.f32 %v5278, %v5200
          %v5280 = vadd.f32 %v5279, %v5201
          %v5281 = vrot.slane %v5280, 4
          %v5282 = vadd.f32 %v5280, %v5281
          %v5283 = vrot.slane %v5282, 2
          %v5284 = vadd.f32 %v5282, %v5283
          %v5285 = vrot.slane %v5284, 1
          %v5286 = vadd.f32 %v5284, %v5285
          %5287 = vst [vmem:[%s405] sm:$0xff] %v5121
          %5288 = vst [vmem:[%s412] sm:$0xff] %v5286
        $region68: #{tpu_custom_call.1} parent=39 // pred_fallthru
          _
        %s5289 = sand.u32 %s167, 1
        %s5290 = scalar_lea.sflag [#allocation5], %s5289
        %s5291 = sand.u32 %s167, 1
        %s5292 = smul.addr %s5291, 640
        %s5293 = scalar_lea.vmem [#allocation12], %s5292
        %s5294 = sand.u32 %s30, 1
        %s5295 = scalar_lea.sflag [#allocation14], %s5294
        %s5296 = sand.u32 %s193, 1
        %s5297 = smul.addr %s5296, 8
        %s5298 = scalar_lea.vmem [#allocation13], %s5297
        %s5299 = sand.u32 %s30, 1
        %s5300 = scalar_lea.sflag [#allocation14], %s5299
        %s5301 = sand.u32 %s219, 1
        %s5302 = smul.addr %s5301, 8
        %s5303 = scalar_lea.vmem [#allocation15], %s5302
        // Predicated region
        $region69: #{tpu_custom_call.1} parent=39 // pred_check
          %p5304 = pneg %p177
        $region70: #{tpu_custom_call.1} parent=39 // pred_check_branch
          %5306 = sbr.rel (%p5304) target = $region72
        $region71: #{tpu_custom_call.1} parent=39 // pred_region
          %s5307 = smul.u32 80, %s34
          %s5309 = ssub.s32 10240, 10240
          %5310 = vsyncadd %s5290, %s5309
          %s5311 = smul.addr %s5307, 128
          %s5312 = scalar_lea.hbm %s5, %s5311
          %s5313 = sshll.u32 %s5293, 4
          %s5314 = int_to_ptr.vmem [resolvable:$true] %s5313
          %5319 = dma.vmem_to_hbm [thread:$0]  %s5314, 10240, %s5312, %s5290, 128, 128, 8
        $region72: #{tpu_custom_call.1} parent=39 // pred_fallthru
          _
        // Predicated region
        $region73: #{tpu_custom_call.1} parent=39 // pred_check
          %p5320 = pneg %p203
        $region74: #{tpu_custom_call.1} parent=39 // pred_check_branch
          %5322 = sbr.rel (%p5320) target = $region76
        $region75: #{tpu_custom_call.1} parent=39 // pred_region
          %s5324 = ssub.s32 128, 128
          %5325 = vsyncadd %s5295, %s5324
          %s5326 = smul.addr %s34, 128
          %s5327 = scalar_lea.hbm %s6, %s5326
          %s5329 = sshll.u32 %s5298, 4
          %s5330 = int_to_ptr.vmem [resolvable:$true] %s5329
          %5332 = dma.vmem_to_hbm [thread:$0]  %s5330, 128, %s5327, %s5295
        $region76: #{tpu_custom_call.1} parent=39 // pred_fallthru
          _
        // Predicated region
        $region77: #{tpu_custom_call.1} parent=39 // pred_check
          %p5333 = pneg %p229
        $region78: #{tpu_custom_call.1} parent=39 // pred_check_branch
          %5335 = sbr.rel (%p5333) target = $region80
        $region79: #{tpu_custom_call.1} parent=39 // pred_region
          %s5337 = ssub.s32 128, 128
          %5338 = vsyncadd %s5300, %s5337
          %s5339 = smul.addr %s34, 128
          %s5340 = scalar_lea.hbm %s7, %s5339
          %s5342 = sshll.u32 %s5303, 4
          %s5343 = int_to_ptr.vmem [resolvable:$true] %s5342
          %5345 = dma.vmem_to_hbm [thread:$0]  %s5343, 128, %s5340, %s5300
        $region80: #{tpu_custom_call.1} parent=39 // pred_fallthru
          _
      $region40: #{tpu_custom_call.1} parent=5 // pred_fallthru
        _
      %p5346 = scmp.le.s32.totalorder 2, %s25
      // Predicated region
      $region81: #{tpu_custom_call.1} parent=5 // pred_check
        %p5347 = pneg %p5346
      $region82: #{tpu_custom_call.1} parent=5 // pred_check_branch
        %5349 = sbr.rel (%p5347) target = $region84
      $region83: #{tpu_custom_call.1} parent=5 // pred_region
        %s5350 = ssub.s32 %s25, 2
        // Predicated region
        $region85: #{tpu_custom_call.1} parent=83 // pred_check
          %p5351 = pneg %p183
        $region86: #{tpu_custom_call.1} parent=83 // pred_check_branch
          %5353 = sbr.rel (%p5351) target = $region88
        $region87: #{tpu_custom_call.1} parent=83 // pred_region
          %s5354 = sand.u32 %s168, 1
          %s5355 = scalar_lea.sflag [#allocation5], %s5354
          %s5356 = sand.u32 %s168, 1
          %s5357 = smul.addr %s5356, 640
          %s5358 = scalar_lea.vmem [#allocation12], %s5357
          %5359 = dma.done %s5355, 10240
        $region88: #{tpu_custom_call.1} parent=83 // pred_fallthru
          _
        // Predicated region
        $region89: #{tpu_custom_call.1} parent=83 // pred_check
          %p5360 = pneg %p209
        $region90: #{tpu_custom_call.1} parent=83 // pred_check_branch
          %5362 = sbr.rel (%p5360) target = $region92
        $region91: #{tpu_custom_call.1} parent=83 // pred_region
          %s5363 = sand.u32 %s31, 1
          %s5364 = scalar_lea.sflag [#allocation14], %s5363
          %s5365 = sand.u32 %s194, 1
          %s5366 = smul.addr %s5365, 8
          %s5367 = scalar_lea.vmem [#allocation13], %s5366
          %5368 = dma.done %s5364, 128
        $region92: #{tpu_custom_call.1} parent=83 // pred_fallthru
          _
        // Predicated region
        $region93: #{tpu_custom_call.1} parent=83 // pred_check
          %p5369 = pneg %p235
        $region94: #{tpu_custom_call.1} parent=83 // pred_check_branch
          %5371 = sbr.rel (%p5369) target = $region96
        $region95: #{tpu_custom_call.1} parent=83 // pred_region
          %s5372 = sand.u32 %s31, 1
          %s5373 = scalar_lea.sflag [#allocation14], %s5372
          %s5374 = sand.u32 %s220, 1
          %s5375 = smul.addr %s5374, 8
          %s5376 = scalar_lea.vmem [#allocation15], %s5375
          %5377 = dma.done %s5373, 128
        $region96: #{tpu_custom_call.1} parent=83 // pred_fallthru
          _
      $region84: #{tpu_custom_call.1} parent=5 // pred_fallthru
        _
    $region6: #{tpu_custom_call.1} parent=1 // loop_footer
      %s29 = sadd.s32 1, %s25
    $region7: #{tpu_custom_call.1} parent=1 // loop_footer_branch
      %24 = sbr.rel target = $region3
    $region8: #{tpu_custom_call.1} parent=1 // loop_exit
      _
    %5378 = vsyncpa [#allocation4], 1
    %s5379 = scalar_lea.sflag [#allocation4], 1
    %5380 = vsyncpa %s5379, 1
    %5381 = vsyncpa [#allocation7], 1
    %5382 = vsyncpa [#allocation11], 1
    %5383 = vsyncpa [#allocation5], 1
    %s5384 = scalar_lea.sflag [#allocation5], 1
    %5385 = vsyncpa %s5384, 1
    %5386 = vsyncpa [#allocation14], 1
    %s5387 = scalar_lea.sflag [#allocation14], 1
    %5388 = vsyncpa %s5387, 1

</llo_original>
